<compile_context>
chip_gen: v7x
topology: tpu7x:2x2x1
jax: 0.10.0
libtpu: 0.0.40
codegen_flags: <defaults>
</compile_context>

<pallas_src>
import math

import jax
import jax.numpy as jnp
from jax import lax
from jax.experimental import pallas as pl
from jax.experimental.pallas import tpu as pltpu


_VMEM_SPEC = pl.BlockSpec(memory_space=pltpu.MemorySpace.VMEM)
_BN_EPS = 1e-5


# ----------------------------------------------------------------------------
# Fused kernel
# ----------------------------------------------------------------------------
def _make_fused_kernel(B, T, dil_schedule, K, C, R, t_final):
    sched = tuple(int(d) for d in dil_schedule)
    kc = (K - 1) // 2  # center tap index

    def kernel(x_ref, wm_ref, wg_ref, wo_ref, w1_ref, lsm_ref, gsm_ref, o_ref):
        # ---- global small params (one packed (8,128) slab, lane-0 aligned) ----
        gsm = gsm_ref[...]
        bm = gsm[0:1, 0:C]
        b1 = gsm[1:2, 0:R]
        w2 = gsm[2:3, 0:R]
        b2 = gsm[3:4, 0:1]

        # ---- mfcc_to_features: 1x1 conv == one bf16 matmul over all (t,b) rows
        feat = jnp.dot(x_ref[...].astype(jnp.bfloat16), wm_ref[...],
                       preferred_element_type=jnp.float32) + bm

        res = None
        t_cur = T

        # ---- WaveNet layers (statically unrolled; dilation schedule is static)
        for li, d in enumerate(sched):
            t_out = t_cur - d * (K - 1)
            pad = (d * (K - 1)) // 2

            sm = lsm_ref[li]                      # (8, 128) per-layer small params
            gamma = sm[0:1, 0:C]
            beta = sm[1:2, 0:C]
            bg = sm[2:3, 0:2 * C]                 # [bt | 0.5*bs]
            bo = sm[3:4, 0:C + R]                 # [blin | bres]

            # BatchNorm1d (training): single-pass biased stats over rows.
            # Two independent axis-0 reductions in f32 (no centered 2nd pass).
            m1 = jnp.mean(feat, axis=0, keepdims=True)
            m2 = jnp.mean(feat * feat, axis=0, keepdims=True)
            scale = lax.rsqrt(m2 - m1 * m1 + _BN_EPS) * gamma
            xn = feat * scale + (beta - m1 * scale)

            # Dilated gated conv: lane-concat the K shifted row slices and run
            # ONE matmul (contraction K*C, output 2C = [tanh | 0.5*sigmoid]).
            xin = jnp.concatenate(
                [xn[k * d * B:(k * d + t_out) * B, :] for k in range(K)], axis=-1)
            acc = jnp.dot(xin.astype(jnp.bfloat16), wg_ref[li],
                          preferred_element_type=jnp.float32) + bg

            # One EUP pass: sigmoid(x) = 0.5*tanh(x/2)+0.5 (0.5 folded into Ws/bs)
            th = jnp.tanh(acc)
            g = th[:, :C] * (th[:, C:2 * C] * 0.5 + 0.5)

            # Fused 1x1 lin|res projection, then cropped residual / skip adds.
            out = jnp.dot(g.astype(jnp.bfloat16), wo_ref[li],
                          preferred_element_type=jnp.float32) + bo
            # Center tap of xin == xn cropped by `pad` rows (K odd): reuse the
            # already-relaid-out lanes instead of another misaligned row slice.
            if kc * d == pad:
                xcrop = xin[:, kc * C:(kc + 1) * C]
            else:
                xcrop = xn[pad * B:(pad + t_out) * B, :]
            feat = xcrop + out[:, :C]
            r_new = out[:, C:C + R]
            res = r_new if res is None else (
                res[pad * B:(pad + t_out) * B, :] + r_new)
            t_cur = t_out

        # ---- classifier: ReLU -> 1x1 -> ReLU -> lane-wise VPU dot -> max_t -> sigmoid
        h = jnp.maximum(res, 0.0)
        h = jnp.maximum(jnp.dot(h.astype(jnp.bfloat16), w1_ref[...],
                                preferred_element_type=jnp.float32) + b1, 0.0)
        logits = jnp.sum(h * w2, axis=-1, keepdims=True) + b2

        # Per-batch max over time first (sigmoid is monotone), then ONE sigmoid
        # per batch. Batch-id mask generated in-kernel (row = t*B + b).
        rows = lax.broadcasted_iota(jnp.int32, (t_final * B, B), 0)
        cols = lax.broadcasted_iota(jnp.int32, (t_final * B, B), 1)
        masked = jnp.where((rows % B) == cols, logits, -jnp.inf)
        o_ref[...] = jax.nn.sigmoid(jnp.max(masked, axis=0, keepdims=True))

    return kernel


# ----------------------------------------------------------------------------
# Parameter packing (fuse gate / output weights, stack over layers)
# ----------------------------------------------------------------------------
def _pack_params(params, dilations, filter_len):
    K = int(filter_len)
    C = params['Wm'].shape[1]
    R = params['W1'].shape[0]

    dil, wg, wo, lsm = [], [], [], []
    for block_layers in params['blocks']:
        for layer, d in zip(block_layers, dilations):
            dil.append(int(d))
            # Fused tap weights: rows = (tap k, in-channel c), cols = [Wt | 0.5*Ws]
            wg_l = jnp.concatenate([layer['Wt'], 0.5 * layer['Ws']],
                                   axis=-1).reshape(K * C, 2 * C)
            wg.append(wg_l)
            # Fused 1x1 projection: cols = [Wlin | Wres]
            wo.append(jnp.concatenate([layer['Wlin'], layer['Wres']], axis=-1))
            # Per-layer small params: one (8,128) slab, one vector per sublane.
            sm = jnp.zeros((8, 128), jnp.float32)
            sm = sm.at[0, :C].set(layer['gamma'][0])
            sm = sm.at[1, :C].set(layer['beta'][0])
            sm = sm.at[2, :C].set(layer['bt'][0]).at[2, C:2 * C].set(
                0.5 * layer['bs'][0])
            sm = sm.at[3, :C].set(layer['blin'][0]).at[3, C:C + R].set(
                layer['bres'][0])
            lsm.append(sm)

    gsm = jnp.zeros((8, 128), jnp.float32)
    gsm = gsm.at[0, :C].set(params['bm'][0])
    gsm = gsm.at[1, :R].set(params['b1'][0])
    gsm = gsm.at[2, :R].set(params['W2'][:, 0])
    gsm = gsm.at[3, 0].set(params['b2'][0, 0])

    packed = dict(
        Wm=params['Wm'].astype(jnp.bfloat16),     # (F_in, C)
        Wg=jnp.stack(wg).astype(jnp.bfloat16),    # (L, K*C, 2C)
        Wo=jnp.stack(wo).astype(jnp.bfloat16),    # (L, C, C+R)
        W1=params['W1'].astype(jnp.bfloat16),     # (R, R)
        lsm=jnp.stack(lsm),                       # (L, 8, 128) f32
        gsm=gsm,                                  # (8, 128)    f32
    )
    return packed, tuple(dil)


# ----------------------------------------------------------------------------
# Forward wrapper
# ----------------------------------------------------------------------------
def keyword_spotter_forward(x, params, dilations, filter_len):
    """x: [batch, timesteps, mfcc features] -> [batch]"""
    x = x.astype(jnp.float32)
    B, T, F = x.shape
    C = params['Wm'].shape[1]
    R = params['W1'].shape[0]
    K = int(filter_len)

    packed, dil = _pack_params(params, dilations, filter_len)

    # Final (cropped) time length after all layers — static.
    t_final = T
    for d in dil:
        t_final -= d * (K - 1)
    assert t_final > 0, "time axis fully consumed by dilated convolutions"

    # time-major / batch-minor flattening: row = t*B + b.
    xtb = jnp.transpose(x, (1, 0, 2)).reshape(T * B, F)

    out = pl.pallas_call(
        _make_fused_kernel(B, T, dil, K, C, R, t_final),
        out_shape=jax.ShapeDtypeStruct((1, B), jnp.float32),
        in_specs=[_VMEM_SPEC] * 7,
        out_specs=_VMEM_SPEC,
        compiler_params=pltpu.CompilerParams(
            vmem_limit_bytes=32 * 1024 * 1024),
    )(xtb, packed['Wm'], packed['Wg'], packed['Wo'], packed['W1'],
      packed['lsm'], packed['gsm'])
    return out[0]


# ----------------------------------------------------------------------------
# Pure-JAX reference (mirrors the PyTorch forward, channels-last layout)
# ----------------------------------------------------------------------------
def ref_forward(x, params, dilations, filter_len):
    x = x.astype(jnp.float32)
    K = filter_len
    B, T, _ = x.shape
    R = params['W1'].shape[0]
    feat = jnp.einsum('btf,fc->btc', x, params['Wm']) + params['bm']
    res = jnp.zeros((B, T, R), jnp.float32)
    for block_layers in params['blocks']:
        for layer, d in zip(block_layers, dilations):
            mean = jnp.mean(feat, axis=(0, 1), keepdims=True)
            var = jnp.mean((feat - mean) ** 2, axis=(0, 1), keepdims=True)
            xn = (feat - mean) / jnp.sqrt(var + 1e-5) * layer['gamma'] + layer['beta']
            Tcur = feat.shape[1]
            Tout = Tcur - d * (K - 1)
            pad = (d * (K - 1)) // 2
            acc_t = jnp.zeros((B, Tout, xn.shape[-1])) + layer['bt']
            acc_s = jnp.zeros((B, Tout, xn.shape[-1])) + layer['bs']
            for k in range(K):
                xs = xn[:, k * d:k * d + Tout, :]
                acc_t = acc_t + jnp.einsum('btc,co->bto', xs, layer['Wt'][k])
                acc_s = acc_s + jnp.einsum('btc,co->bto', xs, layer['Ws'][k])
            g = jnp.tanh(acc_t) * jax.nn.sigmoid(acc_s)
            x_lin = jnp.einsum('btc,co->bto', g, layer['Wlin']) + layer['blin']
            x_res = jnp.einsum('btc,cr->btr', g, layer['Wres']) + layer['bres']
            feat = xn[:, pad:pad + Tout, :] + x_lin
            res = res[:, pad:pad + Tout, :] + x_res
    h = jnp.maximum(res, 0.0)
    h = jnp.maximum(jnp.einsum('btr,rs->bts', h, params['W1']) + params['b1'], 0.0)
    s = jax.nn.sigmoid(jnp.einsum('bts,so->bto', h, params['W2']) + params['b2'])
    return jnp.max(s, axis=(1, 2))


# ----------------------------------------------------------------------------
# Deterministic parameter initialization (synthetic, shapes from module __init__)
# ----------------------------------------------------------------------------
def init_params(key, features_in, features_per_layer, res_features,
                num_blocks, dilations, filter_len):
    C, R, K = features_per_layer, res_features, filter_len
    keys = list(jax.random.split(key, 8 + num_blocks * len(dilations) * 10))
    it = iter(keys)

    def nrm(shape, scale):
        return (scale * jax.random.normal(next(it), shape)).astype(jnp.float32)

    params = {
        'Wm': nrm((features_in, C), 1.0 / math.sqrt(features_in)),
        'bm': nrm((1, C), 0.1),
        'W1': nrm((R, R), 1.0 / math.sqrt(R)),
        'b1': nrm((1, R), 0.1),
        'W2': nrm((R, 1), 1.0 / math.sqrt(R)),
        'b2': nrm((1, 1), 0.1),
    }
    blocks = []
    for _ in range(num_blocks):
        layers = []
        for _ in dilations:
            layers.append({
                'gamma': 1.0 + nrm((1, C), 0.1),
                'beta': nrm((1, C), 0.1),
                'Wt': nrm((K, C, C), 1.0 / math.sqrt(K * C)),
                'bt': nrm((1, C), 0.1),
                'Ws': nrm((K, C, C), 1.0 / math.sqrt(K * C)),
                'bs': nrm((1, C), 0.1),
                'Wlin': nrm((C, C), 1.0 / math.sqrt(C)),
                'blin': nrm((1, C), 0.1),
                'Wres': nrm((C, R), 1.0 / math.sqrt(C)),
                'bres': nrm((1, R), 0.1),
            })
        blocks.append(layers)
    params['blocks'] = blocks
    return params


# ----------------------------------------------------------------------------
if __name__ == "__main__":
    # Small config consistent with the module (reduced blocks/dilations so the
    # cropped time axis stays positive at small T).
    B, T, FEATURES_IN = 2, 64, 8
    FEATURES_PER_LAYER, RES_FEATURES = 16, 32
    NUM_BLOCKS, DILATIONS, FILTER_LEN = 2, [1, 2, 4], 3

    key = jax.random.PRNGKey(0)
    kx, kp = jax.random.split(key)
    x = jax.random.normal(kx, (B, T, FEATURES_IN), dtype=jnp.float32)
    params = init_params(kp, FEATURES_IN, FEATURES_PER_LAYER, RES_FEATURES,
                         NUM_BLOCKS, DILATIONS, FILTER_LEN)

    fwd = jax.jit(lambda xv, pv: keyword_spotter_forward(xv, pv, DILATIONS, FILTER_LEN))
    out = jax.block_until_ready(fwd(x, params))
    assert out.shape == (B,)

    ref = jax.block_until_ready(ref_forward(x, params, DILATIONS, FILTER_LEN))
    # Kernel uses bf16 MXU operands (per perf review); tolerance widened
    # accordingly (final values are sigmoid outputs in [0, 1]).
    assert jnp.allclose(out, ref, atol=5e-3, rtol=5e-3), (out, ref)

    print("KERNEL_OK")
</pallas_src>

<mosaic_0001>
module attributes {stable_mosaic.version = 11 : i64} {
  func.func @kernel(%arg0: memref<128x8xf32, #tpu.memory_space<vmem>>, %arg1: memref<8x16xbf16, #tpu.memory_space<vmem>>, %arg2: memref<6x48x32xbf16, #tpu.memory_space<vmem>>, %arg3: memref<6x16x48xbf16, #tpu.memory_space<vmem>>, %arg4: memref<32x32xbf16, #tpu.memory_space<vmem>>, %arg5: memref<6x8x128xf32, #tpu.memory_space<vmem>>, %arg6: memref<8x128xf32, #tpu.memory_space<vmem>>, %arg7: memref<1x2xf32, #tpu.memory_space<vmem>>) attributes {dimension_semantics = [], scalar_prefetch = 0 : i64, scratch_operands = 0 : i64, tpu.core_type = #tpu.core_type<tc>} {
    %c0 = arith.constant 0 : index
    %c0_0 = arith.constant 0 : index
    %0 = vector.load %arg6[%c0, %c0_0] : memref<8x128xf32, #tpu.memory_space<vmem>>, vector<8x128xf32>
    %1 = vector.extract_strided_slice %0 {offsets = [0, 0], sizes = [1, 16], strides = [1, 1]} : vector<8x128xf32> to vector<1x16xf32>
    %2 = vector.extract_strided_slice %0 {offsets = [1, 0], sizes = [1, 32], strides = [1, 1]} : vector<8x128xf32> to vector<1x32xf32>
    %3 = vector.extract_strided_slice %0 {offsets = [2, 0], sizes = [1, 32], strides = [1, 1]} : vector<8x128xf32> to vector<1x32xf32>
    %4 = vector.extract_strided_slice %0 {offsets = [3, 0], sizes = [1, 1], strides = [1, 1]} : vector<8x128xf32> to vector<1x1xf32>
    %c0_1 = arith.constant 0 : index
    %c0_2 = arith.constant 0 : index
    %5 = vector.load %arg0[%c0_1, %c0_2] : memref<128x8xf32, #tpu.memory_space<vmem>>, vector<128x8xf32>
    %6 = arith.truncf %5 : vector<128x8xf32> to vector<128x8xbf16>
    %c0_3 = arith.constant 0 : index
    %c0_4 = arith.constant 0 : index
    %7 = vector.load %arg1[%c0_3, %c0_4] : memref<8x16xbf16, #tpu.memory_space<vmem>>, vector<8x16xbf16>
    %cst = arith.constant dense<0.000000e+00> : vector<128x16xf32>
    %8 = tpu.matmul %6, %7, %cst {dimension_numbers = #tpu.dot_dimension_numbers<[1], [0], [0], [1], [0, 0, 1, 1], [], []>} : vector<128x8xbf16>, vector<8x16xbf16>, vector<128x16xf32> -> vector<128x16xf32>
    %9 = vector.broadcast %1 : vector<1x16xf32> to vector<128x16xf32>
    %10 = arith.addf %8, %9 : vector<128x16xf32>
    %c0_5 = arith.constant 0 : index
    %c0_6 = arith.constant 0 : index
    %c0_7 = arith.constant 0 : index
    %11 = vector.load %arg5[%c0_5, %c0_6, %c0_7] : memref<6x8x128xf32, #tpu.memory_space<vmem>>, vector<1x8x128xf32>
    %12 = vector.shape_cast %11 : vector<1x8x128xf32> to vector<8x128xf32>
    %13 = vector.extract_strided_slice %12 {offsets = [0, 0], sizes = [1, 16], strides = [1, 1]} : vector<8x128xf32> to vector<1x16xf32>
    %14 = vector.extract_strided_slice %12 {offsets = [1, 0], sizes = [1, 16], strides = [1, 1]} : vector<8x128xf32> to vector<1x16xf32>
    %15 = vector.extract_strided_slice %12 {offsets = [2, 0], sizes = [1, 32], strides = [1, 1]} : vector<8x128xf32> to vector<1x32xf32>
    %16 = vector.extract_strided_slice %12 {offsets = [3, 0], sizes = [1, 48], strides = [1, 1]} : vector<8x128xf32> to vector<1x48xf32>
    %cst_8 = arith.constant dense<0.000000e+00> : vector<16xf32>
    %17 = vector.multi_reduction <add>, %10, %cst_8 [0] : vector<128x16xf32> to vector<16xf32>
    %18 = vector.shape_cast %17 : vector<16xf32> to vector<1x16xf32>
    %cst_9 = arith.constant 1.280000e+02 : f32
    %19 = vector.broadcast %cst_9 : f32 to vector<1x16xf32>
    %20 = arith.divf %18, %19 : vector<1x16xf32>
    %21 = arith.mulf %10, %10 : vector<128x16xf32>
    %cst_10 = arith.constant dense<0.000000e+00> : vector<16xf32>
    %22 = vector.multi_reduction <add>, %21, %cst_10 [0] : vector<128x16xf32> to vector<16xf32>
    %23 = vector.shape_cast %22 : vector<16xf32> to vector<1x16xf32>
    %cst_11 = arith.constant 1.280000e+02 : f32
    %24 = vector.broadcast %cst_11 : f32 to vector<1x16xf32>
    %25 = arith.divf %23, %24 : vector<1x16xf32>
    %26 = arith.mulf %20, %20 : vector<1x16xf32>
    %27 = arith.subf %25, %26 : vector<1x16xf32>
    %cst_12 = arith.constant 9.99999974E-6 : f32
    %28 = vector.broadcast %cst_12 : f32 to vector<1x16xf32>
    %29 = arith.addf %27, %28 : vector<1x16xf32>
    %30 = math.rsqrt %29 : vector<1x16xf32>
    %31 = arith.mulf %30, %13 : vector<1x16xf32>
    %32 = vector.broadcast %31 : vector<1x16xf32> to vector<128x16xf32>
    %33 = arith.mulf %10, %32 : vector<128x16xf32>
    %34 = arith.mulf %20, %31 : vector<1x16xf32>
    %35 = arith.subf %14, %34 : vector<1x16xf32>
    %36 = vector.broadcast %35 : vector<1x16xf32> to vector<128x16xf32>
    %37 = arith.addf %33, %36 : vector<128x16xf32>
    %38 = vector.extract_strided_slice %37 {offsets = [0, 0], sizes = [124, 16], strides = [1, 1]} : vector<128x16xf32> to vector<124x16xf32>
    %39 = vector.extract_strided_slice %37 {offsets = [2, 0], sizes = [124, 16], strides = [1, 1]} : vector<128x16xf32> to vector<124x16xf32>
    %40 = vector.extract_strided_slice %37 {offsets = [4, 0], sizes = [124, 16], strides = [1, 1]} : vector<128x16xf32> to vector<124x16xf32>
    %41 = tpu.concatenate %38, %39, %40 in 1 : vector<124x16xf32>, vector<124x16xf32>, vector<124x16xf32> -> vector<124x48xf32>
    %42 = arith.truncf %41 : vector<124x48xf32> to vector<124x48xbf16>
    %c0_13 = arith.constant 0 : index
    %c0_14 = arith.constant 0 : index
    %c0_15 = arith.constant 0 : index
    %43 = vector.load %arg2[%c0_13, %c0_14, %c0_15] : memref<6x48x32xbf16, #tpu.memory_space<vmem>>, vector<1x48x32xbf16>
    %44 = vector.shape_cast %43 : vector<1x48x32xbf16> to vector<48x32xbf16>
    %cst_16 = arith.constant dense<0.000000e+00> : vector<124x32xf32>
    %45 = tpu.matmul %42, %44, %cst_16 {dimension_numbers = #tpu.dot_dimension_numbers<[1], [0], [0], [1], [0, 0, 1, 1], [], []>} : vector<124x48xbf16>, vector<48x32xbf16>, vector<124x32xf32> -> vector<124x32xf32>
    %46 = vector.broadcast %15 : vector<1x32xf32> to vector<124x32xf32>
    %47 = arith.addf %45, %46 : vector<124x32xf32>
    %48 = math.tanh %47 : vector<124x32xf32>
    %49 = vector.extract_strided_slice %48 {offsets = [0, 0], sizes = [124, 16], strides = [1, 1]} : vector<124x32xf32> to vector<124x16xf32>
    %50 = vector.extract_strided_slice %48 {offsets = [0, 16], sizes = [124, 16], strides = [1, 1]} : vector<124x32xf32> to vector<124x16xf32>
    %cst_17 = arith.constant 5.000000e-01 : f32
    %51 = vector.broadcast %cst_17 : f32 to vector<124x16xf32>
    %52 = arith.mulf %50, %51 : vector<124x16xf32>
    %cst_18 = arith.constant 5.000000e-01 : f32
    %53 = vector.broadcast %cst_18 : f32 to vector<124x16xf32>
    %54 = arith.addf %52, %53 : vector<124x16xf32>
    %55 = arith.mulf %49, %54 : vector<124x16xf32>
    %56 = arith.truncf %55 : vector<124x16xf32> to vector<124x16xbf16>
    %c0_19 = arith.constant 0 : index
    %c0_20 = arith.constant 0 : index
    %c0_21 = arith.constant 0 : index
    %57 = vector.load %arg3[%c0_19, %c0_20, %c0_21] : memref<6x16x48xbf16, #tpu.memory_space<vmem>>, vector<1x16x48xbf16>
    %58 = vector.shape_cast %57 : vector<1x16x48xbf16> to vector<16x48xbf16>
    %cst_22 = arith.constant dense<0.000000e+00> : vector<124x48xf32>
    %59 = tpu.matmul %56, %58, %cst_22 {dimension_numbers = #tpu.dot_dimension_numbers<[1], [0], [0], [1], [0, 0, 1, 1], [], []>} : vector<124x16xbf16>, vector<16x48xbf16>, vector<124x48xf32> -> vector<124x48xf32>
    %60 = vector.broadcast %16 : vector<1x48xf32> to vector<124x48xf32>
    %61 = arith.addf %59, %60 : vector<124x48xf32>
    %62 = vector.extract_strided_slice %41 {offsets = [0, 16], sizes = [124, 16], strides = [1, 1]} : vector<124x48xf32> to vector<124x16xf32>
    %63 = vector.extract_strided_slice %61 {offsets = [0, 0], sizes = [124, 16], strides = [1, 1]} : vector<124x48xf32> to vector<124x16xf32>
    %64 = arith.addf %62, %63 : vector<124x16xf32>
    %65 = vector.extract_strided_slice %61 {offsets = [0, 16], sizes = [124, 32], strides = [1, 1]} : vector<124x48xf32> to vector<124x32xf32>
    %c1 = arith.constant 1 : index
    %c0_23 = arith.constant 0 : index
    %c0_24 = arith.constant 0 : index
    %66 = vector.load %arg5[%c1, %c0_23, %c0_24] : memref<6x8x128xf32, #tpu.memory_space<vmem>>, vector<1x8x128xf32>
    %67 = vector.shape_cast %66 : vector<1x8x128xf32> to vector<8x128xf32>
    %68 = vector.extract_strided_slice %67 {offsets = [0, 0], sizes = [1, 16], strides = [1, 1]} : vector<8x128xf32> to vector<1x16xf32>
    %69 = vector.extract_strided_slice %67 {offsets = [1, 0], sizes = [1, 16], strides = [1, 1]} : vector<8x128xf32> to vector<1x16xf32>
    %70 = vector.extract_strided_slice %67 {offsets = [2, 0], sizes = [1, 32], strides = [1, 1]} : vector<8x128xf32> to vector<1x32xf32>
    %71 = vector.extract_strided_slice %67 {offsets = [3, 0], sizes = [1, 48], strides = [1, 1]} : vector<8x128xf32> to vector<1x48xf32>
    %cst_25 = arith.constant dense<0.000000e+00> : vector<16xf32>
    %72 = vector.multi_reduction <add>, %64, %cst_25 [0] : vector<124x16xf32> to vector<16xf32>
    %73 = vector.shape_cast %72 : vector<16xf32> to vector<1x16xf32>
    %cst_26 = arith.constant 1.240000e+02 : f32
    %74 = vector.broadcast %cst_26 : f32 to vector<1x16xf32>
    %75 = arith.divf %73, %74 : vector<1x16xf32>
    %76 = arith.mulf %64, %64 : vector<124x16xf32>
    %cst_27 = arith.constant dense<0.000000e+00> : vector<16xf32>
    %77 = vector.multi_reduction <add>, %76, %cst_27 [0] : vector<124x16xf32> to vector<16xf32>
    %78 = vector.shape_cast %77 : vector<16xf32> to vector<1x16xf32>
    %cst_28 = arith.constant 1.240000e+02 : f32
    %79 = vector.broadcast %cst_28 : f32 to vector<1x16xf32>
    %80 = arith.divf %78, %79 : vector<1x16xf32>
    %81 = arith.mulf %75, %75 : vector<1x16xf32>
    %82 = arith.subf %80, %81 : vector<1x16xf32>
    %cst_29 = arith.constant 9.99999974E-6 : f32
    %83 = vector.broadcast %cst_29 : f32 to vector<1x16xf32>
    %84 = arith.addf %82, %83 : vector<1x16xf32>
    %85 = math.rsqrt %84 : vector<1x16xf32>
    %86 = arith.mulf %85, %68 : vector<1x16xf32>
    %87 = vector.broadcast %86 : vector<1x16xf32> to vector<124x16xf32>
    %88 = arith.mulf %64, %87 : vector<124x16xf32>
    %89 = arith.mulf %75, %86 : vector<1x16xf32>
    %90 = arith.subf %69, %89 : vector<1x16xf32>
    %91 = vector.broadcast %90 : vector<1x16xf32> to vector<124x16xf32>
    %92 = arith.addf %88, %91 : vector<124x16xf32>
    %93 = vector.extract_strided_slice %92 {offsets = [0, 0], sizes = [116, 16], strides = [1, 1]} : vector<124x16xf32> to vector<116x16xf32>
    %94 = vector.extract_strided_slice %92 {offsets = [4, 0], sizes = [116, 16], strides = [1, 1]} : vector<124x16xf32> to vector<116x16xf32>
    %95 = vector.extract_strided_slice %92 {offsets = [8, 0], sizes = [116, 16], strides = [1, 1]} : vector<124x16xf32> to vector<116x16xf32>
    %96 = tpu.concatenate %93, %94, %95 in 1 : vector<116x16xf32>, vector<116x16xf32>, vector<116x16xf32> -> vector<116x48xf32>
    %97 = arith.truncf %96 : vector<116x48xf32> to vector<116x48xbf16>
    %c1_30 = arith.constant 1 : index
    %c0_31 = arith.constant 0 : index
    %c0_32 = arith.constant 0 : index
    %98 = vector.load %arg2[%c1_30, %c0_31, %c0_32] : memref<6x48x32xbf16, #tpu.memory_space<vmem>>, vector<1x48x32xbf16>
    %99 = vector.shape_cast %98 : vector<1x48x32xbf16> to vector<48x32xbf16>
    %cst_33 = arith.constant dense<0.000000e+00> : vector<116x32xf32>
    %100 = tpu.matmul %97, %99, %cst_33 {dimension_numbers = #tpu.dot_dimension_numbers<[1], [0], [0], [1], [0, 0, 1, 1], [], []>} : vector<116x48xbf16>, vector<48x32xbf16>, vector<116x32xf32> -> vector<116x32xf32>
    %101 = vector.broadcast %70 : vector<1x32xf32> to vector<116x32xf32>
    %102 = arith.addf %100, %101 : vector<116x32xf32>
    %103 = math.tanh %102 : vector<116x32xf32>
    %104 = vector.extract_strided_slice %103 {offsets = [0, 0], sizes = [116, 16], strides = [1, 1]} : vector<116x32xf32> to vector<116x16xf32>
    %105 = vector.extract_strided_slice %103 {offsets = [0, 16], sizes = [116, 16], strides = [1, 1]} : vector<116x32xf32> to vector<116x16xf32>
    %cst_34 = arith.constant 5.000000e-01 : f32
    %106 = vector.broadcast %cst_34 : f32 to vector<116x16xf32>
    %107 = arith.mulf %105, %106 : vector<116x16xf32>
    %cst_35 = arith.constant 5.000000e-01 : f32
    %108 = vector.broadcast %cst_35 : f32 to vector<116x16xf32>
    %109 = arith.addf %107, %108 : vector<116x16xf32>
    %110 = arith.mulf %104, %109 : vector<116x16xf32>
    %111 = arith.truncf %110 : vector<116x16xf32> to vector<116x16xbf16>
    %c1_36 = arith.constant 1 : index
    %c0_37 = arith.constant 0 : index
    %c0_38 = arith.constant 0 : index
    %112 = vector.load %arg3[%c1_36, %c0_37, %c0_38] : memref<6x16x48xbf16, #tpu.memory_space<vmem>>, vector<1x16x48xbf16>
    %113 = vector.shape_cast %112 : vector<1x16x48xbf16> to vector<16x48xbf16>
    %cst_39 = arith.constant dense<0.000000e+00> : vector<116x48xf32>
    %114 = tpu.matmul %111, %113, %cst_39 {dimension_numbers = #tpu.dot_dimension_numbers<[1], [0], [0], [1], [0, 0, 1, 1], [], []>} : vector<116x16xbf16>, vector<16x48xbf16>, vector<116x48xf32> -> vector<116x48xf32>
    %115 = vector.broadcast %71 : vector<1x48xf32> to vector<116x48xf32>
    %116 = arith.addf %114, %115 : vector<116x48xf32>
    %117 = vector.extract_strided_slice %96 {offsets = [0, 16], sizes = [116, 16], strides = [1, 1]} : vector<116x48xf32> to vector<116x16xf32>
    %118 = vector.extract_strided_slice %116 {offsets = [0, 0], sizes = [116, 16], strides = [1, 1]} : vector<116x48xf32> to vector<116x16xf32>
    %119 = arith.addf %117, %118 : vector<116x16xf32>
    %120 = vector.extract_strided_slice %116 {offsets = [0, 16], sizes = [116, 32], strides = [1, 1]} : vector<116x48xf32> to vector<116x32xf32>
    %121 = vector.extract_strided_slice %65 {offsets = [4, 0], sizes = [116, 32], strides = [1, 1]} : vector<124x32xf32> to vector<116x32xf32>
    %122 = arith.addf %121, %120 : vector<116x32xf32>
    %c2 = arith.constant 2 : index
    %c0_40 = arith.constant 0 : index
    %c0_41 = arith.constant 0 : index
    %123 = vector.load %arg5[%c2, %c0_40, %c0_41] : memref<6x8x128xf32, #tpu.memory_space<vmem>>, vector<1x8x128xf32>
    %124 = vector.shape_cast %123 : vector<1x8x128xf32> to vector<8x128xf32>
    %125 = vector.extract_strided_slice %124 {offsets = [0, 0], sizes = [1, 16], strides = [1, 1]} : vector<8x128xf32> to vector<1x16xf32>
    %126 = vector.extract_strided_slice %124 {offsets = [1, 0], sizes = [1, 16], strides = [1, 1]} : vector<8x128xf32> to vector<1x16xf32>
    %127 = vector.extract_strided_slice %124 {offsets = [2, 0], sizes = [1, 32], strides = [1, 1]} : vector<8x128xf32> to vector<1x32xf32>
    %128 = vector.extract_strided_slice %124 {offsets = [3, 0], sizes = [1, 48], strides = [1, 1]} : vector<8x128xf32> to vector<1x48xf32>
    %cst_42 = arith.constant dense<0.000000e+00> : vector<16xf32>
    %129 = vector.multi_reduction <add>, %119, %cst_42 [0] : vector<116x16xf32> to vector<16xf32>
    %130 = vector.shape_cast %129 : vector<16xf32> to vector<1x16xf32>
    %cst_43 = arith.constant 1.160000e+02 : f32
    %131 = vector.broadcast %cst_43 : f32 to vector<1x16xf32>
    %132 = arith.divf %130, %131 : vector<1x16xf32>
    %133 = arith.mulf %119, %119 : vector<116x16xf32>
    %cst_44 = arith.constant dense<0.000000e+00> : vector<16xf32>
    %134 = vector.multi_reduction <add>, %133, %cst_44 [0] : vector<116x16xf32> to vector<16xf32>
    %135 = vector.shape_cast %134 : vector<16xf32> to vector<1x16xf32>
    %cst_45 = arith.constant 1.160000e+02 : f32
    %136 = vector.broadcast %cst_45 : f32 to vector<1x16xf32>
    %137 = arith.divf %135, %136 : vector<1x16xf32>
    %138 = arith.mulf %132, %132 : vector<1x16xf32>
    %139 = arith.subf %137, %138 : vector<1x16xf32>
    %cst_46 = arith.constant 9.99999974E-6 : f32
    %140 = vector.broadcast %cst_46 : f32 to vector<1x16xf32>
    %141 = arith.addf %139, %140 : vector<1x16xf32>
    %142 = math.rsqrt %141 : vector<1x16xf32>
    %143 = arith.mulf %142, %125 : vector<1x16xf32>
    %144 = vector.broadcast %143 : vector<1x16xf32> to vector<116x16xf32>
    %145 = arith.mulf %119, %144 : vector<116x16xf32>
    %146 = arith.mulf %132, %143 : vector<1x16xf32>
    %147 = arith.subf %126, %146 : vector<1x16xf32>
    %148 = vector.broadcast %147 : vector<1x16xf32> to vector<116x16xf32>
    %149 = arith.addf %145, %148 : vector<116x16xf32>
    %150 = vector.extract_strided_slice %149 {offsets = [0, 0], sizes = [100, 16], strides = [1, 1]} : vector<116x16xf32> to vector<100x16xf32>
    %151 = vector.extract_strided_slice %149 {offsets = [8, 0], sizes = [100, 16], strides = [1, 1]} : vector<116x16xf32> to vector<100x16xf32>
    %152 = vector.extract_strided_slice %149 {offsets = [16, 0], sizes = [100, 16], strides = [1, 1]} : vector<116x16xf32> to vector<100x16xf32>
    %153 = tpu.concatenate %150, %151, %152 in 1 : vector<100x16xf32>, vector<100x16xf32>, vector<100x16xf32> -> vector<100x48xf32>
    %154 = arith.truncf %153 : vector<100x48xf32> to vector<100x48xbf16>
    %c2_47 = arith.constant 2 : index
    %c0_48 = arith.constant 0 : index
    %c0_49 = arith.constant 0 : index
    %155 = vector.load %arg2[%c2_47, %c0_48, %c0_49] : memref<6x48x32xbf16, #tpu.memory_space<vmem>>, vector<1x48x32xbf16>
    %156 = vector.shape_cast %155 : vector<1x48x32xbf16> to vector<48x32xbf16>
    %cst_50 = arith.constant dense<0.000000e+00> : vector<100x32xf32>
    %157 = tpu.matmul %154, %156, %cst_50 {dimension_numbers = #tpu.dot_dimension_numbers<[1], [0], [0], [1], [0, 0, 1, 1], [], []>} : vector<100x48xbf16>, vector<48x32xbf16>, vector<100x32xf32> -> vector<100x32xf32>
    %158 = vector.broadcast %127 : vector<1x32xf32> to vector<100x32xf32>
    %159 = arith.addf %157, %158 : vector<100x32xf32>
    %160 = math.tanh %159 : vector<100x32xf32>
    %161 = vector.extract_strided_slice %160 {offsets = [0, 0], sizes = [100, 16], strides = [1, 1]} : vector<100x32xf32> to vector<100x16xf32>
    %162 = vector.extract_strided_slice %160 {offsets = [0, 16], sizes = [100, 16], strides = [1, 1]} : vector<100x32xf32> to vector<100x16xf32>
    %cst_51 = arith.constant 5.000000e-01 : f32
    %163 = vector.broadcast %cst_51 : f32 to vector<100x16xf32>
    %164 = arith.mulf %162, %163 : vector<100x16xf32>
    %cst_52 = arith.constant 5.000000e-01 : f32
    %165 = vector.broadcast %cst_52 : f32 to vector<100x16xf32>
    %166 = arith.addf %164, %165 : vector<100x16xf32>
    %167 = arith.mulf %161, %166 : vector<100x16xf32>
    %168 = arith.truncf %167 : vector<100x16xf32> to vector<100x16xbf16>
    %c2_53 = arith.constant 2 : index
    %c0_54 = arith.constant 0 : index
    %c0_55 = arith.constant 0 : index
    %169 = vector.load %arg3[%c2_53, %c0_54, %c0_55] : memref<6x16x48xbf16, #tpu.memory_space<vmem>>, vector<1x16x48xbf16>
    %170 = vector.shape_cast %169 : vector<1x16x48xbf16> to vector<16x48xbf16>
    %cst_56 = arith.constant dense<0.000000e+00> : vector<100x48xf32>
    %171 = tpu.matmul %168, %170, %cst_56 {dimension_numbers = #tpu.dot_dimension_numbers<[1], [0], [0], [1], [0, 0, 1, 1], [], []>} : vector<100x16xbf16>, vector<16x48xbf16>, vector<100x48xf32> -> vector<100x48xf32>
    %172 = vector.broadcast %128 : vector<1x48xf32> to vector<100x48xf32>
    %173 = arith.addf %171, %172 : vector<100x48xf32>
    %174 = vector.extract_strided_slice %153 {offsets = [0, 16], sizes = [100, 16], strides = [1, 1]} : vector<100x48xf32> to vector<100x16xf32>
    %175 = vector.extract_strided_slice %173 {offsets = [0, 0], sizes = [100, 16], strides = [1, 1]} : vector<100x48xf32> to vector<100x16xf32>
    %176 = arith.addf %174, %175 : vector<100x16xf32>
    %177 = vector.extract_strided_slice %173 {offsets = [0, 16], sizes = [100, 32], strides = [1, 1]} : vector<100x48xf32> to vector<100x32xf32>
    %178 = vector.extract_strided_slice %122 {offsets = [8, 0], sizes = [100, 32], strides = [1, 1]} : vector<116x32xf32> to vector<100x32xf32>
    %179 = arith.addf %178, %177 : vector<100x32xf32>
    %c3 = arith.constant 3 : index
    %c0_57 = arith.constant 0 : index
    %c0_58 = arith.constant 0 : index
    %180 = vector.load %arg5[%c3, %c0_57, %c0_58] : memref<6x8x128xf32, #tpu.memory_space<vmem>>, vector<1x8x128xf32>
    %181 = vector.shape_cast %180 : vector<1x8x128xf32> to vector<8x128xf32>
    %182 = vector.extract_strided_slice %181 {offsets = [0, 0], sizes = [1, 16], strides = [1, 1]} : vector<8x128xf32> to vector<1x16xf32>
    %183 = vector.extract_strided_slice %181 {offsets = [1, 0], sizes = [1, 16], strides = [1, 1]} : vector<8x128xf32> to vector<1x16xf32>
    %184 = vector.extract_strided_slice %181 {offsets = [2, 0], sizes = [1, 32], strides = [1, 1]} : vector<8x128xf32> to vector<1x32xf32>
    %185 = vector.extract_strided_slice %181 {offsets = [3, 0], sizes = [1, 48], strides = [1, 1]} : vector<8x128xf32> to vector<1x48xf32>
    %cst_59 = arith.constant dense<0.000000e+00> : vector<16xf32>
    %186 = vector.multi_reduction <add>, %176, %cst_59 [0] : vector<100x16xf32> to vector<16xf32>
    %187 = vector.shape_cast %186 : vector<16xf32> to vector<1x16xf32>
    %cst_60 = arith.constant 1.000000e+02 : f32
    %188 = vector.broadcast %cst_60 : f32 to vector<1x16xf32>
    %189 = arith.divf %187, %188 : vector<1x16xf32>
    %190 = arith.mulf %176, %176 : vector<100x16xf32>
    %cst_61 = arith.constant dense<0.000000e+00> : vector<16xf32>
    %191 = vector.multi_reduction <add>, %190, %cst_61 [0] : vector<100x16xf32> to vector<16xf32>
    %192 = vector.shape_cast %191 : vector<16xf32> to vector<1x16xf32>
    %cst_62 = arith.constant 1.000000e+02 : f32
    %193 = vector.broadcast %cst_62 : f32 to vector<1x16xf32>
    %194 = arith.divf %192, %193 : vector<1x16xf32>
    %195 = arith.mulf %189, %189 : vector<1x16xf32>
    %196 = arith.subf %194, %195 : vector<1x16xf32>
    %cst_63 = arith.constant 9.99999974E-6 : f32
    %197 = vector.broadcast %cst_63 : f32 to vector<1x16xf32>
    %198 = arith.addf %196, %197 : vector<1x16xf32>
    %199 = math.rsqrt %198 : vector<1x16xf32>
    %200 = arith.mulf %199, %182 : vector<1x16xf32>
    %201 = vector.broadcast %200 : vector<1x16xf32> to vector<100x16xf32>
    %202 = arith.mulf %176, %201 : vector<100x16xf32>
    %203 = arith.mulf %189, %200 : vector<1x16xf32>
    %204 = arith.subf %183, %203 : vector<1x16xf32>
    %205 = vector.broadcast %204 : vector<1x16xf32> to vector<100x16xf32>
    %206 = arith.addf %202, %205 : vector<100x16xf32>
    %207 = vector.extract_strided_slice %206 {offsets = [0, 0], sizes = [96, 16], strides = [1, 1]} : vector<100x16xf32> to vector<96x16xf32>
    %208 = vector.extract_strided_slice %206 {offsets = [2, 0], sizes = [96, 16], strides = [1, 1]} : vector<100x16xf32> to vector<96x16xf32>
    %209 = vector.extract_strided_slice %206 {offsets = [4, 0], sizes = [96, 16], strides = [1, 1]} : vector<100x16xf32> to vector<96x16xf32>
    %210 = tpu.concatenate %207, %208, %209 in 1 : vector<96x16xf32>, vector<96x16xf32>, vector<96x16xf32> -> vector<96x48xf32>
    %211 = arith.truncf %210 : vector<96x48xf32> to vector<96x48xbf16>
    %c3_64 = arith.constant 3 : index
    %c0_65 = arith.constant 0 : index
    %c0_66 = arith.constant 0 : index
    %212 = vector.load %arg2[%c3_64, %c0_65, %c0_66] : memref<6x48x32xbf16, #tpu.memory_space<vmem>>, vector<1x48x32xbf16>
    %213 = vector.shape_cast %212 : vector<1x48x32xbf16> to vector<48x32xbf16>
    %cst_67 = arith.constant dense<0.000000e+00> : vector<96x32xf32>
    %214 = tpu.matmul %211, %213, %cst_67 {dimension_numbers = #tpu.dot_dimension_numbers<[1], [0], [0], [1], [0, 0, 1, 1], [], []>} : vector<96x48xbf16>, vector<48x32xbf16>, vector<96x32xf32> -> vector<96x32xf32>
    %215 = vector.broadcast %184 : vector<1x32xf32> to vector<96x32xf32>
    %216 = arith.addf %214, %215 : vector<96x32xf32>
    %217 = math.tanh %216 : vector<96x32xf32>
    %218 = vector.extract_strided_slice %217 {offsets = [0, 0], sizes = [96, 16], strides = [1, 1]} : vector<96x32xf32> to vector<96x16xf32>
    %219 = vector.extract_strided_slice %217 {offsets = [0, 16], sizes = [96, 16], strides = [1, 1]} : vector<96x32xf32> to vector<96x16xf32>
    %cst_68 = arith.constant 5.000000e-01 : f32
    %220 = vector.broadcast %cst_68 : f32 to vector<96x16xf32>
    %221 = arith.mulf %219, %220 : vector<96x16xf32>
    %cst_69 = arith.constant 5.000000e-01 : f32
    %222 = vector.broadcast %cst_69 : f32 to vector<96x16xf32>
    %223 = arith.addf %221, %222 : vector<96x16xf32>
    %224 = arith.mulf %218, %223 : vector<96x16xf32>
    %225 = arith.truncf %224 : vector<96x16xf32> to vector<96x16xbf16>
    %c3_70 = arith.constant 3 : index
    %c0_71 = arith.constant 0 : index
    %c0_72 = arith.constant 0 : index
    %226 = vector.load %arg3[%c3_70, %c0_71, %c0_72] : memref<6x16x48xbf16, #tpu.memory_space<vmem>>, vector<1x16x48xbf16>
    %227 = vector.shape_cast %226 : vector<1x16x48xbf16> to vector<16x48xbf16>
    %cst_73 = arith.constant dense<0.000000e+00> : vector<96x48xf32>
    %228 = tpu.matmul %225, %227, %cst_73 {dimension_numbers = #tpu.dot_dimension_numbers<[1], [0], [0], [1], [0, 0, 1, 1], [], []>} : vector<96x16xbf16>, vector<16x48xbf16>, vector<96x48xf32> -> vector<96x48xf32>
    %229 = vector.broadcast %185 : vector<1x48xf32> to vector<96x48xf32>
    %230 = arith.addf %228, %229 : vector<96x48xf32>
    %231 = vector.extract_strided_slice %210 {offsets = [0, 16], sizes = [96, 16], strides = [1, 1]} : vector<96x48xf32> to vector<96x16xf32>
    %232 = vector.extract_strided_slice %230 {offsets = [0, 0], sizes = [96, 16], strides = [1, 1]} : vector<96x48xf32> to vector<96x16xf32>
    %233 = arith.addf %231, %232 : vector<96x16xf32>
    %234 = vector.extract_strided_slice %230 {offsets = [0, 16], sizes = [96, 32], strides = [1, 1]} : vector<96x48xf32> to vector<96x32xf32>
    %235 = vector.extract_strided_slice %179 {offsets = [2, 0], sizes = [96, 32], strides = [1, 1]} : vector<100x32xf32> to vector<96x32xf32>
    %236 = arith.addf %235, %234 : vector<96x32xf32>
    %c4 = arith.constant 4 : index
    %c0_74 = arith.constant 0 : index
    %c0_75 = arith.constant 0 : index
    %237 = vector.load %arg5[%c4, %c0_74, %c0_75] : memref<6x8x128xf32, #tpu.memory_space<vmem>>, vector<1x8x128xf32>
    %238 = vector.shape_cast %237 : vector<1x8x128xf32> to vector<8x128xf32>
    %239 = vector.extract_strided_slice %238 {offsets = [0, 0], sizes = [1, 16], strides = [1, 1]} : vector<8x128xf32> to vector<1x16xf32>
    %240 = vector.extract_strided_slice %238 {offsets = [1, 0], sizes = [1, 16], strides = [1, 1]} : vector<8x128xf32> to vector<1x16xf32>
    %241 = vector.extract_strided_slice %238 {offsets = [2, 0], sizes = [1, 32], strides = [1, 1]} : vector<8x128xf32> to vector<1x32xf32>
    %242 = vector.extract_strided_slice %238 {offsets = [3, 0], sizes = [1, 48], strides = [1, 1]} : vector<8x128xf32> to vector<1x48xf32>
    %cst_76 = arith.constant dense<0.000000e+00> : vector<16xf32>
    %243 = vector.multi_reduction <add>, %233, %cst_76 [0] : vector<96x16xf32> to vector<16xf32>
    %244 = vector.shape_cast %243 : vector<16xf32> to vector<1x16xf32>
    %cst_77 = arith.constant 9.600000e+01 : f32
    %245 = vector.broadcast %cst_77 : f32 to vector<1x16xf32>
    %246 = arith.divf %244, %245 : vector<1x16xf32>
    %247 = arith.mulf %233, %233 : vector<96x16xf32>
    %cst_78 = arith.constant dense<0.000000e+00> : vector<16xf32>
    %248 = vector.multi_reduction <add>, %247, %cst_78 [0] : vector<96x16xf32> to vector<16xf32>
    %249 = vector.shape_cast %248 : vector<16xf32> to vector<1x16xf32>
    %cst_79 = arith.constant 9.600000e+01 : f32
    %250 = vector.broadcast %cst_79 : f32 to vector<1x16xf32>
    %251 = arith.divf %249, %250 : vector<1x16xf32>
    %252 = arith.mulf %246, %246 : vector<1x16xf32>
    %253 = arith.subf %251, %252 : vector<1x16xf32>
    %cst_80 = arith.constant 9.99999974E-6 : f32
    %254 = vector.broadcast %cst_80 : f32 to vector<1x16xf32>
    %255 = arith.addf %253, %254 : vector<1x16xf32>
    %256 = math.rsqrt %255 : vector<1x16xf32>
    %257 = arith.mulf %256, %239 : vector<1x16xf32>
    %258 = vector.broadcast %257 : vector<1x16xf32> to vector<96x16xf32>
    %259 = arith.mulf %233, %258 : vector<96x16xf32>
    %260 = arith.mulf %246, %257 : vector<1x16xf32>
    %261 = arith.subf %240, %260 : vector<1x16xf32>
    %262 = vector.broadcast %261 : vector<1x16xf32> to vector<96x16xf32>
    %263 = arith.addf %259, %262 : vector<96x16xf32>
    %264 = vector.extract_strided_slice %263 {offsets = [0, 0], sizes = [88, 16], strides = [1, 1]} : vector<96x16xf32> to vector<88x16xf32>
    %265 = vector.extract_strided_slice %263 {offsets = [4, 0], sizes = [88, 16], strides = [1, 1]} : vector<96x16xf32> to vector<88x16xf32>
    %266 = vector.extract_strided_slice %263 {offsets = [8, 0], sizes = [88, 16], strides = [1, 1]} : vector<96x16xf32> to vector<88x16xf32>
    %267 = tpu.concatenate %264, %265, %266 in 1 : vector<88x16xf32>, vector<88x16xf32>, vector<88x16xf32> -> vector<88x48xf32>
    %268 = arith.truncf %267 : vector<88x48xf32> to vector<88x48xbf16>
    %c4_81 = arith.constant 4 : index
    %c0_82 = arith.constant 0 : index
    %c0_83 = arith.constant 0 : index
    %269 = vector.load %arg2[%c4_81, %c0_82, %c0_83] : memref<6x48x32xbf16, #tpu.memory_space<vmem>>, vector<1x48x32xbf16>
    %270 = vector.shape_cast %269 : vector<1x48x32xbf16> to vector<48x32xbf16>
    %cst_84 = arith.constant dense<0.000000e+00> : vector<88x32xf32>
    %271 = tpu.matmul %268, %270, %cst_84 {dimension_numbers = #tpu.dot_dimension_numbers<[1], [0], [0], [1], [0, 0, 1, 1], [], []>} : vector<88x48xbf16>, vector<48x32xbf16>, vector<88x32xf32> -> vector<88x32xf32>
    %272 = vector.broadcast %241 : vector<1x32xf32> to vector<88x32xf32>
    %273 = arith.addf %271, %272 : vector<88x32xf32>
    %274 = math.tanh %273 : vector<88x32xf32>
    %275 = vector.extract_strided_slice %274 {offsets = [0, 0], sizes = [88, 16], strides = [1, 1]} : vector<88x32xf32> to vector<88x16xf32>
    %276 = vector.extract_strided_slice %274 {offsets = [0, 16], sizes = [88, 16], strides = [1, 1]} : vector<88x32xf32> to vector<88x16xf32>
    %cst_85 = arith.constant 5.000000e-01 : f32
    %277 = vector.broadcast %cst_85 : f32 to vector<88x16xf32>
    %278 = arith.mulf %276, %277 : vector<88x16xf32>
    %cst_86 = arith.constant 5.000000e-01 : f32
    %279 = vector.broadcast %cst_86 : f32 to vector<88x16xf32>
    %280 = arith.addf %278, %279 : vector<88x16xf32>
    %281 = arith.mulf %275, %280 : vector<88x16xf32>
    %282 = arith.truncf %281 : vector<88x16xf32> to vector<88x16xbf16>
    %c4_87 = arith.constant 4 : index
    %c0_88 = arith.constant 0 : index
    %c0_89 = arith.constant 0 : index
    %283 = vector.load %arg3[%c4_87, %c0_88, %c0_89] : memref<6x16x48xbf16, #tpu.memory_space<vmem>>, vector<1x16x48xbf16>
    %284 = vector.shape_cast %283 : vector<1x16x48xbf16> to vector<16x48xbf16>
    %cst_90 = arith.constant dense<0.000000e+00> : vector<88x48xf32>
    %285 = tpu.matmul %282, %284, %cst_90 {dimension_numbers = #tpu.dot_dimension_numbers<[1], [0], [0], [1], [0, 0, 1, 1], [], []>} : vector<88x16xbf16>, vector<16x48xbf16>, vector<88x48xf32> -> vector<88x48xf32>
    %286 = vector.broadcast %242 : vector<1x48xf32> to vector<88x48xf32>
    %287 = arith.addf %285, %286 : vector<88x48xf32>
    %288 = vector.extract_strided_slice %267 {offsets = [0, 16], sizes = [88, 16], strides = [1, 1]} : vector<88x48xf32> to vector<88x16xf32>
    %289 = vector.extract_strided_slice %287 {offsets = [0, 0], sizes = [88, 16], strides = [1, 1]} : vector<88x48xf32> to vector<88x16xf32>
    %290 = arith.addf %288, %289 : vector<88x16xf32>
    %291 = vector.extract_strided_slice %287 {offsets = [0, 16], sizes = [88, 32], strides = [1, 1]} : vector<88x48xf32> to vector<88x32xf32>
    %292 = vector.extract_strided_slice %236 {offsets = [4, 0], sizes = [88, 32], strides = [1, 1]} : vector<96x32xf32> to vector<88x32xf32>
    %293 = arith.addf %292, %291 : vector<88x32xf32>
    %c5 = arith.constant 5 : index
    %c0_91 = arith.constant 0 : index
    %c0_92 = arith.constant 0 : index
    %294 = vector.load %arg5[%c5, %c0_91, %c0_92] : memref<6x8x128xf32, #tpu.memory_space<vmem>>, vector<1x8x128xf32>
    %295 = vector.shape_cast %294 : vector<1x8x128xf32> to vector<8x128xf32>
    %296 = vector.extract_strided_slice %295 {offsets = [0, 0], sizes = [1, 16], strides = [1, 1]} : vector<8x128xf32> to vector<1x16xf32>
    %297 = vector.extract_strided_slice %295 {offsets = [1, 0], sizes = [1, 16], strides = [1, 1]} : vector<8x128xf32> to vector<1x16xf32>
    %298 = vector.extract_strided_slice %295 {offsets = [2, 0], sizes = [1, 32], strides = [1, 1]} : vector<8x128xf32> to vector<1x32xf32>
    %299 = vector.extract_strided_slice %295 {offsets = [3, 0], sizes = [1, 48], strides = [1, 1]} : vector<8x128xf32> to vector<1x48xf32>
    %cst_93 = arith.constant dense<0.000000e+00> : vector<16xf32>
    %300 = vector.multi_reduction <add>, %290, %cst_93 [0] : vector<88x16xf32> to vector<16xf32>
    %301 = vector.shape_cast %300 : vector<16xf32> to vector<1x16xf32>
    %cst_94 = arith.constant 8.800000e+01 : f32
    %302 = vector.broadcast %cst_94 : f32 to vector<1x16xf32>
    %303 = arith.divf %301, %302 : vector<1x16xf32>
    %304 = arith.mulf %290, %290 : vector<88x16xf32>
    %cst_95 = arith.constant dense<0.000000e+00> : vector<16xf32>
    %305 = vector.multi_reduction <add>, %304, %cst_95 [0] : vector<88x16xf32> to vector<16xf32>
    %306 = vector.shape_cast %305 : vector<16xf32> to vector<1x16xf32>
    %cst_96 = arith.constant 8.800000e+01 : f32
    %307 = vector.broadcast %cst_96 : f32 to vector<1x16xf32>
    %308 = arith.divf %306, %307 : vector<1x16xf32>
    %309 = arith.mulf %303, %303 : vector<1x16xf32>
    %310 = arith.subf %308, %309 : vector<1x16xf32>
    %cst_97 = arith.constant 9.99999974E-6 : f32
    %311 = vector.broadcast %cst_97 : f32 to vector<1x16xf32>
    %312 = arith.addf %310, %311 : vector<1x16xf32>
    %313 = math.rsqrt %312 : vector<1x16xf32>
    %314 = arith.mulf %313, %296 : vector<1x16xf32>
    %315 = vector.broadcast %314 : vector<1x16xf32> to vector<88x16xf32>
    %316 = arith.mulf %290, %315 : vector<88x16xf32>
    %317 = arith.mulf %303, %314 : vector<1x16xf32>
    %318 = arith.subf %297, %317 : vector<1x16xf32>
    %319 = vector.broadcast %318 : vector<1x16xf32> to vector<88x16xf32>
    %320 = arith.addf %316, %319 : vector<88x16xf32>
    %321 = vector.extract_strided_slice %320 {offsets = [0, 0], sizes = [72, 16], strides = [1, 1]} : vector<88x16xf32> to vector<72x16xf32>
    %322 = vector.extract_strided_slice %320 {offsets = [8, 0], sizes = [72, 16], strides = [1, 1]} : vector<88x16xf32> to vector<72x16xf32>
    %323 = vector.extract_strided_slice %320 {offsets = [16, 0], sizes = [72, 16], strides = [1, 1]} : vector<88x16xf32> to vector<72x16xf32>
    %324 = tpu.concatenate %321, %322, %323 in 1 : vector<72x16xf32>, vector<72x16xf32>, vector<72x16xf32> -> vector<72x48xf32>
    %325 = arith.truncf %324 : vector<72x48xf32> to vector<72x48xbf16>
    %c5_98 = arith.constant 5 : index
    %c0_99 = arith.constant 0 : index
    %c0_100 = arith.constant 0 : index
    %326 = vector.load %arg2[%c5_98, %c0_99, %c0_100] : memref<6x48x32xbf16, #tpu.memory_space<vmem>>, vector<1x48x32xbf16>
    %327 = vector.shape_cast %326 : vector<1x48x32xbf16> to vector<48x32xbf16>
    %cst_101 = arith.constant dense<0.000000e+00> : vector<72x32xf32>
    %328 = tpu.matmul %325, %327, %cst_101 {dimension_numbers = #tpu.dot_dimension_numbers<[1], [0], [0], [1], [0, 0, 1, 1], [], []>} : vector<72x48xbf16>, vector<48x32xbf16>, vector<72x32xf32> -> vector<72x32xf32>
    %329 = vector.broadcast %298 : vector<1x32xf32> to vector<72x32xf32>
    %330 = arith.addf %328, %329 : vector<72x32xf32>
    %331 = math.tanh %330 : vector<72x32xf32>
    %332 = vector.extract_strided_slice %331 {offsets = [0, 0], sizes = [72, 16], strides = [1, 1]} : vector<72x32xf32> to vector<72x16xf32>
    %333 = vector.extract_strided_slice %331 {offsets = [0, 16], sizes = [72, 16], strides = [1, 1]} : vector<72x32xf32> to vector<72x16xf32>
    %cst_102 = arith.constant 5.000000e-01 : f32
    %334 = vector.broadcast %cst_102 : f32 to vector<72x16xf32>
    %335 = arith.mulf %333, %334 : vector<72x16xf32>
    %cst_103 = arith.constant 5.000000e-01 : f32
    %336 = vector.broadcast %cst_103 : f32 to vector<72x16xf32>
    %337 = arith.addf %335, %336 : vector<72x16xf32>
    %338 = arith.mulf %332, %337 : vector<72x16xf32>
    %339 = arith.truncf %338 : vector<72x16xf32> to vector<72x16xbf16>
    %c5_104 = arith.constant 5 : index
    %c0_105 = arith.constant 0 : index
    %c0_106 = arith.constant 0 : index
    %340 = vector.load %arg3[%c5_104, %c0_105, %c0_106] : memref<6x16x48xbf16, #tpu.memory_space<vmem>>, vector<1x16x48xbf16>
    %341 = vector.shape_cast %340 : vector<1x16x48xbf16> to vector<16x48xbf16>
    %cst_107 = arith.constant dense<0.000000e+00> : vector<72x48xf32>
    %342 = tpu.matmul %339, %341, %cst_107 {dimension_numbers = #tpu.dot_dimension_numbers<[1], [0], [0], [1], [0, 0, 1, 1], [], []>} : vector<72x16xbf16>, vector<16x48xbf16>, vector<72x48xf32> -> vector<72x48xf32>
    %343 = vector.broadcast %299 : vector<1x48xf32> to vector<72x48xf32>
    %344 = arith.addf %342, %343 : vector<72x48xf32>
    %345 = vector.extract_strided_slice %344 {offsets = [0, 16], sizes = [72, 32], strides = [1, 1]} : vector<72x48xf32> to vector<72x32xf32>
    %346 = vector.extract_strided_slice %293 {offsets = [8, 0], sizes = [72, 32], strides = [1, 1]} : vector<88x32xf32> to vector<72x32xf32>
    %347 = arith.addf %346, %345 : vector<72x32xf32>
    %cst_108 = arith.constant 0.000000e+00 : f32
    %348 = vector.broadcast %cst_108 : f32 to vector<72x32xf32>
    %349 = arith.maximumf %347, %348 : vector<72x32xf32>
    %350 = arith.truncf %349 : vector<72x32xf32> to vector<72x32xbf16>
    %c0_109 = arith.constant 0 : index
    %c0_110 = arith.constant 0 : index
    %351 = vector.load %arg4[%c0_109, %c0_110] : memref<32x32xbf16, #tpu.memory_space<vmem>>, vector<32x32xbf16>
    %cst_111 = arith.constant dense<0.000000e+00> : vector<72x32xf32>
    %352 = tpu.matmul %350, %351, %cst_111 {dimension_numbers = #tpu.dot_dimension_numbers<[1], [0], [0], [1], [0, 0, 1, 1], [], []>} : vector<72x32xbf16>, vector<32x32xbf16>, vector<72x32xf32> -> vector<72x32xf32>
    %353 = vector.broadcast %2 : vector<1x32xf32> to vector<72x32xf32>
    %354 = arith.addf %352, %353 : vector<72x32xf32>
    %cst_112 = arith.constant 0.000000e+00 : f32
    %355 = vector.broadcast %cst_112 : f32 to vector<72x32xf32>
    %356 = arith.maximumf %354, %355 : vector<72x32xf32>
    %357 = vector.broadcast %3 : vector<1x32xf32> to vector<72x32xf32>
    %358 = arith.mulf %356, %357 : vector<72x32xf32>
    %cst_113 = arith.constant dense<0.000000e+00> : vector<72xf32>
    %359 = vector.multi_reduction <add>, %358, %cst_113 [1] : vector<72x32xf32> to vector<72xf32>
    %360 = vector.shape_cast %359 : vector<72xf32> to vector<72x1xf32>
    %361 = vector.broadcast %4 : vector<1x1xf32> to vector<72x1xf32>
    %362 = arith.addf %360, %361 : vector<72x1xf32>
    %363 = tpu.iota {dimensions = array<i32: 0>} : vector<72x2xi32>
    %364 = tpu.iota {dimensions = array<i32: 1>} : vector<72x2xi32>
    %c2_i32 = arith.constant 2 : i32
    %c0_i32 = arith.constant 0 : i32
    %365 = arith.cmpi eq, %c2_i32, %c0_i32 : i32
    %c1_i32 = arith.constant 1 : i32
    %366 = arith.select %365, %c1_i32, %c2_i32 : i32
    %367 = vector.broadcast %366 : i32 to vector<72x2xi32>
    %368 = arith.remsi %363, %367 : vector<72x2xi32>
    %c0_i32_114 = arith.constant 0 : i32
    %369 = vector.broadcast %c0_i32_114 : i32 to vector<72x2xi32>
    %370 = arith.cmpi ne, %368, %369 : vector<72x2xi32>
    %c0_i32_115 = arith.constant 0 : i32
    %371 = vector.broadcast %c0_i32_115 : i32 to vector<72x2xi32>
    %372 = arith.cmpi slt, %368, %371 : vector<72x2xi32>
    %c0_i32_116 = arith.constant 0 : i32
    %373 = arith.cmpi slt, %366, %c0_i32_116 : i32
    %374 = vector.broadcast %373 : i1 to vector<72x2xi1>
    %375 = vector.broadcast %374 : vector<72x2xi1> to vector<72x2xi1>
    %376 = arith.xori %372, %375 : vector<72x2xi1>
    %377 = arith.andi %376, %370 : vector<72x2xi1>
    %378 = vector.broadcast %366 : i32 to vector<72x2xi32>
    %379 = arith.addi %368, %378 : vector<72x2xi32>
    %380 = arith.select %377, %379, %368 : vector<72x2xi1>, vector<72x2xi32>
    %381 = arith.cmpi eq, %380, %364 : vector<72x2xi32>
    %cst_117 = arith.constant 0xFF800000 : f32
    %382 = vector.shape_cast %362 : vector<72x1xf32> to vector<72x1xf32>
    %383 = vector.broadcast %382 : vector<72x1xf32> to vector<72x2xf32>
    %384 = vector.broadcast %cst_117 : f32 to vector<72x2xf32>
    %385 = arith.select %381, %383, %384 : vector<72x2xi1>, vector<72x2xf32>
    %cst_118 = arith.constant dense<0xFF800000> : vector<2xf32>
    %386 = vector.multi_reduction <maximumf>, %385, %cst_118 [0] : vector<72x2xf32> to vector<2xf32>
    %387 = vector.shape_cast %386 : vector<2xf32> to vector<1x2xf32>
    %388 = arith.negf %387 : vector<1x2xf32>
    %389 = math.exp %388 : vector<1x2xf32>
    %cst_119 = arith.constant 1.000000e+00 : f32
    %390 = vector.broadcast %cst_119 : f32 to vector<1x2xf32>
    %391 = arith.addf %390, %389 : vector<1x2xf32>
    %392 = arith.divf %390, %391 : vector<1x2xf32>
    %c0_120 = arith.constant 0 : index
    %c0_121 = arith.constant 0 : index
    %393 = vector.load %arg7[%c0_120, %c0_121] : memref<1x2xf32, #tpu.memory_space<vmem>>, vector<1x2xf32>
    tpu.vector_store %arg7[%c0_120, %c0_121], %392 {strides = array<i32>} : memref<1x2xf32, #tpu.memory_space<vmem>>, vector<1x2xf32>,
    return
  }
}

</mosaic_0001>

<llo_original>
// kernel: _lambda_.1
$region0: #{_lambda_.1}
  #allocation0 [shape = 'u32[]', space=smem, size = 0x4, offset = 0x4, fixed_abs, tag = 'smem constant byte address 0x4 - core index']
  #allocation1 [shape = 'u32[144,128]{1,0:T(1,128)}', space=vmem, size = 0x12000, scoped, tag = 'internal scratch']
  %s0 = inlined_call_operand.vmem [shape: f32[128,8], index: 0, kind: input, shape index: {}]
  %s1 = inlined_call_operand.vmem [shape: bf16[8,16], index: 1, kind: input, shape index: {}]
  %s2 = inlined_call_operand.vmem [shape: bf16[6,48,32], index: 2, kind: input, shape index: {}]
  %s3 = inlined_call_operand.vmem [shape: bf16[6,16,48], index: 3, kind: input, shape index: {}]
  %s4 = inlined_call_operand.vmem [shape: bf16[32,32], index: 4, kind: input, shape index: {}]
  %s5 = inlined_call_operand.vmem [shape: f32[6,8,128], index: 5, kind: input, shape index: {}]
  %s6 = inlined_call_operand.vmem [shape: f32[8,128], index: 6, kind: input, shape index: {}]
  %s7 = inlined_call_operand.hbm [shape: f32[1,2], index: 7, kind: output, shape index: {}]
  %s8 = sld [smem:[#allocation0]]
  $region38: #{_lambda_.1} parent=0
    _
  %s10 = ssub.s32 1, %s8
  %s11 = scalar_select 0, %s10, %s8
  $region1: #{_lambda_.1} parent=0
    #allocation2 [shape = 'u8[512]{0}', space=vmem, size = 0x400, scoped, tag = 'output window, operand 0, single buffered']
    #allocation3 [shape = 's32[1]{0}', space=sflag, size = 0x4, scoped, tag = 'scoped memory for _lambda_.1']
    %12 = vsyncpa [#allocation3], 0
    // Predicated region
    $region2: #{_lambda_.1} parent=1 // pred_check
      _
    $region3: #{_lambda_.1} parent=1 // pred_check_branch
      %14 = sbr.rel (0) target = $region5
    $region4: #{_lambda_.1} parent=1 // pred_region
      _
    $region5: #{_lambda_.1} parent=1 // pred_fallthru
      _
    // Predicated region
    $region6: #{_lambda_.1} parent=1 // pred_check
      _
    $region7: #{_lambda_.1} parent=1 // pred_check_branch
      %16 = sbr.rel (0) target = $region9
    $region8: #{_lambda_.1} parent=1 // pred_region
      _
    $region9: #{_lambda_.1} parent=1 // pred_fallthru
      _
    // Predicated region
    $region10: #{_lambda_.1} parent=1 // pred_check
      _
    $region11: #{_lambda_.1} parent=1 // pred_check_branch
      %18 = sbr.rel (0) target = $region13
    $region12: #{_lambda_.1} parent=1 // pred_region
      _
    $region13: #{_lambda_.1} parent=1 // pred_fallthru
      _
    // Predicated region
    $region14: #{_lambda_.1} parent=1 // pred_check
      _
    $region15: #{_lambda_.1} parent=1 // pred_check_branch
      %20 = sbr.rel (0) target = $region17
    $region16: #{_lambda_.1} parent=1 // pred_region
      _
    $region17: #{_lambda_.1} parent=1 // pred_fallthru
      _
    // Predicated region
    $region18: #{_lambda_.1} parent=1 // pred_check
      _
    $region19: #{_lambda_.1} parent=1 // pred_check_branch
      %22 = sbr.rel (0) target = $region21
    $region20: #{_lambda_.1} parent=1 // pred_region
      _
    $region21: #{_lambda_.1} parent=1 // pred_fallthru
      _
    // Predicated region
    $region22: #{_lambda_.1} parent=1 // pred_check
      _
    $region23: #{_lambda_.1} parent=1 // pred_check_branch
      %24 = sbr.rel (0) target = $region25
    $region24: #{_lambda_.1} parent=1 // pred_region
      _
    $region25: #{_lambda_.1} parent=1 // pred_fallthru
      _
    // Predicated region
    $region26: #{_lambda_.1} parent=1 // pred_check
      _
    $region27: #{_lambda_.1} parent=1 // pred_check_branch
      %26 = sbr.rel (0) target = $region29
    $region28: #{_lambda_.1} parent=1 // pred_region
      _
    $region29: #{_lambda_.1} parent=1 // pred_fallthru
      _
    %v28 = vld [vmem:[%s6] sm:$0xff]
    %v29 = vld [vmem:[%s0] sm:$0xff]
    %v30 = vld [vmem:[%s0 + $0x8] sm:$0xff]
    %v31 = vld [vmem:[%s0 + $0x10] sm:$0xff]
    %v32 = vld [vmem:[%s0 + $0x18] sm:$0xff]
    %v33 = vld [vmem:[%s0 + $0x20] sm:$0xff]
    %v34 = vld [vmem:[%s0 + $0x28] sm:$0xff]
    %v35 = vld [vmem:[%s0 + $0x30] sm:$0xff]
    %v36 = vld [vmem:[%s0 + $0x38] sm:$0xff]
    %v37 = vld [vmem:[%s0 + $0x40] sm:$0xff]
    %v38 = vld [vmem:[%s0 + $0x48] sm:$0xff]
    %v39 = vld [vmem:[%s0 + $0x50] sm:$0xff]
    %v40 = vld [vmem:[%s0 + $0x58] sm:$0xff]
    %v41 = vld [vmem:[%s0 + $0x60] sm:$0xff]
    %v42 = vld [vmem:[%s0 + $0x68] sm:$0xff]
    %v43 = vld [vmem:[%s0 + $0x70] sm:$0xff]
    %v44 = vld [vmem:[%s0 + $0x78] sm:$0xff]
    %v45 = vpack.c.bf16 %v30, %v29
    %v46 = vpack.c.bf16 %v32, %v31
    %v47 = vpack.c.bf16 %v34, %v33
    %v48 = vpack.c.bf16 %v36, %v35
    %v49 = vpack.c.bf16 %v38, %v37
    %v50 = vpack.c.bf16 %v40, %v39
    %v51 = vpack.c.bf16 %v42, %v41
    %v52 = vpack.c.bf16 %v44, %v43
    %v53 = vld [vmem:[%s1] sm:$0xf]
    %v54 = vlaneseq
    %v55 = vshrl.u32 %v54, 7
    %v56 = vsub.s32 0, %v55
    %v57 = vrot.slane %v28, %v56
    %vm58 = vcmask 64512
    %v60 = vsel %vm58, %v45, 0
    %v63 = vsel %vm58, %v46, 0
    %v66 = vsel %vm58, %v47, 0
    %v69 = vsel %vm58, %v48, 0
    %v72 = vsel %vm58, %v49, 0
    %v75 = vsel %vm58, %v50, 0
    %v78 = vsel %vm58, %v51, 0
    %v81 = vsel %vm58, %v52, 0
    %vm83 = vcmask 1043456
    %v85 = vsel %vm83, %v53, 0
    %87 = vmatprep.subr.bf16.mxu0 0
    %88 = vmatpush1.bf16.msra.mxu0 %v85
    %89 = vmatprep.subr.bf16.mxu0 0
    %90 = vmatpush1.bf16.msra.mxu0 0
    %91 = vmatprep.subr.bf16.mxu0 0
    %92 = vmatpush1.bf16.msra.mxu0 0
    %93 = vmatprep.subr.bf16.mxu0 0
    %94 = vmatpush1.bf16.msra.mxu0 0
    %95 = vmatprep.subr.bf16.mxu0 0
    %96 = vmatpush1.bf16.msra.mxu0 0
    %97 = vmatprep.subr.bf16.mxu0 0
    %98 = vmatpush1.bf16.msra.mxu0 0
    %99 = vmatprep.subr.bf16.mxu0 0
    %100 = vmatpush1.bf16.msra.mxu0 0
    %101 = vmatprep.subr.bf16.mxu0 0
    %102 = vmatpush1.bf16.msra.mxu0 0
    %103 = vmatprep.subr.bf16.mxu0 0
    %104 = vmatpush1.bf16.msra.mxu0 0
    %105 = vmatprep.subr.bf16.mxu0 0
    %106 = vmatpush1.bf16.msra.mxu0 0
    %107 = vmatprep.subr.bf16.mxu0 0
    %108 = vmatpush1.bf16.msra.mxu0 0
    %109 = vmatprep.subr.bf16.mxu0 0
    %110 = vmatpush1.bf16.msra.mxu0 0
    %111 = vmatprep.subr.bf16.mxu0 0
    %112 = vmatpush1.bf16.msra.mxu0 0
    %113 = vmatprep.subr.bf16.mxu0 0
    %114 = vmatpush1.bf16.msra.mxu0 0
    %115 = vmatprep.subr.bf16.mxu0 0
    %116 = vmatpush1.bf16.msra.mxu0 0
    %117 = vmatprep.subr.bf16.mxu0 0
    %118 = vmatpush1.bf16.msra.mxu0 0
    %119 = vmatprep.mubr.bf16.mxu0 0
    %120 = vmatmul.mubr.bf16.gmra.mrb[0].mxu0 %v60
    %v121 = vpop.f32.mrb[0].mxu0
    %v122 = vadd.f32 %v57, %v121
    %v123 = vpop.f32.mrb[0].mxu0
    %v124 = vpop.f32.mrb[0].mxu0
    %v125 = vadd.f32 %v57, %v124
    %v126 = vpop.f32.mrb[0].mxu0
    %127 = vmatprep.mubr.bf16.mxu0 0
    %128 = vmatmul.mubr.bf16.gmra.mrb[0].mxu0 %v63
    %v129 = vpop.f32.mrb[0].mxu0
    %v130 = vadd.f32 %v57, %v129
    %v131 = vpop.f32.mrb[0].mxu0
    %v132 = vpop.f32.mrb[0].mxu0
    %v133 = vadd.f32 %v57, %v132
    %v134 = vpop.f32.mrb[0].mxu0
    %135 = vmatprep.mubr.bf16.mxu0 0
    %136 = vmatmul.mubr.bf16.gmra.mrb[0].mxu0 %v66
    %v137 = vpop.f32.mrb[0].mxu0
    %v138 = vadd.f32 %v57, %v137
    %v139 = vpop.f32.mrb[0].mxu0
    %v140 = vpop.f32.mrb[0].mxu0
    %v141 = vadd.f32 %v57, %v140
    %v142 = vpop.f32.mrb[0].mxu0
    %143 = vmatprep.mubr.bf16.mxu0 0
    %144 = vmatmul.mubr.bf16.gmra.mrb[0].mxu0 %v69
    %v145 = vpop.f32.mrb[0].mxu0
    %v146 = vadd.f32 %v57, %v145
    %v147 = vpop.f32.mrb[0].mxu0
    %v148 = vpop.f32.mrb[0].mxu0
    %v149 = vadd.f32 %v57, %v148
    %v150 = vpop.f32.mrb[0].mxu0
    %151 = vmatprep.mubr.bf16.mxu0 0
    %152 = vmatmul.mubr.bf16.gmra.mrb[0].mxu0 %v72
    %v153 = vpop.f32.mrb[0].mxu0
    %v154 = vadd.f32 %v57, %v153
    %v155 = vpop.f32.mrb[0].mxu0
    %v156 = vpop.f32.mrb[0].mxu0
    %v157 = vadd.f32 %v57, %v156
    %v158 = vpop.f32.mrb[0].mxu0
    %159 = vmatprep.mubr.bf16.mxu0 0
    %160 = vmatmul.mubr.bf16.gmra.mrb[0].mxu0 %v75
    %v161 = vpop.f32.mrb[0].mxu0
    %v162 = vadd.f32 %v57, %v161
    %v163 = vpop.f32.mrb[0].mxu0
    %v164 = vpop.f32.mrb[0].mxu0
    %v165 = vadd.f32 %v57, %v164
    %v166 = vpop.f32.mrb[0].mxu0
    %167 = vmatprep.mubr.bf16.mxu0 0
    %168 = vmatmul.mubr.bf16.gmra.mrb[0].mxu0 %v78
    %v169 = vpop.f32.mrb[0].mxu0
    %v170 = vadd.f32 %v57, %v169
    %v171 = vpop.f32.mrb[0].mxu0
    %v172 = vpop.f32.mrb[0].mxu0
    %v173 = vadd.f32 %v57, %v172
    %v174 = vpop.f32.mrb[0].mxu0
    %175 = vmatprep.mubr.bf16.mxu0 0
    %176 = vmatmul.mubr.bf16.gmra.mrb[0].mxu0 %v81
    %v177 = vpop.f32.mrb[0].mxu0
    %v178 = vadd.f32 %v57, %v177
    %v179 = vpop.f32.mrb[0].mxu0
    %v180 = vpop.f32.mrb[0].mxu0
    %v181 = vadd.f32 %v57, %v180
    %v182 = vpop.f32.mrb[0].mxu0
    %183 = vdwg.mxu0
    %v184 = vld [vmem:[%s5] sm:$0xff]
    %vm185 = vcmask 130048
    %v186 = vsel %vm185, %v122, 0.0
    %v187 = vsel %vm185, %v125, 0.0
    %v188 = vadd.f32 %v186, %v187
    %v189 = vsel %vm185, %v130, 0.0
    %v190 = vadd.f32 %v188, %v189
    %v191 = vsel %vm185, %v133, 0.0
    %v192 = vadd.f32 %v190, %v191
    %v193 = vsel %vm185, %v138, 0.0
    %v194 = vadd.f32 %v192, %v193
    %v195 = vsel %vm185, %v141, 0.0
    %v196 = vadd.f32 %v194, %v195
    %v197 = vsel %vm185, %v146, 0.0
    %v198 = vadd.f32 %v196, %v197
    %v199 = vsel %vm185, %v149, 0.0
    %v200 = vadd.f32 %v198, %v199
    %v201 = vsel %vm185, %v154, 0.0
    %v202 = vadd.f32 %v200, %v201
    %v203 = vsel %vm185, %v157, 0.0
    %v204 = vadd.f32 %v202, %v203
    %v205 = vsel %vm185, %v162, 0.0
    %v206 = vadd.f32 %v204, %v205
    %v207 = vsel %vm185, %v165, 0.0
    %v208 = vadd.f32 %v206, %v207
    %v209 = vsel %vm185, %v170, 0.0
    %v210 = vadd.f32 %v208, %v209
    %v211 = vsel %vm185, %v173, 0.0
    %v212 = vadd.f32 %v210, %v211
    %v213 = vsel %vm185, %v178, 0.0
    %v214 = vadd.f32 %v212, %v213
    %v215 = vsel %vm185, %v181, 0.0
    %v216 = vadd.f32 %v214, %v215
    %v217 = vrot.slane %v216, 4
    %v218 = vadd.f32 %v216, %v217
    %v219 = vrot.slane %v218, 2
    %v220 = vadd.f32 %v218, %v219
    %v221 = vrot.slane %v220, 1
    %v222 = vadd.f32 %v220, %v221
    %v223 = vrcp.pop 128.0
    %v224 = vmul.f32 %v222, %v223
    %v225 = vmul.f32 %v122, %v122
    %v226 = vmul.f32 %v125, %v125
    %v227 = vmul.f32 %v130, %v130
    %v228 = vmul.f32 %v133, %v133
    %v229 = vmul.f32 %v138, %v138
    %v230 = vmul.f32 %v141, %v141
    %v231 = vmul.f32 %v146, %v146
    %v232 = vmul.f32 %v149, %v149
    %v233 = vmul.f32 %v154, %v154
    %v234 = vmul.f32 %v157, %v157
    %v235 = vmul.f32 %v162, %v162
    %v236 = vmul.f32 %v165, %v165
    %v237 = vmul.f32 %v170, %v170
    %v238 = vmul.f32 %v173, %v173
    %v239 = vmul.f32 %v178, %v178
    %v240 = vmul.f32 %v181, %v181
    %v241 = vsel %vm185, %v225, 0.0
    %v242 = vsel %vm185, %v226, 0.0
    %v243 = vadd.f32 %v241, %v242
    %v244 = vsel %vm185, %v227, 0.0
    %v245 = vadd.f32 %v243, %v244
    %v246 = vsel %vm185, %v228, 0.0
    %v247 = vadd.f32 %v245, %v246
    %v248 = vsel %vm185, %v229, 0.0
    %v249 = vadd.f32 %v247, %v248
    %v250 = vsel %vm185, %v230, 0.0
    %v251 = vadd.f32 %v249, %v250
    %v252 = vsel %vm185, %v231, 0.0
    %v253 = vadd.f32 %v251, %v252
    %v254 = vsel %vm185, %v232, 0.0
    %v255 = vadd.f32 %v253, %v254
    %v256 = vsel %vm185, %v233, 0.0
    %v257 = vadd.f32 %v255, %v256
    %v258 = vsel %vm185, %v234, 0.0
    %v259 = vadd.f32 %v257, %v258
    %v260 = vsel %vm185, %v235, 0.0
    %v261 = vadd.f32 %v259, %v260
    %v262 = vsel %vm185, %v236, 0.0
    %v263 = vadd.f32 %v261, %v262
    %v264 = vsel %vm185, %v237, 0.0
    %v265 = vadd.f32 %v263, %v264
    %v266 = vsel %vm185, %v238, 0.0
    %v267 = vadd.f32 %v265, %v266
    %v268 = vsel %vm185, %v239, 0.0
    %v269 = vadd.f32 %v267, %v268
    %v270 = vsel %vm185, %v240, 0.0
    %v271 = vadd.f32 %v269, %v270
    %v272 = vrot.slane %v271, 4
    %v273 = vadd.f32 %v271, %v272
    %v274 = vrot.slane %v273, 2
    %v275 = vadd.f32 %v273, %v274
    %v276 = vrot.slane %v275, 1
    %v277 = vadd.f32 %v275, %v276
    %v278 = vmul.f32 %v277, %v223
    %v279 = vmul.f32 %v224, %v224
    %v280 = vsub.f32 %v278, %v279
    %v281 = vadd.f32 %v280, 1e-05
    %v282 = vrsqrt.pop %v281
    %v283 = vmul.f32 %v282, %v184
    %v284 = vlaneseq
    %v285 = vshrl.u32 %v284, 7
    %v286 = vsub.s32 0, %v285
    %v287 = vrot.slane %v283, %v286
    %v288 = vmul.f32 %v122, %v287
    %v289 = vmul.f32 %v125, %v287
    %v290 = vmul.f32 %v130, %v287
    %v291 = vmul.f32 %v133, %v287
    %v292 = vmul.f32 %v138, %v287
    %v293 = vmul.f32 %v141, %v287
    %v294 = vmul.f32 %v146, %v287
    %v295 = vmul.f32 %v149, %v287
    %v296 = vmul.f32 %v154, %v287
    %v297 = vmul.f32 %v157, %v287
    %v298 = vmul.f32 %v162, %v287
    %v299 = vmul.f32 %v165, %v287
    %v300 = vmul.f32 %v170, %v287
    %v301 = vmul.f32 %v173, %v287
    %v302 = vmul.f32 %v178, %v287
    %v303 = vmul.f32 %v181, %v287
    %v304 = vmul.f32 %v224, %v283
    %v306 = vrot.slane %v304, 7
    %v308 = vsub.f32 %v184, %v306
    %v309 = vlaneseq
    %v310 = vshrl.u32 %v309, 7
    %v311 = vsub.s32 1, %v310
    %v312 = vrot.slane %v308, %v311
    %v313 = vadd.f32 %v288, %v312
    %v314 = vadd.f32 %v289, %v312
    %v315 = vadd.f32 %v290, %v312
    %v316 = vadd.f32 %v291, %v312
    %v317 = vadd.f32 %v292, %v312
    %v318 = vadd.f32 %v293, %v312
    %v319 = vadd.f32 %v294, %v312
    %v320 = vadd.f32 %v295, %v312
    %v321 = vadd.f32 %v296, %v312
    %v322 = vadd.f32 %v297, %v312
    %v323 = vadd.f32 %v298, %v312
    %v324 = vadd.f32 %v299, %v312
    %v325 = vadd.f32 %v300, %v312
    %v326 = vadd.f32 %v301, %v312
    %v327 = vadd.f32 %v302, %v312
    %v328 = vadd.f32 %v303, %v312
    %vm345 = vcmask 1045504
    %v346 = vrot.slane %v313, 2
    %v347 = vrot.slane %v314, 2
    %v348 = vsel %vm345, %v346, %v347
    %v349 = vrot.slane %v315, 2
    %v350 = vsel %vm345, %v347, %v349
    %v351 = vrot.slane %v316, 2
    %v352 = vsel %vm345, %v349, %v351
    %v353 = vrot.slane %v317, 2
    %v354 = vsel %vm345, %v351, %v353
    %v355 = vrot.slane %v318, 2
    %v356 = vsel %vm345, %v353, %v355
    %v357 = vrot.slane %v319, 2
    %v358 = vsel %vm345, %v355, %v357
    %v359 = vrot.slane %v320, 2
    %v360 = vsel %vm345, %v357, %v359
    %v361 = vrot.slane %v321, 2
    %v362 = vsel %vm345, %v359, %v361
    %v363 = vrot.slane %v322, 2
    %v364 = vsel %vm345, %v361, %v363
    %v365 = vrot.slane %v323, 2
    %v366 = vsel %vm345, %v363, %v365
    %v367 = vrot.slane %v324, 2
    %v368 = vsel %vm345, %v365, %v367
    %v369 = vrot.slane %v325, 2
    %v370 = vsel %vm345, %v367, %v369
    %v371 = vrot.slane %v326, 2
    %v372 = vsel %vm345, %v369, %v371
    %v373 = vrot.slane %v327, 2
    %v374 = vsel %vm345, %v371, %v373
    %v375 = vrot.slane %v328, 2
    %v376 = vsel %vm345, %v373, %v375
    %377 = vrot.lane.b32.xlu0 %v348, 16
    %v378 = vpop.permute.xlu0 %377
    %379 = vrot.lane.b32.xlu0 %v350, 16
    %v380 = vpop.permute.xlu0 %379
    %381 = vrot.lane.b32.xlu0 %v352, 16
    %v382 = vpop.permute.xlu0 %381
    %383 = vrot.lane.b32.xlu0 %v354, 16
    %v384 = vpop.permute.xlu0 %383
    %385 = vrot.lane.b32.xlu0 %v356, 16
    %v386 = vpop.permute.xlu0 %385
    %387 = vrot.lane.b32.xlu0 %v358, 16
    %v388 = vpop.permute.xlu0 %387
    %389 = vrot.lane.b32.xlu0 %v360, 16
    %v390 = vpop.permute.xlu0 %389
    %391 = vrot.lane.b32.xlu0 %v362, 16
    %v392 = vpop.permute.xlu0 %391
    %393 = vrot.lane.b32.xlu0 %v364, 16
    %v394 = vpop.permute.xlu0 %393
    %395 = vrot.lane.b32.xlu0 %v366, 16
    %v396 = vpop.permute.xlu0 %395
    %397 = vrot.lane.b32.xlu0 %v368, 16
    %v398 = vpop.permute.xlu0 %397
    %399 = vrot.lane.b32.xlu0 %v370, 16
    %v400 = vpop.permute.xlu0 %399
    %401 = vrot.lane.b32.xlu0 %v372, 16
    %v402 = vpop.permute.xlu0 %401
    %403 = vrot.lane.b32.xlu0 %v374, 16
    %v404 = vpop.permute.xlu0 %403
    %405 = vrot.lane.b32.xlu0 %v376, 16
    %v406 = vpop.permute.xlu0 %405
    %407 = vrot.lane.b32.xlu0 %v375, 16
    %v408 = vpop.permute.xlu0 %407
    %v425 = vrot.slane %v313, 4
    %v426 = vrot.slane %v314, 4
    %v427 = vsel %vm83, %v425, %v426
    %v428 = vrot.slane %v315, 4
    %v429 = vsel %vm83, %v426, %v428
    %v430 = vrot.slane %v316, 4
    %v431 = vsel %vm83, %v428, %v430
    %v432 = vrot.slane %v317, 4
    %v433 = vsel %vm83, %v430, %v432
    %v434 = vrot.slane %v318, 4
    %v435 = vsel %vm83, %v432, %v434
    %v436 = vrot.slane %v319, 4
    %v437 = vsel %vm83, %v434, %v436
    %v438 = vrot.slane %v320, 4
    %v439 = vsel %vm83, %v436, %v438
    %v440 = vrot.slane %v321, 4
    %v441 = vsel %vm83, %v438, %v440
    %v442 = vrot.slane %v322, 4
    %v443 = vsel %vm83, %v440, %v442
    %v444 = vrot.slane %v323, 4
    %v445 = vsel %vm83, %v442, %v444
    %v446 = vrot.slane %v324, 4
    %v447 = vsel %vm83, %v444, %v446
    %v448 = vrot.slane %v325, 4
    %v449 = vsel %vm83, %v446, %v448
    %v450 = vrot.slane %v326, 4
    %v451 = vsel %vm83, %v448, %v450
    %v452 = vrot.slane %v327, 4
    %v453 = vsel %vm83, %v450, %v452
    %v454 = vrot.slane %v328, 4
    %v455 = vsel %vm83, %v452, %v454
    %456 = vrot.lane.b32.xlu0 %v427, 32
    %v457 = vpop.permute.xlu0 %456
    %458 = vrot.lane.b32.xlu0 %v429, 32
    %v459 = vpop.permute.xlu0 %458
    %460 = vrot.lane.b32.xlu0 %v431, 32
    %v461 = vpop.permute.xlu0 %460
    %462 = vrot.lane.b32.xlu0 %v433, 32
    %v463 = vpop.permute.xlu0 %462
    %464 = vrot.lane.b32.xlu0 %v435, 32
    %v465 = vpop.permute.xlu0 %464
    %466 = vrot.lane.b32.xlu0 %v437, 32
    %v467 = vpop.permute.xlu0 %466
    %468 = vrot.lane.b32.xlu0 %v439, 32
    %v469 = vpop.permute.xlu0 %468
    %470 = vrot.lane.b32.xlu0 %v441, 32
    %v471 = vpop.permute.xlu0 %470
    %472 = vrot.lane.b32.xlu0 %v443, 32
    %v473 = vpop.permute.xlu0 %472
    %474 = vrot.lane.b32.xlu0 %v445, 32
    %v475 = vpop.permute.xlu0 %474
    %476 = vrot.lane.b32.xlu0 %v447, 32
    %v477 = vpop.permute.xlu0 %476
    %478 = vrot.lane.b32.xlu0 %v449, 32
    %v479 = vpop.permute.xlu0 %478
    %480 = vrot.lane.b32.xlu0 %v451, 32
    %v481 = vpop.permute.xlu0 %480
    %482 = vrot.lane.b32.xlu0 %v453, 32
    %v483 = vpop.permute.xlu0 %482
    %484 = vrot.lane.b32.xlu0 %v455, 32
    %v485 = vpop.permute.xlu0 %484
    %486 = vrot.lane.b32.xlu0 %v454, 32
    %v487 = vpop.permute.xlu0 %486
    %v504 = vsel %vm185, %v313, %v378
    %v505 = vsel %vm185, %v314, %v380
    %v506 = vsel %vm185, %v315, %v382
    %v507 = vsel %vm185, %v316, %v384
    %v508 = vsel %vm185, %v317, %v386
    %v509 = vsel %vm185, %v318, %v388
    %v510 = vsel %vm185, %v319, %v390
    %v511 = vsel %vm185, %v320, %v392
    %v512 = vsel %vm185, %v321, %v394
    %v513 = vsel %vm185, %v322, %v396
    %v514 = vsel %vm185, %v323, %v398
    %v515 = vsel %vm185, %v324, %v400
    %v516 = vsel %vm185, %v325, %v402
    %v517 = vsel %vm185, %v326, %v404
    %v518 = vsel %vm185, %v327, %v406
    %v519 = vsel %vm185, %v328, %v408
    %vm520 = vcmask 261120
    %v521 = vsel %vm520, %v504, %v457
    %v522 = vsel %vm520, %v505, %v459
    %v523 = vsel %vm520, %v506, %v461
    %v524 = vsel %vm520, %v507, %v463
    %v525 = vsel %vm520, %v508, %v465
    %v526 = vsel %vm520, %v509, %v467
    %v527 = vsel %vm520, %v510, %v469
    %v528 = vsel %vm520, %v511, %v471
    %v529 = vsel %vm520, %v512, %v473
    %v530 = vsel %vm520, %v513, %v475
    %v531 = vsel %vm520, %v514, %v477
    %v532 = vsel %vm520, %v515, %v479
    %v533 = vsel %vm520, %v516, %v481
    %v534 = vsel %vm520, %v517, %v483
    %v535 = vsel %vm520, %v518, %v485
    %v536 = vsel %vm520, %v519, %v487
    %v537 = vpack.c.bf16 %v522, %v521
    %v538 = vpack.c.bf16 %v524, %v523
    %v539 = vpack.c.bf16 %v526, %v525
    %v540 = vpack.c.bf16 %v528, %v527
    %v541 = vpack.c.bf16 %v530, %v529
    %v542 = vpack.c.bf16 %v532, %v531
    %v543 = vpack.c.bf16 %v534, %v533
    %v544 = vpack.c.bf16 %v536, %v535
    %v545 = vld [vmem:[%s2] sm:$0xf]
    %v546 = vld [vmem:[%s2 + $0x4] sm:$0xf]
    %v547 = vld [vmem:[%s2 + $0x8] sm:$0xf]
    %v548 = vld [vmem:[%s2 + $0xc] sm:$0xf]
    %v549 = vld [vmem:[%s2 + $0x10] sm:$0xf]
    %v550 = vld [vmem:[%s2 + $0x14] sm:$0xf]
    %v551 = vlaneseq
    %v552 = vshrl.u32 %v551, 7
    %v553 = vsub.s32 2, %v552
    %v554 = vrot.slane %v184, %v553
    %v561 = vunpack.c.l.b16 %v545
    %v562 = vunpack.c.l.b16 %v546
    %v563 = vunpack.c.l.b16 %v547
    %v564 = vunpack.c.l.b16 %v548
    %v565 = vunpack.c.l.b16 %v549
    %v566 = vunpack.c.l.b16 %v550
    %v567 = vpack.c.b16 %v562, %v561
    %v568 = vpack.c.b16 %v564, %v563
    %v569 = vpack.c.b16 %v566, %v565
    %vm573 = vcmask 392192
    %v575 = vsel %vm573, %v537, 0
    %v578 = vsel %vm573, %v538, 0
    %v581 = vsel %vm573, %v539, 0
    %v584 = vsel %vm573, %v540, 0
    %v587 = vsel %vm573, %v541, 0
    %v590 = vsel %vm573, %v542, 0
    %v593 = vsel %vm573, %v543, 0
    %v596 = vsel %vm573, %v544, 0
    %598 = vmatprep.subr.bf16.mxu0 0
    %599 = vmatpush1.bf16.msra.mxu0 %v567
    %600 = vmatprep.subr.bf16.mxu0 0
    %601 = vmatpush1.bf16.msra.mxu0 %v568
    %602 = vmatprep.subr.bf16.mxu0 0
    %603 = vmatpush1.bf16.msra.mxu0 %v569
    %604 = vmatprep.subr.bf16.mxu0 0
    %605 = vmatpush1.bf16.msra.mxu0 0
    %606 = vmatprep.subr.bf16.mxu0 0
    %607 = vmatpush1.bf16.msra.mxu0 0
    %608 = vmatprep.subr.bf16.mxu0 0
    %609 = vmatpush1.bf16.msra.mxu0 0
    %610 = vmatprep.subr.bf16.mxu0 0
    %611 = vmatpush1.bf16.msra.mxu0 0
    %612 = vmatprep.subr.bf16.mxu0 0
    %613 = vmatpush1.bf16.msra.mxu0 0
    %614 = vmatprep.subr.bf16.mxu0 0
    %615 = vmatpush1.bf16.msra.mxu0 0
    %616 = vmatprep.subr.bf16.mxu0 0
    %617 = vmatpush1.bf16.msra.mxu0 0
    %618 = vmatprep.subr.bf16.mxu0 0
    %619 = vmatpush1.bf16.msra.mxu0 0
    %620 = vmatprep.subr.bf16.mxu0 0
    %621 = vmatpush1.bf16.msra.mxu0 0
    %622 = vmatprep.subr.bf16.mxu0 0
    %623 = vmatpush1.bf16.msra.mxu0 0
    %624 = vmatprep.subr.bf16.mxu0 0
    %625 = vmatpush1.bf16.msra.mxu0 0
    %626 = vmatprep.subr.bf16.mxu0 0
    %627 = vmatpush1.bf16.msra.mxu0 0
    %628 = vmatprep.subr.bf16.mxu0 0
    %629 = vmatpush1.bf16.msra.mxu0 0
    %630 = vmatprep.mubr.bf16.mxu0 0
    %631 = vmatmul.mubr.bf16.gmra.mrb[0].mxu0 %v575
    %v632 = vpop.f32.mrb[0].mxu0
    %v633 = vadd.f32 %v554, %v632
    %v634 = vpop.f32.mrb[0].mxu0
    %v635 = vpop.f32.mrb[0].mxu0
    %v636 = vadd.f32 %v554, %v635
    %v637 = vpop.f32.mrb[0].mxu0
    %638 = vmatprep.mubr.bf16.mxu0 0
    %639 = vmatmul.mubr.bf16.gmra.mrb[0].mxu0 %v578
    %v640 = vpop.f32.mrb[0].mxu0
    %v641 = vadd.f32 %v554, %v640
    %v642 = vpop.f32.mrb[0].mxu0
    %v643 = vpop.f32.mrb[0].mxu0
    %v644 = vadd.f32 %v554, %v643
    %v645 = vpop.f32.mrb[0].mxu0
    %646 = vmatprep.mubr.bf16.mxu0 0
    %647 = vmatmul.mubr.bf16.gmra.mrb[0].mxu0 %v581
    %v648 = vpop.f32.mrb[0].mxu0
    %v649 = vadd.f32 %v554, %v648
    %v650 = vpop.f32.mrb[0].mxu0
    %v651 = vpop.f32.mrb[0].mxu0
    %v652 = vadd.f32 %v554, %v651
    %v653 = vpop.f32.mrb[0].mxu0
    %654 = vmatprep.mubr.bf16.mxu0 0
    %655 = vmatmul.mubr.bf16.gmra.mrb[0].mxu0 %v584
    %v656 = vpop.f32.mrb[0].mxu0
    %v657 = vadd.f32 %v554, %v656
    %v658 = vpop.f32.mrb[0].mxu0
    %v659 = vpop.f32.mrb[0].mxu0
    %v660 = vadd.f32 %v554, %v659
    %v661 = vpop.f32.mrb[0].mxu0
    %662 = vmatprep.mubr.bf16.mxu0 0
    %663 = vmatmul.mubr.bf16.gmra.mrb[0].mxu0 %v587
    %v664 = vpop.f32.mrb[0].mxu0
    %v665 = vadd.f32 %v554, %v664
    %v666 = vpop.f32.mrb[0].mxu0
    %v667 = vpop.f32.mrb[0].mxu0
    %v668 = vadd.f32 %v554, %v667
    %v669 = vpop.f32.mrb[0].mxu0
    %670 = vmatprep.mubr.bf16.mxu0 0
    %671 = vmatmul.mubr.bf16.gmra.mrb[0].mxu0 %v590
    %v672 = vpop.f32.mrb[0].mxu0
    %v673 = vadd.f32 %v554, %v672
    %v674 = vpop.f32.mrb[0].mxu0
    %v675 = vpop.f32.mrb[0].mxu0
    %v676 = vadd.f32 %v554, %v675
    %v677 = vpop.f32.mrb[0].mxu0
    %678 = vmatprep.mubr.bf16.mxu0 0
    %679 = vmatmul.mubr.bf16.gmra.mrb[0].mxu0 %v593
    %v680 = vpop.f32.mrb[0].mxu0
    %v681 = vadd.f32 %v554, %v680
    %v682 = vpop.f32.mrb[0].mxu0
    %v683 = vpop.f32.mrb[0].mxu0
    %v684 = vadd.f32 %v554, %v683
    %v685 = vpop.f32.mrb[0].mxu0
    %686 = vmatprep.mubr.bf16.mxu0 0
    %687 = vmatmul.mubr.bf16.gmra.mrb[0].mxu0 %v596
    %v688 = vpop.f32.mrb[0].mxu0
    %v689 = vadd.f32 %v554, %v688
    %v690 = vpop.f32.mrb[0].mxu0
    %v691 = vpop.f32.mrb[0].mxu0
    %v692 = vadd.f32 %v554, %v691
    %v693 = vpop.f32.mrb[0].mxu0
    %694 = vdwg.mxu0
    %v695 = vtanh.pop %v633
    %v696 = vtanh.pop %v636
    %v697 = vtanh.pop %v641
    %v698 = vtanh.pop %v644
    %v699 = vtanh.pop %v649
    %v700 = vtanh.pop %v652
    %v701 = vtanh.pop %v657
    %v702 = vtanh.pop %v660
    %v703 = vtanh.pop %v665
    %v704 = vtanh.pop %v668
    %v705 = vtanh.pop %v673
    %v706 = vtanh.pop %v676
    %v707 = vtanh.pop %v681
    %v708 = vtanh.pop %v684
    %v709 = vtanh.pop %v689
    %v710 = vtanh.pop %v692
    %v711 = vmul.f32 %v695, 0.5
    %v712 = vmul.f32 %v696, 0.5
    %v713 = vmul.f32 %v697, 0.5
    %v714 = vmul.f32 %v698, 0.5
    %v715 = vmul.f32 %v699, 0.5
    %v716 = vmul.f32 %v700, 0.5
    %v717 = vmul.f32 %v701, 0.5
    %v718 = vmul.f32 %v702, 0.5
    %v719 = vmul.f32 %v703, 0.5
    %v720 = vmul.f32 %v704, 0.5
    %v721 = vmul.f32 %v705, 0.5
    %v722 = vmul.f32 %v706, 0.5
    %v723 = vmul.f32 %v707, 0.5
    %v724 = vmul.f32 %v708, 0.5
    %v725 = vmul.f32 %v709, 0.5
    %v726 = vmul.f32 %v710, 0.5
    %v727 = vadd.f32 %v711, 0.5
    %v728 = vadd.f32 %v712, 0.5
    %v729 = vadd.f32 %v713, 0.5
    %v730 = vadd.f32 %v714, 0.5
    %v731 = vadd.f32 %v715, 0.5
    %v732 = vadd.f32 %v716, 0.5
    %v733 = vadd.f32 %v717, 0.5
    %v734 = vadd.f32 %v718, 0.5
    %v735 = vadd.f32 %v719, 0.5
    %v736 = vadd.f32 %v720, 0.5
    %v737 = vadd.f32 %v721, 0.5
    %v738 = vadd.f32 %v722, 0.5
    %v739 = vadd.f32 %v723, 0.5
    %v740 = vadd.f32 %v724, 0.5
    %v741 = vadd.f32 %v725, 0.5
    %v742 = vadd.f32 %v726, 0.5
    %759 = vrot.lane.b32.xlu0 %v727, 112
    %v760 = vpop.permute.xlu0 %759
    %761 = vrot.lane.b32.xlu0 %v728, 112
    %v762 = vpop.permute.xlu0 %761
    %763 = vrot.lane.b32.xlu0 %v729, 112
    %v764 = vpop.permute.xlu0 %763
    %765 = vrot.lane.b32.xlu0 %v730, 112
    %v766 = vpop.permute.xlu0 %765
    %767 = vrot.lane.b32.xlu0 %v731, 112
    %v768 = vpop.permute.xlu0 %767
    %769 = vrot.lane.b32.xlu0 %v732, 112
    %v770 = vpop.permute.xlu0 %769
    %771 = vrot.lane.b32.xlu0 %v733, 112
    %v772 = vpop.permute.xlu0 %771
    %773 = vrot.lane.b32.xlu0 %v734, 112
    %v774 = vpop.permute.xlu0 %773
    %775 = vrot.lane.b32.xlu0 %v735, 112
    %v776 = vpop.permute.xlu0 %775
    %777 = vrot.lane.b32.xlu0 %v736, 112
    %v778 = vpop.permute.xlu0 %777
    %779 = vrot.lane.b32.xlu0 %v737, 112
    %v780 = vpop.permute.xlu0 %779
    %781 = vrot.lane.b32.xlu0 %v738, 112
    %v782 = vpop.permute.xlu0 %781
    %783 = vrot.lane.b32.xlu0 %v739, 112
    %v784 = vpop.permute.xlu0 %783
    %785 = vrot.lane.b32.xlu0 %v740, 112
    %v786 = vpop.permute.xlu0 %785
    %787 = vrot.lane.b32.xlu0 %v741, 112
    %v788 = vpop.permute.xlu0 %787
    %789 = vrot.lane.b32.xlu0 %v742, 112
    %v790 = vpop.permute.xlu0 %789
    %v807 = vmul.f32 %v695, %v760
    %v808 = vmul.f32 %v696, %v762
    %v809 = vmul.f32 %v697, %v764
    %v810 = vmul.f32 %v698, %v766
    %v811 = vmul.f32 %v699, %v768
    %v812 = vmul.f32 %v700, %v770
    %v813 = vmul.f32 %v701, %v772
    %v814 = vmul.f32 %v702, %v774
    %v815 = vmul.f32 %v703, %v776
    %v816 = vmul.f32 %v704, %v778
    %v817 = vmul.f32 %v705, %v780
    %v818 = vmul.f32 %v706, %v782
    %v819 = vmul.f32 %v707, %v784
    %v820 = vmul.f32 %v708, %v786
    %v821 = vmul.f32 %v709, %v788
    %v822 = vmul.f32 %v710, %v790
    %v823 = vpack.c.bf16 %v808, %v807
    %v824 = vpack.c.bf16 %v810, %v809
    %v825 = vpack.c.bf16 %v812, %v811
    %v826 = vpack.c.bf16 %v814, %v813
    %v827 = vpack.c.bf16 %v816, %v815
    %v828 = vpack.c.bf16 %v818, %v817
    %v829 = vpack.c.bf16 %v820, %v819
    %v830 = vpack.c.bf16 %v822, %v821
    %v831 = vld [vmem:[%s3] sm:$0xf]
    %v832 = vld [vmem:[%s3 + $0x4] sm:$0xf]
    %v833 = vlaneseq
    %v834 = vshrl.u32 %v833, 7
    %v835 = vsub.s32 3, %v834
    %v836 = vrot.slane %v184, %v835
    %v839 = vunpack.c.l.b16 %v831
    %v840 = vunpack.c.l.b16 %v832
    %v841 = vpack.c.b16 %v840, %v839
    %v844 = vsel %vm185, %v823, 0
    %v847 = vsel %vm185, %v824, 0
    %v850 = vsel %vm185, %v825, 0
    %v853 = vsel %vm185, %v826, 0
    %v856 = vsel %vm185, %v827, 0
    %v859 = vsel %vm185, %v828, 0
    %v862 = vsel %vm185, %v829, 0
    %v865 = vsel %vm185, %v830, 0
    %867 = vmatprep.subr.bf16.mxu0 0
    %868 = vmatpush1.bf16.msra.mxu0 %v841
    %869 = vmatprep.subr.bf16.mxu0 0
    %870 = vmatpush1.bf16.msra.mxu0 0
    %871 = vmatprep.subr.bf16.mxu0 0
    %872 = vmatpush1.bf16.msra.mxu0 0
    %873 = vmatprep.subr.bf16.mxu0 0
    %874 = vmatpush1.bf16.msra.mxu0 0
    %875 = vmatprep.subr.bf16.mxu0 0
    %876 = vmatpush1.bf16.msra.mxu0 0
    %877 = vmatprep.subr.bf16.mxu0 0
    %878 = vmatpush1.bf16.msra.mxu0 0
    %879 = vmatprep.subr.bf16.mxu0 0
    %880 = vmatpush1.bf16.msra.mxu0 0
    %881 = vmatprep.subr.bf16.mxu0 0
    %882 = vmatpush1.bf16.msra.mxu0 0
    %883 = vmatprep.subr.bf16.mxu0 0
    %884 = vmatpush1.bf16.msra.mxu0 0
    %885 = vmatprep.subr.bf16.mxu0 0
    %886 = vmatpush1.bf16.msra.mxu0 0
    %887 = vmatprep.subr.bf16.mxu0 0
    %888 = vmatpush1.bf16.msra.mxu0 0
    %889 = vmatprep.subr.bf16.mxu0 0
    %890 = vmatpush1.bf16.msra.mxu0 0
    %891 = vmatprep.subr.bf16.mxu0 0
    %892 = vmatpush1.bf16.msra.mxu0 0
    %893 = vmatprep.subr.bf16.mxu0 0
    %894 = vmatpush1.bf16.msra.mxu0 0
    %895 = vmatprep.subr.bf16.mxu0 0
    %896 = vmatpush1.bf16.msra.mxu0 0
    %897 = vmatprep.subr.bf16.mxu0 0
    %898 = vmatpush1.bf16.msra.mxu0 0
    %899 = vmatprep.mubr.bf16.mxu0 0
    %900 = vmatmul.mubr.bf16.gmra.mrb[0].mxu0 %v844
    %v901 = vpop.f32.mrb[0].mxu0
    %v902 = vadd.f32 %v836, %v901
    %v903 = vpop.f32.mrb[0].mxu0
    %v904 = vpop.f32.mrb[0].mxu0
    %v905 = vadd.f32 %v836, %v904
    %v906 = vpop.f32.mrb[0].mxu0
    %907 = vmatprep.mubr.bf16.mxu0 0
    %908 = vmatmul.mubr.bf16.gmra.mrb[0].mxu0 %v847
    %v909 = vpop.f32.mrb[0].mxu0
    %v910 = vadd.f32 %v836, %v909
    %v911 = vpop.f32.mrb[0].mxu0
    %v912 = vpop.f32.mrb[0].mxu0
    %v913 = vadd.f32 %v836, %v912
    %v914 = vpop.f32.mrb[0].mxu0
    %915 = vmatprep.mubr.bf16.mxu0 0
    %916 = vmatmul.mubr.bf16.gmra.mrb[0].mxu0 %v850
    %v917 = vpop.f32.mrb[0].mxu0
    %v918 = vadd.f32 %v836, %v917
    %v919 = vpop.f32.mrb[0].mxu0
    %v920 = vpop.f32.mrb[0].mxu0
    %v921 = vadd.f32 %v836, %v920
    %v922 = vpop.f32.mrb[0].mxu0
    %923 = vmatprep.mubr.bf16.mxu0 0
    %924 = vmatmul.mubr.bf16.gmra.mrb[0].mxu0 %v853
    %v925 = vpop.f32.mrb[0].mxu0
    %v926 = vadd.f32 %v836, %v925
    %v927 = vpop.f32.mrb[0].mxu0
    %v928 = vpop.f32.mrb[0].mxu0
    %v929 = vadd.f32 %v836, %v928
    %v930 = vpop.f32.mrb[0].mxu0
    %931 = vmatprep.mubr.bf16.mxu0 0
    %932 = vmatmul.mubr.bf16.gmra.mrb[0].mxu0 %v856
    %v933 = vpop.f32.mrb[0].mxu0
    %v934 = vadd.f32 %v836, %v933
    %v935 = vpop.f32.mrb[0].mxu0
    %v936 = vpop.f32.mrb[0].mxu0
    %v937 = vadd.f32 %v836, %v936
    %v938 = vpop.f32.mrb[0].mxu0
    %939 = vmatprep.mubr.bf16.mxu0 0
    %940 = vmatmul.mubr.bf16.gmra.mrb[0].mxu0 %v859
    %v941 = vpop.f32.mrb[0].mxu0
    %v942 = vadd.f32 %v836, %v941
    %v943 = vpop.f32.mrb[0].mxu0
    %v944 = vpop.f32.mrb[0].mxu0
    %v945 = vadd.f32 %v836, %v944
    %v946 = vpop.f32.mrb[0].mxu0
    %947 = vmatprep.mubr.bf16.mxu0 0
    %948 = vmatmul.mubr.bf16.gmra.mrb[0].mxu0 %v862
    %v949 = vpop.f32.mrb[0].mxu0
    %v950 = vadd.f32 %v836, %v949
    %v951 = vpop.f32.mrb[0].mxu0
    %v952 = vpop.f32.mrb[0].mxu0
    %v953 = vadd.f32 %v836, %v952
    %v954 = vpop.f32.mrb[0].mxu0
    %955 = vmatprep.mubr.bf16.mxu0 0
    %956 = vmatmul.mubr.bf16.gmra.mrb[0].mxu0 %v865
    %v957 = vpop.f32.mrb[0].mxu0
    %v958 = vadd.f32 %v836, %v957
    %v959 = vpop.f32.mrb[0].mxu0
    %v960 = vpop.f32.mrb[0].mxu0
    %v961 = vadd.f32 %v836, %v960
    %v962 = vpop.f32.mrb[0].mxu0
    %963 = vdwg.mxu0
    %980 = vrot.lane.b32.xlu0 %v902, 16
    %v981 = vpop.permute.xlu0 %980
    %982 = vrot.lane.b32.xlu0 %v905, 16
    %v983 = vpop.permute.xlu0 %982
    %984 = vrot.lane.b32.xlu0 %v910, 16
    %v985 = vpop.permute.xlu0 %984
    %986 = vrot.lane.b32.xlu0 %v913, 16
    %v987 = vpop.permute.xlu0 %986
    %988 = vrot.lane.b32.xlu0 %v918, 16
    %v989 = vpop.permute.xlu0 %988
    %990 = vrot.lane.b32.xlu0 %v921, 16
    %v991 = vpop.permute.xlu0 %990
    %992 = vrot.lane.b32.xlu0 %v926, 16
    %v993 = vpop.permute.xlu0 %992
    %994 = vrot.lane.b32.xlu0 %v929, 16
    %v995 = vpop.permute.xlu0 %994
    %996 = vrot.lane.b32.xlu0 %v934, 16
    %v997 = vpop.permute.xlu0 %996
    %998 = vrot.lane.b32.xlu0 %v937, 16
    %v999 = vpop.permute.xlu0 %998
    %1000 = vrot.lane.b32.xlu0 %v942, 16
    %v1001 = vpop.permute.xlu0 %1000
    %1002 = vrot.lane.b32.xlu0 %v945, 16
    %v1003 = vpop.permute.xlu0 %1002
    %1004 = vrot.lane.b32.xlu0 %v950, 16
    %v1005 = vpop.permute.xlu0 %1004
    %1006 = vrot.lane.b32.xlu0 %v953, 16
    %v1007 = vpop.permute.xlu0 %1006
    %1008 = vrot.lane.b32.xlu0 %v958, 16
    %v1009 = vpop.permute.xlu0 %1008
    %1010 = vrot.lane.b32.xlu0 %v961, 16
    %v1011 = vpop.permute.xlu0 %1010
    %v1028 = vadd.f32 %v521, %v981
    %v1029 = vadd.f32 %v522, %v983
    %v1030 = vadd.f32 %v523, %v985
    %v1031 = vadd.f32 %v524, %v987
    %v1032 = vadd.f32 %v525, %v989
    %v1033 = vadd.f32 %v526, %v991
    %v1034 = vadd.f32 %v527, %v993
    %v1035 = vadd.f32 %v528, %v995
    %v1036 = vadd.f32 %v529, %v997
    %v1037 = vadd.f32 %v530, %v999
    %v1038 = vadd.f32 %v531, %v1001
    %v1039 = vadd.f32 %v532, %v1003
    %v1040 = vadd.f32 %v533, %v1005
    %v1041 = vadd.f32 %v534, %v1007
    %v1042 = vadd.f32 %v535, %v1009
    %v1043 = vadd.f32 %v536, %v1011
    %s1044 = scalar_lea.vmem %s5, 8
    %v1045 = vld [vmem:[%s1044] sm:$0xff]
    %vm1046 = vcmask 261248
    %v1047 = vsel %vm1046, %v1028, 0.0
    %v1048 = vsel %vm1046, %v1029, 0.0
    %v1049 = vadd.f32 %v1047, %v1048
    %v1050 = vsel %vm1046, %v1030, 0.0
    %v1051 = vadd.f32 %v1049, %v1050
    %v1052 = vsel %vm1046, %v1031, 0.0
    %v1053 = vadd.f32 %v1051, %v1052
    %v1054 = vsel %vm1046, %v1032, 0.0
    %v1055 = vadd.f32 %v1053, %v1054
    %v1056 = vsel %vm1046, %v1033, 0.0
    %v1057 = vadd.f32 %v1055, %v1056
    %v1058 = vsel %vm1046, %v1034, 0.0
    %v1059 = vadd.f32 %v1057, %v1058
    %v1060 = vsel %vm1046, %v1035, 0.0
    %v1061 = vadd.f32 %v1059, %v1060
    %v1062 = vsel %vm1046, %v1036, 0.0
    %v1063 = vadd.f32 %v1061, %v1062
    %v1064 = vsel %vm1046, %v1037, 0.0
    %v1065 = vadd.f32 %v1063, %v1064
    %v1066 = vsel %vm1046, %v1038, 0.0
    %v1067 = vadd.f32 %v1065, %v1066
    %v1068 = vsel %vm1046, %v1039, 0.0
    %v1069 = vadd.f32 %v1067, %v1068
    %v1070 = vsel %vm1046, %v1040, 0.0
    %v1071 = vadd.f32 %v1069, %v1070
    %v1072 = vsel %vm1046, %v1041, 0.0
    %v1073 = vadd.f32 %v1071, %v1072
    %v1074 = vsel %vm1046, %v1042, 0.0
    %v1075 = vadd.f32 %v1073, %v1074
    %vm1076 = vcmask 257152
    %v1077 = vsel %vm1076, %v1043, 0.0
    %v1078 = vadd.f32 %v1075, %v1077
    %v1079 = vrot.slane %v1078, 4
    %v1080 = vadd.f32 %v1078, %v1079
    %v1081 = vrot.slane %v1080, 2
    %v1082 = vadd.f32 %v1080, %v1081
    %v1083 = vrot.slane %v1082, 1
    %v1084 = vadd.f32 %v1082, %v1083
    %v1085 = vrcp.pop 124.0
    %v1086 = vmul.f32 %v1084, %v1085
    %v1087 = vmul.f32 %v1028, %v1028
    %v1088 = vmul.f32 %v1029, %v1029
    %v1089 = vmul.f32 %v1030, %v1030
    %v1090 = vmul.f32 %v1031, %v1031
    %v1091 = vmul.f32 %v1032, %v1032
    %v1092 = vmul.f32 %v1033, %v1033
    %v1093 = vmul.f32 %v1034, %v1034
    %v1094 = vmul.f32 %v1035, %v1035
    %v1095 = vmul.f32 %v1036, %v1036
    %v1096 = vmul.f32 %v1037, %v1037
    %v1097 = vmul.f32 %v1038, %v1038
    %v1098 = vmul.f32 %v1039, %v1039
    %v1099 = vmul.f32 %v1040, %v1040
    %v1100 = vmul.f32 %v1041, %v1041
    %v1101 = vmul.f32 %v1042, %v1042
    %v1102 = vmul.f32 %v1043, %v1043
    %v1103 = vsel %vm1046, %v1087, 0.0
    %v1104 = vsel %vm1046, %v1088, 0.0
    %v1105 = vadd.f32 %v1103, %v1104
    %v1106 = vsel %vm1046, %v1089, 0.0
    %v1107 = vadd.f32 %v1105, %v1106
    %v1108 = vsel %vm1046, %v1090, 0.0
    %v1109 = vadd.f32 %v1107, %v1108
    %v1110 = vsel %vm1046, %v1091, 0.0
    %v1111 = vadd.f32 %v1109, %v1110
    %v1112 = vsel %vm1046, %v1092, 0.0
    %v1113 = vadd.f32 %v1111, %v1112
    %v1114 = vsel %vm1046, %v1093, 0.0
    %v1115 = vadd.f32 %v1113, %v1114
    %v1116 = vsel %vm1046, %v1094, 0.0
    %v1117 = vadd.f32 %v1115, %v1116
    %v1118 = vsel %vm1046, %v1095, 0.0
    %v1119 = vadd.f32 %v1117, %v1118
    %v1120 = vsel %vm1046, %v1096, 0.0
    %v1121 = vadd.f32 %v1119, %v1120
    %v1122 = vsel %vm1046, %v1097, 0.0
    %v1123 = vadd.f32 %v1121, %v1122
    %v1124 = vsel %vm1046, %v1098, 0.0
    %v1125 = vadd.f32 %v1123, %v1124
    %v1126 = vsel %vm1046, %v1099, 0.0
    %v1127 = vadd.f32 %v1125, %v1126
    %v1128 = vsel %vm1046, %v1100, 0.0
    %v1129 = vadd.f32 %v1127, %v1128
    %v1130 = vsel %vm1046, %v1101, 0.0
    %v1131 = vadd.f32 %v1129, %v1130
    %v1132 = vsel %vm1076, %v1102, 0.0
    %v1133 = vadd.f32 %v1131, %v1132
    %v1134 = vrot.slane %v1133, 4
    %v1135 = vadd.f32 %v1133, %v1134
    %v1136 = vrot.slane %v1135, 2
    %v1137 = vadd.f32 %v1135, %v1136
    %v1138 = vrot.slane %v1137, 1
    %v1139 = vadd.f32 %v1137, %v1138
    %v1140 = vmul.f32 %v1139, %v1085
    %v1141 = vmul.f32 %v1086, %v1086
    %v1142 = vsub.f32 %v1140, %v1141
    %v1143 = vadd.f32 %v1142, 1e-05
    %v1144 = vrsqrt.pop %v1143
    %1146 = vrot.lane.b32.xlu0 %v1045, 16
    %v1147 = vpop.permute.xlu0 %1146
    %v1149 = vmul.f32 %v1144, %v1147
    %v1150 = vlaneseq
    %v1151 = vshrl.u32 %v1150, 7
    %v1152 = vsub.s32 0, %v1151
    %v1153 = vrot.slane %v1149, %v1152
    %v1154 = vmul.f32 %v1028, %v1153
    %v1155 = vmul.f32 %v1029, %v1153
    %v1156 = vmul.f32 %v1030, %v1153
    %v1157 = vmul.f32 %v1031, %v1153
    %v1158 = vmul.f32 %v1032, %v1153
    %v1159 = vmul.f32 %v1033, %v1153
    %v1160 = vmul.f32 %v1034, %v1153
    %v1161 = vmul.f32 %v1035, %v1153
    %v1162 = vmul.f32 %v1036, %v1153
    %v1163 = vmul.f32 %v1037, %v1153
    %v1164 = vmul.f32 %v1038, %v1153
    %v1165 = vmul.f32 %v1039, %v1153
    %v1166 = vmul.f32 %v1040, %v1153
    %v1167 = vmul.f32 %v1041, %v1153
    %v1168 = vmul.f32 %v1042, %v1153
    %v1169 = vmul.f32 %v1043, %v1153
    %v1170 = vmul.f32 %v1086, %v1149
    %v1172 = vrot.slane %v1170, 7
    %1173 = vrot.lane.b32.xlu0 %v1172, 112
    %v1174 = vpop.permute.xlu0 %1173
    %v1176 = vsub.f32 %v1045, %v1174
    %v1177 = vlaneseq
    %v1178 = vshrl.u32 %v1177, 7
    %v1179 = vsub.s32 1, %v1178
    %v1180 = vrot.slane %v1176, %v1179
    %1182 = vrot.lane.b32.xlu0 %v1180, 16
    %v1183 = vpop.permute.xlu0 %1182
    %v1185 = vadd.f32 %v1154, %v1183
    %v1186 = vadd.f32 %v1155, %v1183
    %v1187 = vadd.f32 %v1156, %v1183
    %v1188 = vadd.f32 %v1157, %v1183
    %v1189 = vadd.f32 %v1158, %v1183
    %v1190 = vadd.f32 %v1159, %v1183
    %v1191 = vadd.f32 %v1160, %v1183
    %v1192 = vadd.f32 %v1161, %v1183
    %v1193 = vadd.f32 %v1162, %v1183
    %v1194 = vadd.f32 %v1163, %v1183
    %v1195 = vadd.f32 %v1164, %v1183
    %v1196 = vadd.f32 %v1165, %v1183
    %v1197 = vadd.f32 %v1166, %v1183
    %v1198 = vadd.f32 %v1167, %v1183
    %v1199 = vadd.f32 %v1168, %v1183
    %v1200 = vadd.f32 %v1169, %v1183
    %1216 = vrot.lane.b32.xlu0 %v1185, 112
    %v1217 = vpop.permute.xlu0 %1216
    %1218 = vrot.lane.b32.xlu0 %v1186, 112
    %v1219 = vpop.permute.xlu0 %1218
    %1220 = vrot.lane.b32.xlu0 %v1187, 112
    %v1221 = vpop.permute.xlu0 %1220
    %1222 = vrot.lane.b32.xlu0 %v1188, 112
    %v1223 = vpop.permute.xlu0 %1222
    %1224 = vrot.lane.b32.xlu0 %v1189, 112
    %v1225 = vpop.permute.xlu0 %1224
    %1226 = vrot.lane.b32.xlu0 %v1190, 112
    %v1227 = vpop.permute.xlu0 %1226
    %1228 = vrot.lane.b32.xlu0 %v1191, 112
    %v1229 = vpop.permute.xlu0 %1228
    %1230 = vrot.lane.b32.xlu0 %v1192, 112
    %v1231 = vpop.permute.xlu0 %1230
    %1232 = vrot.lane.b32.xlu0 %v1193, 112
    %v1233 = vpop.permute.xlu0 %1232
    %1234 = vrot.lane.b32.xlu0 %v1194, 112
    %v1235 = vpop.permute.xlu0 %1234
    %1236 = vrot.lane.b32.xlu0 %v1195, 112
    %v1237 = vpop.permute.xlu0 %1236
    %1238 = vrot.lane.b32.xlu0 %v1196, 112
    %v1239 = vpop.permute.xlu0 %1238
    %1240 = vrot.lane.b32.xlu0 %v1197, 112
    %v1241 = vpop.permute.xlu0 %1240
    %1242 = vrot.lane.b32.xlu0 %v1198, 112
    %v1243 = vpop.permute.xlu0 %1242
    %1244 = vrot.lane.b32.xlu0 %v1199, 112
    %v1245 = vpop.permute.xlu0 %1244
    %v1261 = vrot.slane %v1185, 4
    %v1262 = vrot.slane %v1186, 4
    %v1263 = vsel %vm83, %v1261, %v1262
    %v1264 = vrot.slane %v1187, 4
    %v1265 = vsel %vm83, %v1262, %v1264
    %v1266 = vrot.slane %v1188, 4
    %v1267 = vsel %vm83, %v1264, %v1266
    %v1268 = vrot.slane %v1189, 4
    %v1269 = vsel %vm83, %v1266, %v1268
    %v1270 = vrot.slane %v1190, 4
    %v1271 = vsel %vm83, %v1268, %v1270
    %v1272 = vrot.slane %v1191, 4
    %v1273 = vsel %vm83, %v1270, %v1272
    %v1274 = vrot.slane %v1192, 4
    %v1275 = vsel %vm83, %v1272, %v1274
    %v1276 = vrot.slane %v1193, 4
    %v1277 = vsel %vm83, %v1274, %v1276
    %v1278 = vrot.slane %v1194, 4
    %v1279 = vsel %vm83, %v1276, %v1278
    %v1280 = vrot.slane %v1195, 4
    %v1281 = vsel %vm83, %v1278, %v1280
    %v1282 = vrot.slane %v1196, 4
    %v1283 = vsel %vm83, %v1280, %v1282
    %v1284 = vrot.slane %v1197, 4
    %v1285 = vsel %vm83, %v1282, %v1284
    %v1286 = vrot.slane %v1198, 4
    %v1287 = vsel %vm83, %v1284, %v1286
    %v1288 = vrot.slane %v1199, 4
    %v1289 = vsel %vm83, %v1286, %v1288
    %1306 = vrot.lane.b32.xlu0 %v1186, 16
    %v1307 = vpop.permute.xlu0 %1306
    %1308 = vrot.lane.b32.xlu0 %v1187, 16
    %v1309 = vpop.permute.xlu0 %1308
    %1310 = vrot.lane.b32.xlu0 %v1188, 16
    %v1311 = vpop.permute.xlu0 %1310
    %1312 = vrot.lane.b32.xlu0 %v1189, 16
    %v1313 = vpop.permute.xlu0 %1312
    %1314 = vrot.lane.b32.xlu0 %v1190, 16
    %v1315 = vpop.permute.xlu0 %1314
    %1316 = vrot.lane.b32.xlu0 %v1191, 16
    %v1317 = vpop.permute.xlu0 %1316
    %1318 = vrot.lane.b32.xlu0 %v1192, 16
    %v1319 = vpop.permute.xlu0 %1318
    %1320 = vrot.lane.b32.xlu0 %v1193, 16
    %v1321 = vpop.permute.xlu0 %1320
    %1322 = vrot.lane.b32.xlu0 %v1194, 16
    %v1323 = vpop.permute.xlu0 %1322
    %1324 = vrot.lane.b32.xlu0 %v1195, 16
    %v1325 = vpop.permute.xlu0 %1324
    %1326 = vrot.lane.b32.xlu0 %v1196, 16
    %v1327 = vpop.permute.xlu0 %1326
    %1328 = vrot.lane.b32.xlu0 %v1197, 16
    %v1329 = vpop.permute.xlu0 %1328
    %1330 = vrot.lane.b32.xlu0 %v1198, 16
    %v1331 = vpop.permute.xlu0 %1330
    %1332 = vrot.lane.b32.xlu0 %v1199, 16
    %v1333 = vpop.permute.xlu0 %1332
    %1334 = vrot.lane.b32.xlu0 %v1200, 16
    %v1335 = vpop.permute.xlu0 %1334
    %v1351 = vsel %vm185, %v1217, %v1263
    %v1352 = vsel %vm185, %v1219, %v1265
    %v1353 = vsel %vm185, %v1221, %v1267
    %v1354 = vsel %vm185, %v1223, %v1269
    %v1355 = vsel %vm185, %v1225, %v1271
    %v1356 = vsel %vm185, %v1227, %v1273
    %v1357 = vsel %vm185, %v1229, %v1275
    %v1358 = vsel %vm185, %v1231, %v1277
    %v1359 = vsel %vm185, %v1233, %v1279
    %v1360 = vsel %vm185, %v1235, %v1281
    %v1361 = vsel %vm185, %v1237, %v1283
    %v1362 = vsel %vm185, %v1239, %v1285
    %v1363 = vsel %vm185, %v1241, %v1287
    %v1364 = vsel %vm185, %v1243, %v1289
    %v1365 = vsel %vm185, %v1245, %v1288
    %v1366 = vsel %vm520, %v1351, %v1307
    %v1367 = vsel %vm520, %v1352, %v1309
    %v1368 = vsel %vm520, %v1353, %v1311
    %v1369 = vsel %vm520, %v1354, %v1313
    %v1370 = vsel %vm520, %v1355, %v1315
    %v1371 = vsel %vm520, %v1356, %v1317
    %v1372 = vsel %vm520, %v1357, %v1319
    %v1373 = vsel %vm520, %v1358, %v1321
    %v1374 = vsel %vm520, %v1359, %v1323
    %v1375 = vsel %vm520, %v1360, %v1325
    %v1376 = vsel %vm520, %v1361, %v1327
    %v1377 = vsel %vm520, %v1362, %v1329
    %v1378 = vsel %vm520, %v1363, %v1331
    %v1379 = vsel %vm520, %v1364, %v1333
    %v1380 = vsel %vm520, %v1365, %v1335
    %v1381 = vpack.c.bf16 %v1367, %v1366
    %v1382 = vpack.c.bf16 %v1369, %v1368
    %v1383 = vpack.c.bf16 %v1371, %v1370
    %v1384 = vpack.c.bf16 %v1373, %v1372
    %v1385 = vpack.c.bf16 %v1375, %v1374
    %v1386 = vpack.c.bf16 %v1377, %v1376
    %v1387 = vpack.c.bf16 %v1379, %v1378
    %v1388 = vpack.c.bf16 %v1380, %v1380
    %s1389 = scalar_lea.vmem %s2, 24
    %v1390 = vld [vmem:[%s1389] sm:$0xf]
    %v1391 = vld [vmem:[%s1389 + $0x4] sm:$0xf]
    %v1392 = vld [vmem:[%s1389 + $0x8] sm:$0xf]
    %v1393 = vld [vmem:[%s1389 + $0xc] sm:$0xf]
    %v1394 = vld [vmem:[%s1389 + $0x10] sm:$0xf]
    %v1395 = vld [vmem:[%s1389 + $0x14] sm:$0xf]
    %v1396 = vlaneseq
    %v1397 = vshrl.u32 %v1396, 7
    %v1398 = vsub.s32 2, %v1397
    %v1399 = vrot.slane %v1045, %v1398
    %v1406 = vunpack.c.l.b16 %v1390
    %v1407 = vunpack.c.l.b16 %v1391
    %v1408 = vunpack.c.l.b16 %v1392
    %v1409 = vunpack.c.l.b16 %v1393
    %v1410 = vunpack.c.l.b16 %v1394
    %v1411 = vunpack.c.l.b16 %v1395
    %v1412 = vpack.c.b16 %v1407, %v1406
    %v1413 = vpack.c.b16 %v1409, %v1408
    %v1414 = vpack.c.b16 %v1411, %v1410
    %v1419 = vsel %vm573, %v1381, 0
    %v1422 = vsel %vm573, %v1382, 0
    %v1425 = vsel %vm573, %v1383, 0
    %v1428 = vsel %vm573, %v1384, 0
    %v1431 = vsel %vm573, %v1385, 0
    %v1434 = vsel %vm573, %v1386, 0
    %v1437 = vsel %vm573, %v1387, 0
    %v1440 = vsel %vm573, %v1388, 0
    %1442 = vmatprep.subr.bf16.mxu0 0
    %1443 = vmatpush1.bf16.msra.mxu0 %v1412
    %1444 = vmatprep.subr.bf16.mxu0 0
    %1445 = vmatpush1.bf16.msra.mxu0 %v1413
    %1446 = vmatprep.subr.bf16.mxu0 0
    %1447 = vmatpush1.bf16.msra.mxu0 %v1414
    %1448 = vmatprep.subr.bf16.mxu0 0
    %1449 = vmatpush1.bf16.msra.mxu0 0
    %1450 = vmatprep.subr.bf16.mxu0 0
    %1451 = vmatpush1.bf16.msra.mxu0 0
    %1452 = vmatprep.subr.bf16.mxu0 0
    %1453 = vmatpush1.bf16.msra.mxu0 0
    %1454 = vmatprep.subr.bf16.mxu0 0
    %1455 = vmatpush1.bf16.msra.mxu0 0
    %1456 = vmatprep.subr.bf16.mxu0 0
    %1457 = vmatpush1.bf16.msra.mxu0 0
    %1458 = vmatprep.subr.bf16.mxu0 0
    %1459 = vmatpush1.bf16.msra.mxu0 0
    %1460 = vmatprep.subr.bf16.mxu0 0
    %1461 = vmatpush1.bf16.msra.mxu0 0
    %1462 = vmatprep.subr.bf16.mxu0 0
    %1463 = vmatpush1.bf16.msra.mxu0 0
    %1464 = vmatprep.subr.bf16.mxu0 0
    %1465 = vmatpush1.bf16.msra.mxu0 0
    %1466 = vmatprep.subr.bf16.mxu0 0
    %1467 = vmatpush1.bf16.msra.mxu0 0
    %1468 = vmatprep.subr.bf16.mxu0 0
    %1469 = vmatpush1.bf16.msra.mxu0 0
    %1470 = vmatprep.subr.bf16.mxu0 0
    %1471 = vmatpush1.bf16.msra.mxu0 0
    %1472 = vmatprep.subr.bf16.mxu0 0
    %1473 = vmatpush1.bf16.msra.mxu0 0
    %1474 = vmatprep.mubr.bf16.mxu0 0
    %1475 = vmatmul.mubr.bf16.gmra.mrb[0].mxu0 %v1419
    %v1476 = vpop.f32.mrb[0].mxu0
    %v1477 = vadd.f32 %v1399, %v1476
    %v1478 = vpop.f32.mrb[0].mxu0
    %v1479 = vpop.f32.mrb[0].mxu0
    %v1480 = vadd.f32 %v1399, %v1479
    %v1481 = vpop.f32.mrb[0].mxu0
    %1482 = vmatprep.mubr.bf16.mxu0 0
    %1483 = vmatmul.mubr.bf16.gmra.mrb[0].mxu0 %v1422
    %v1484 = vpop.f32.mrb[0].mxu0
    %v1485 = vadd.f32 %v1399, %v1484
    %v1486 = vpop.f32.mrb[0].mxu0
    %v1487 = vpop.f32.mrb[0].mxu0
    %v1488 = vadd.f32 %v1399, %v1487
    %v1489 = vpop.f32.mrb[0].mxu0
    %1490 = vmatprep.mubr.bf16.mxu0 0
    %1491 = vmatmul.mubr.bf16.gmra.mrb[0].mxu0 %v1425
    %v1492 = vpop.f32.mrb[0].mxu0
    %v1493 = vadd.f32 %v1399, %v1492
    %v1494 = vpop.f32.mrb[0].mxu0
    %v1495 = vpop.f32.mrb[0].mxu0
    %v1496 = vadd.f32 %v1399, %v1495
    %v1497 = vpop.f32.mrb[0].mxu0
    %1498 = vmatprep.mubr.bf16.mxu0 0
    %1499 = vmatmul.mubr.bf16.gmra.mrb[0].mxu0 %v1428
    %v1500 = vpop.f32.mrb[0].mxu0
    %v1501 = vadd.f32 %v1399, %v1500
    %v1502 = vpop.f32.mrb[0].mxu0
    %v1503 = vpop.f32.mrb[0].mxu0
    %v1504 = vadd.f32 %v1399, %v1503
    %v1505 = vpop.f32.mrb[0].mxu0
    %1506 = vmatprep.mubr.bf16.mxu0 0
    %1507 = vmatmul.mubr.bf16.gmra.mrb[0].mxu0 %v1431
    %v1508 = vpop.f32.mrb[0].mxu0
    %v1509 = vadd.f32 %v1399, %v1508
    %v1510 = vpop.f32.mrb[0].mxu0
    %v1511 = vpop.f32.mrb[0].mxu0
    %v1512 = vadd.f32 %v1399, %v1511
    %v1513 = vpop.f32.mrb[0].mxu0
    %1514 = vmatprep.mubr.bf16.mxu0 0
    %1515 = vmatmul.mubr.bf16.gmra.mrb[0].mxu0 %v1434
    %v1516 = vpop.f32.mrb[0].mxu0
    %v1517 = vadd.f32 %v1399, %v1516
    %v1518 = vpop.f32.mrb[0].mxu0
    %v1519 = vpop.f32.mrb[0].mxu0
    %v1520 = vadd.f32 %v1399, %v1519
    %v1521 = vpop.f32.mrb[0].mxu0
    %1522 = vmatprep.mubr.bf16.mxu0 0
    %1523 = vmatmul.mubr.bf16.gmra.mrb[0].mxu0 %v1437
    %v1524 = vpop.f32.mrb[0].mxu0
    %v1525 = vadd.f32 %v1399, %v1524
    %v1526 = vpop.f32.mrb[0].mxu0
    %v1527 = vpop.f32.mrb[0].mxu0
    %v1528 = vadd.f32 %v1399, %v1527
    %v1529 = vpop.f32.mrb[0].mxu0
    %1530 = vmatprep.mubr.bf16.mxu0 0
    %1531 = vmatmul.mubr.bf16.gmra.mrb[0].mxu0 %v1440
    %v1532 = vpop.f32.mrb[0].mxu0
    %v1533 = vadd.f32 %v1399, %v1532
    %v1534 = vpop.f32.mrb[0].mxu0
    %v1535 = vpop.f32.mrb[0].mxu0
    %v1536 = vpop.f32.mrb[0].mxu0
    %1537 = vdwg.mxu0
    %v1538 = vtanh.pop %v1477
    %v1539 = vtanh.pop %v1480
    %v1540 = vtanh.pop %v1485
    %v1541 = vtanh.pop %v1488
    %v1542 = vtanh.pop %v1493
    %v1543 = vtanh.pop %v1496
    %v1544 = vtanh.pop %v1501
    %v1545 = vtanh.pop %v1504
    %v1546 = vtanh.pop %v1509
    %v1547 = vtanh.pop %v1512
    %v1548 = vtanh.pop %v1517
    %v1549 = vtanh.pop %v1520
    %v1550 = vtanh.pop %v1525
    %v1551 = vtanh.pop %v1528
    %v1552 = vtanh.pop %v1533
    %v1553 = vmul.f32 %v1538, 0.5
    %v1554 = vmul.f32 %v1539, 0.5
    %v1555 = vmul.f32 %v1540, 0.5
    %v1556 = vmul.f32 %v1541, 0.5
    %v1557 = vmul.f32 %v1542, 0.5
    %v1558 = vmul.f32 %v1543, 0.5
    %v1559 = vmul.f32 %v1544, 0.5
    %v1560 = vmul.f32 %v1545, 0.5
    %v1561 = vmul.f32 %v1546, 0.5
    %v1562 = vmul.f32 %v1547, 0.5
    %v1563 = vmul.f32 %v1548, 0.5
    %v1564 = vmul.f32 %v1549, 0.5
    %v1565 = vmul.f32 %v1550, 0.5
    %v1566 = vmul.f32 %v1551, 0.5
    %v1567 = vmul.f32 %v1552, 0.5
    %v1568 = vadd.f32 %v1553, 0.5
    %v1569 = vadd.f32 %v1554, 0.5
    %v1570 = vadd.f32 %v1555, 0.5
    %v1571 = vadd.f32 %v1556, 0.5
    %v1572 = vadd.f32 %v1557, 0.5
    %v1573 = vadd.f32 %v1558, 0.5
    %v1574 = vadd.f32 %v1559, 0.5
    %v1575 = vadd.f32 %v1560, 0.5
    %v1576 = vadd.f32 %v1561, 0.5
    %v1577 = vadd.f32 %v1562, 0.5
    %v1578 = vadd.f32 %v1563, 0.5
    %v1579 = vadd.f32 %v1564, 0.5
    %v1580 = vadd.f32 %v1565, 0.5
    %v1581 = vadd.f32 %v1566, 0.5
    %v1582 = vadd.f32 %v1567, 0.5
    %1598 = vrot.lane.b32.xlu0 %v1568, 112
    %v1599 = vpop.permute.xlu0 %1598
    %1600 = vrot.lane.b32.xlu0 %v1569, 112
    %v1601 = vpop.permute.xlu0 %1600
    %1602 = vrot.lane.b32.xlu0 %v1570, 112
    %v1603 = vpop.permute.xlu0 %1602
    %1604 = vrot.lane.b32.xlu0 %v1571, 112
    %v1605 = vpop.permute.xlu0 %1604
    %1606 = vrot.lane.b32.xlu0 %v1572, 112
    %v1607 = vpop.permute.xlu0 %1606
    %1608 = vrot.lane.b32.xlu0 %v1573, 112
    %v1609 = vpop.permute.xlu0 %1608
    %1610 = vrot.lane.b32.xlu0 %v1574, 112
    %v1611 = vpop.permute.xlu0 %1610
    %1612 = vrot.lane.b32.xlu0 %v1575, 112
    %v1613 = vpop.permute.xlu0 %1612
    %1614 = vrot.lane.b32.xlu0 %v1576, 112
    %v1615 = vpop.permute.xlu0 %1614
    %1616 = vrot.lane.b32.xlu0 %v1577, 112
    %v1617 = vpop.permute.xlu0 %1616
    %1618 = vrot.lane.b32.xlu0 %v1578, 112
    %v1619 = vpop.permute.xlu0 %1618
    %1620 = vrot.lane.b32.xlu0 %v1579, 112
    %v1621 = vpop.permute.xlu0 %1620
    %1622 = vrot.lane.b32.xlu0 %v1580, 112
    %v1623 = vpop.permute.xlu0 %1622
    %1624 = vrot.lane.b32.xlu0 %v1581, 112
    %v1625 = vpop.permute.xlu0 %1624
    %1626 = vrot.lane.b32.xlu0 %v1582, 112
    %v1627 = vpop.permute.xlu0 %1626
    %v1643 = vmul.f32 %v1538, %v1599
    %v1644 = vmul.f32 %v1539, %v1601
    %v1645 = vmul.f32 %v1540, %v1603
    %v1646 = vmul.f32 %v1541, %v1605
    %v1647 = vmul.f32 %v1542, %v1607
    %v1648 = vmul.f32 %v1543, %v1609
    %v1649 = vmul.f32 %v1544, %v1611
    %v1650 = vmul.f32 %v1545, %v1613
    %v1651 = vmul.f32 %v1546, %v1615
    %v1652 = vmul.f32 %v1547, %v1617
    %v1653 = vmul.f32 %v1548, %v1619
    %v1654 = vmul.f32 %v1549, %v1621
    %v1655 = vmul.f32 %v1550, %v1623
    %v1656 = vmul.f32 %v1551, %v1625
    %v1657 = vmul.f32 %v1552, %v1627
    %v1658 = vpack.c.bf16 %v1644, %v1643
    %v1659 = vpack.c.bf16 %v1646, %v1645
    %v1660 = vpack.c.bf16 %v1648, %v1647
    %v1661 = vpack.c.bf16 %v1650, %v1649
    %v1662 = vpack.c.bf16 %v1652, %v1651
    %v1663 = vpack.c.bf16 %v1654, %v1653
    %v1664 = vpack.c.bf16 %v1656, %v1655
    %v1665 = vpack.c.bf16 %v1657, %v1657
    %s1666 = scalar_lea.vmem %s3, 8
    %v1667 = vld [vmem:[%s1666] sm:$0xf]
    %v1668 = vld [vmem:[%s1666 + $0x4] sm:$0xf]
    %v1669 = vlaneseq
    %v1670 = vshrl.u32 %v1669, 7
    %v1671 = vsub.s32 3, %v1670
    %v1672 = vrot.slane %v1045, %v1671
    %v1675 = vunpack.c.l.b16 %v1667
    %v1676 = vunpack.c.l.b16 %v1668
    %v1677 = vpack.c.b16 %v1676, %v1675
    %v1680 = vsel %vm185, %v1658, 0
    %v1683 = vsel %vm185, %v1659, 0
    %v1686 = vsel %vm185, %v1660, 0
    %v1689 = vsel %vm185, %v1661, 0
    %v1692 = vsel %vm185, %v1662, 0
    %v1695 = vsel %vm185, %v1663, 0
    %v1698 = vsel %vm185, %v1664, 0
    %v1701 = vsel %vm185, %v1665, 0
    %1703 = vmatprep.subr.bf16.mxu0 0
    %1704 = vmatpush1.bf16.msra.mxu0 %v1677
    %1705 = vmatprep.subr.bf16.mxu0 0
    %1706 = vmatpush1.bf16.msra.mxu0 0
    %1707 = vmatprep.subr.bf16.mxu0 0
    %1708 = vmatpush1.bf16.msra.mxu0 0
    %1709 = vmatprep.subr.bf16.mxu0 0
    %1710 = vmatpush1.bf16.msra.mxu0 0
    %1711 = vmatprep.subr.bf16.mxu0 0
    %1712 = vmatpush1.bf16.msra.mxu0 0
    %1713 = vmatprep.subr.bf16.mxu0 0
    %1714 = vmatpush1.bf16.msra.mxu0 0
    %1715 = vmatprep.subr.bf16.mxu0 0
    %1716 = vmatpush1.bf16.msra.mxu0 0
    %1717 = vmatprep.subr.bf16.mxu0 0
    %1718 = vmatpush1.bf16.msra.mxu0 0
    %1719 = vmatprep.subr.bf16.mxu0 0
    %1720 = vmatpush1.bf16.msra.mxu0 0
    %1721 = vmatprep.subr.bf16.mxu0 0
    %1722 = vmatpush1.bf16.msra.mxu0 0
    %1723 = vmatprep.subr.bf16.mxu0 0
    %1724 = vmatpush1.bf16.msra.mxu0 0
    %1725 = vmatprep.subr.bf16.mxu0 0
    %1726 = vmatpush1.bf16.msra.mxu0 0
    %1727 = vmatprep.subr.bf16.mxu0 0
    %1728 = vmatpush1.bf16.msra.mxu0 0
    %1729 = vmatprep.subr.bf16.mxu0 0
    %1730 = vmatpush1.bf16.msra.mxu0 0
    %1731 = vmatprep.subr.bf16.mxu0 0
    %1732 = vmatpush1.bf16.msra.mxu0 0
    %1733 = vmatprep.subr.bf16.mxu0 0
    %1734 = vmatpush1.bf16.msra.mxu0 0
    %1735 = vmatprep.mubr.bf16.mxu0 0
    %1736 = vmatmul.mubr.bf16.gmra.mrb[0].mxu0 %v1680
    %v1737 = vpop.f32.mrb[0].mxu0
    %v1738 = vadd.f32 %v1672, %v1737
    %v1739 = vpop.f32.mrb[0].mxu0
    %v1740 = vpop.f32.mrb[0].mxu0
    %v1741 = vadd.f32 %v1672, %v1740
    %v1742 = vpop.f32.mrb[0].mxu0
    %1743 = vmatprep.mubr.bf16.mxu0 0
    %1744 = vmatmul.mubr.bf16.gmra.mrb[0].mxu0 %v1683
    %v1745 = vpop.f32.mrb[0].mxu0
    %v1746 = vadd.f32 %v1672, %v1745
    %v1747 = vpop.f32.mrb[0].mxu0
    %v1748 = vpop.f32.mrb[0].mxu0
    %v1749 = vadd.f32 %v1672, %v1748
    %v1750 = vpop.f32.mrb[0].mxu0
    %1751 = vmatprep.mubr.bf16.mxu0 0
    %1752 = vmatmul.mubr.bf16.gmra.mrb[0].mxu0 %v1686
    %v1753 = vpop.f32.mrb[0].mxu0
    %v1754 = vadd.f32 %v1672, %v1753
    %v1755 = vpop.f32.mrb[0].mxu0
    %v1756 = vpop.f32.mrb[0].mxu0
    %v1757 = vadd.f32 %v1672, %v1756
    %v1758 = vpop.f32.mrb[0].mxu0
    %1759 = vmatprep.mubr.bf16.mxu0 0
    %1760 = vmatmul.mubr.bf16.gmra.mrb[0].mxu0 %v1689
    %v1761 = vpop.f32.mrb[0].mxu0
    %v1762 = vadd.f32 %v1672, %v1761
    %v1763 = vpop.f32.mrb[0].mxu0
    %v1764 = vpop.f32.mrb[0].mxu0
    %v1765 = vadd.f32 %v1672, %v1764
    %v1766 = vpop.f32.mrb[0].mxu0
    %1767 = vmatprep.mubr.bf16.mxu0 0
    %1768 = vmatmul.mubr.bf16.gmra.mrb[0].mxu0 %v1692
    %v1769 = vpop.f32.mrb[0].mxu0
    %v1770 = vadd.f32 %v1672, %v1769
    %v1771 = vpop.f32.mrb[0].mxu0
    %v1772 = vpop.f32.mrb[0].mxu0
    %v1773 = vadd.f32 %v1672, %v1772
    %v1774 = vpop.f32.mrb[0].mxu0
    %1775 = vmatprep.mubr.bf16.mxu0 0
    %1776 = vmatmul.mubr.bf16.gmra.mrb[0].mxu0 %v1695
    %v1777 = vpop.f32.mrb[0].mxu0
    %v1778 = vadd.f32 %v1672, %v1777
    %v1779 = vpop.f32.mrb[0].mxu0
    %v1780 = vpop.f32.mrb[0].mxu0
    %v1781 = vadd.f32 %v1672, %v1780
    %v1782 = vpop.f32.mrb[0].mxu0
    %1783 = vmatprep.mubr.bf16.mxu0 0
    %1784 = vmatmul.mubr.bf16.gmra.mrb[0].mxu0 %v1698
    %v1785 = vpop.f32.mrb[0].mxu0
    %v1786 = vadd.f32 %v1672, %v1785
    %v1787 = vpop.f32.mrb[0].mxu0
    %v1788 = vpop.f32.mrb[0].mxu0
    %v1789 = vadd.f32 %v1672, %v1788
    %v1790 = vpop.f32.mrb[0].mxu0
    %1791 = vmatprep.mubr.bf16.mxu0 0
    %1792 = vmatmul.mubr.bf16.gmra.mrb[0].mxu0 %v1701
    %v1793 = vpop.f32.mrb[0].mxu0
    %v1794 = vadd.f32 %v1672, %v1793
    %v1795 = vpop.f32.mrb[0].mxu0
    %v1796 = vpop.f32.mrb[0].mxu0
    %v1797 = vpop.f32.mrb[0].mxu0
    %1798 = vdwg.mxu0
    %1814 = vrot.lane.b32.xlu0 %v1738, 16
    %v1815 = vpop.permute.xlu0 %1814
    %1816 = vrot.lane.b32.xlu0 %v1741, 16
    %v1817 = vpop.permute.xlu0 %1816
    %1818 = vrot.lane.b32.xlu0 %v1746, 16
    %v1819 = vpop.permute.xlu0 %1818
    %1820 = vrot.lane.b32.xlu0 %v1749, 16
    %v1821 = vpop.permute.xlu0 %1820
    %1822 = vrot.lane.b32.xlu0 %v1754, 16
    %v1823 = vpop.permute.xlu0 %1822
    %1824 = vrot.lane.b32.xlu0 %v1757, 16
    %v1825 = vpop.permute.xlu0 %1824
    %1826 = vrot.lane.b32.xlu0 %v1762, 16
    %v1827 = vpop.permute.xlu0 %1826
    %1828 = vrot.lane.b32.xlu0 %v1765, 16
    %v1829 = vpop.permute.xlu0 %1828
    %1830 = vrot.lane.b32.xlu0 %v1770, 16
    %v1831 = vpop.permute.xlu0 %1830
    %1832 = vrot.lane.b32.xlu0 %v1773, 16
    %v1833 = vpop.permute.xlu0 %1832
    %1834 = vrot.lane.b32.xlu0 %v1778, 16
    %v1835 = vpop.permute.xlu0 %1834
    %1836 = vrot.lane.b32.xlu0 %v1781, 16
    %v1837 = vpop.permute.xlu0 %1836
    %1838 = vrot.lane.b32.xlu0 %v1786, 16
    %v1839 = vpop.permute.xlu0 %1838
    %1840 = vrot.lane.b32.xlu0 %v1789, 16
    %v1841 = vpop.permute.xlu0 %1840
    %1842 = vrot.lane.b32.xlu0 %v1794, 16
    %v1843 = vpop.permute.xlu0 %1842
    %v1859 = vadd.f32 %v1366, %v1815
    %v1860 = vadd.f32 %v1367, %v1817
    %v1861 = vadd.f32 %v1368, %v1819
    %v1862 = vadd.f32 %v1369, %v1821
    %v1863 = vadd.f32 %v1370, %v1823
    %v1864 = vadd.f32 %v1371, %v1825
    %v1865 = vadd.f32 %v1372, %v1827
    %v1866 = vadd.f32 %v1373, %v1829
    %v1867 = vadd.f32 %v1374, %v1831
    %v1868 = vadd.f32 %v1375, %v1833
    %v1869 = vadd.f32 %v1376, %v1835
    %v1870 = vadd.f32 %v1377, %v1837
    %v1871 = vadd.f32 %v1378, %v1839
    %v1872 = vadd.f32 %v1379, %v1841
    %v1873 = vadd.f32 %v1380, %v1843
    %v1874 = vrot.slane %v1746, 4
    %v1875 = vrot.slane %v1749, 4
    %v1876 = vsel %vm83, %v1874, %v1875
    %v1877 = vrot.slane %v1754, 4
    %v1878 = vsel %vm83, %v1875, %v1877
    %v1879 = vrot.slane %v1757, 4
    %v1880 = vsel %vm83, %v1877, %v1879
    %v1881 = vrot.slane %v1762, 4
    %v1882 = vsel %vm83, %v1879, %v1881
    %v1883 = vrot.slane %v1765, 4
    %v1884 = vsel %vm83, %v1881, %v1883
    %v1885 = vrot.slane %v1770, 4
    %v1886 = vsel %vm83, %v1883, %v1885
    %v1887 = vrot.slane %v1773, 4
    %v1888 = vsel %vm83, %v1885, %v1887
    %v1889 = vrot.slane %v1778, 4
    %v1890 = vsel %vm83, %v1887, %v1889
    %v1891 = vrot.slane %v1781, 4
    %v1892 = vsel %vm83, %v1889, %v1891
    %v1893 = vrot.slane %v1786, 4
    %v1894 = vsel %vm83, %v1891, %v1893
    %v1905 = vadd.f32 %v913, %v1876
    %v1906 = vadd.f32 %v918, %v1878
    %v1907 = vadd.f32 %v921, %v1880
    %v1908 = vadd.f32 %v926, %v1882
    %v1909 = vadd.f32 %v929, %v1884
    %v1910 = vadd.f32 %v934, %v1886
    %v1911 = vadd.f32 %v937, %v1888
    %v1912 = vadd.f32 %v942, %v1890
    %v1913 = vadd.f32 %v945, %v1892
    %v1914 = vadd.f32 %v950, %v1894
    %s1915 = scalar_lea.vmem %s5, 16
    %v1916 = vld [vmem:[%s1915] sm:$0xff]
    %v1917 = vsel %vm1046, %v1859, 0.0
    %v1918 = vsel %vm1046, %v1860, 0.0
    %v1919 = vadd.f32 %v1917, %v1918
    %v1920 = vsel %vm1046, %v1861, 0.0
    %v1921 = vadd.f32 %v1919, %v1920
    %v1922 = vsel %vm1046, %v1862, 0.0
    %v1923 = vadd.f32 %v1921, %v1922
    %v1924 = vsel %vm1046, %v1863, 0.0
    %v1925 = vadd.f32 %v1923, %v1924
    %v1926 = vsel %vm1046, %v1864, 0.0
    %v1927 = vadd.f32 %v1925, %v1926
    %v1928 = vsel %vm1046, %v1865, 0.0
    %v1929 = vadd.f32 %v1927, %v1928
    %v1930 = vsel %vm1046, %v1866, 0.0
    %v1931 = vadd.f32 %v1929, %v1930
    %v1932 = vsel %vm1046, %v1867, 0.0
    %v1933 = vadd.f32 %v1931, %v1932
    %v1934 = vsel %vm1046, %v1868, 0.0
    %v1935 = vadd.f32 %v1933, %v1934
    %v1936 = vsel %vm1046, %v1869, 0.0
    %v1937 = vadd.f32 %v1935, %v1936
    %v1938 = vsel %vm1046, %v1870, 0.0
    %v1939 = vadd.f32 %v1937, %v1938
    %v1940 = vsel %vm1046, %v1871, 0.0
    %v1941 = vadd.f32 %v1939, %v1940
    %v1942 = vsel %vm1046, %v1872, 0.0
    %v1943 = vadd.f32 %v1941, %v1942
    %v1944 = vsel %vm1076, %v1873, 0.0
    %v1945 = vadd.f32 %v1943, %v1944
    %v1946 = vrot.slane %v1945, 4
    %v1947 = vadd.f32 %v1945, %v1946
    %v1948 = vrot.slane %v1947, 2
    %v1949 = vadd.f32 %v1947, %v1948
    %v1950 = vrot.slane %v1949, 1
    %v1951 = vadd.f32 %v1949, %v1950
    %v1952 = vrcp.pop 116.0
    %v1953 = vmul.f32 %v1951, %v1952
    %v1954 = vmul.f32 %v1859, %v1859
    %v1955 = vmul.f32 %v1860, %v1860
    %v1956 = vmul.f32 %v1861, %v1861
    %v1957 = vmul.f32 %v1862, %v1862
    %v1958 = vmul.f32 %v1863, %v1863
    %v1959 = vmul.f32 %v1864, %v1864
    %v1960 = vmul.f32 %v1865, %v1865
    %v1961 = vmul.f32 %v1866, %v1866
    %v1962 = vmul.f32 %v1867, %v1867
    %v1963 = vmul.f32 %v1868, %v1868
    %v1964 = vmul.f32 %v1869, %v1869
    %v1965 = vmul.f32 %v1870, %v1870
    %v1966 = vmul.f32 %v1871, %v1871
    %v1967 = vmul.f32 %v1872, %v1872
    %v1968 = vmul.f32 %v1873, %v1873
    %v1969 = vsel %vm1046, %v1954, 0.0
    %v1970 = vsel %vm1046, %v1955, 0.0
    %v1971 = vadd.f32 %v1969, %v1970
    %v1972 = vsel %vm1046, %v1956, 0.0
    %v1973 = vadd.f32 %v1971, %v1972
    %v1974 = vsel %vm1046, %v1957, 0.0
    %v1975 = vadd.f32 %v1973, %v1974
    %v1976 = vsel %vm1046, %v1958, 0.0
    %v1977 = vadd.f32 %v1975, %v1976
    %v1978 = vsel %vm1046, %v1959, 0.0
    %v1979 = vadd.f32 %v1977, %v1978
    %v1980 = vsel %vm1046, %v1960, 0.0
    %v1981 = vadd.f32 %v1979, %v1980
    %v1982 = vsel %vm1046, %v1961, 0.0
    %v1983 = vadd.f32 %v1981, %v1982
    %v1984 = vsel %vm1046, %v1962, 0.0
    %v1985 = vadd.f32 %v1983, %v1984
    %v1986 = vsel %vm1046, %v1963, 0.0
    %v1987 = vadd.f32 %v1985, %v1986
    %v1988 = vsel %vm1046, %v1964, 0.0
    %v1989 = vadd.f32 %v1987, %v1988
    %v1990 = vsel %vm1046, %v1965, 0.0
    %v1991 = vadd.f32 %v1989, %v1990
    %v1992 = vsel %vm1046, %v1966, 0.0
    %v1993 = vadd.f32 %v1991, %v1992
    %v1994 = vsel %vm1046, %v1967, 0.0
    %v1995 = vadd.f32 %v1993, %v1994
    %v1996 = vsel %vm1076, %v1968, 0.0
    %v1997 = vadd.f32 %v1995, %v1996
    %v1998 = vrot.slane %v1997, 4
    %v1999 = vadd.f32 %v1997, %v1998
    %v2000 = vrot.slane %v1999, 2
    %v2001 = vadd.f32 %v1999, %v2000
    %v2002 = vrot.slane %v2001, 1
    %v2003 = vadd.f32 %v2001, %v2002
    %v2004 = vmul.f32 %v2003, %v1952
    %v2005 = vmul.f32 %v1953, %v1953
    %v2006 = vsub.f32 %v2004, %v2005
    %v2007 = vadd.f32 %v2006, 1e-05
    %v2008 = vrsqrt.pop %v2007
    %2010 = vrot.lane.b32.xlu0 %v1916, 16
    %v2011 = vpop.permute.xlu0 %2010
    %v2013 = vmul.f32 %v2008, %v2011
    %v2014 = vlaneseq
    %v2015 = vshrl.u32 %v2014, 7
    %v2016 = vsub.s32 0, %v2015
    %v2017 = vrot.slane %v2013, %v2016
    %v2018 = vmul.f32 %v1859, %v2017
    %v2019 = vmul.f32 %v1860, %v2017
    %v2020 = vmul.f32 %v1861, %v2017
    %v2021 = vmul.f32 %v1862, %v2017
    %v2022 = vmul.f32 %v1863, %v2017
    %v2023 = vmul.f32 %v1864, %v2017
    %v2024 = vmul.f32 %v1865, %v2017
    %v2025 = vmul.f32 %v1866, %v2017
    %v2026 = vmul.f32 %v1867, %v2017
    %v2027 = vmul.f32 %v1868, %v2017
    %v2028 = vmul.f32 %v1869, %v2017
    %v2029 = vmul.f32 %v1870, %v2017
    %v2030 = vmul.f32 %v1871, %v2017
    %v2031 = vmul.f32 %v1872, %v2017
    %v2032 = vmul.f32 %v1873, %v2017
    %v2033 = vmul.f32 %v1953, %v2013
    %v2035 = vrot.slane %v2033, 7
    %2036 = vrot.lane.b32.xlu0 %v2035, 112
    %v2037 = vpop.permute.xlu0 %2036
    %v2039 = vsub.f32 %v1916, %v2037
    %v2040 = vlaneseq
    %v2041 = vshrl.u32 %v2040, 7
    %v2042 = vsub.s32 1, %v2041
    %v2043 = vrot.slane %v2039, %v2042
    %2045 = vrot.lane.b32.xlu0 %v2043, 16
    %v2046 = vpop.permute.xlu0 %2045
    %v2048 = vadd.f32 %v2018, %v2046
    %v2049 = vadd.f32 %v2019, %v2046
    %v2050 = vadd.f32 %v2020, %v2046
    %v2051 = vadd.f32 %v2021, %v2046
    %v2052 = vadd.f32 %v2022, %v2046
    %v2053 = vadd.f32 %v2023, %v2046
    %v2054 = vadd.f32 %v2024, %v2046
    %v2055 = vadd.f32 %v2025, %v2046
    %v2056 = vadd.f32 %v2026, %v2046
    %v2057 = vadd.f32 %v2027, %v2046
    %v2058 = vadd.f32 %v2028, %v2046
    %v2059 = vadd.f32 %v2029, %v2046
    %v2060 = vadd.f32 %v2030, %v2046
    %v2061 = vadd.f32 %v2031, %v2046
    %v2062 = vadd.f32 %v2032, %v2046
    %2076 = vrot.lane.b32.xlu0 %v2048, 112
    %v2077 = vpop.permute.xlu0 %2076
    %2078 = vrot.lane.b32.xlu0 %v2049, 112
    %v2079 = vpop.permute.xlu0 %2078
    %2080 = vrot.lane.b32.xlu0 %v2050, 112
    %v2081 = vpop.permute.xlu0 %2080
    %2082 = vrot.lane.b32.xlu0 %v2051, 112
    %v2083 = vpop.permute.xlu0 %2082
    %2084 = vrot.lane.b32.xlu0 %v2052, 112
    %v2085 = vpop.permute.xlu0 %2084
    %2086 = vrot.lane.b32.xlu0 %v2053, 112
    %v2087 = vpop.permute.xlu0 %2086
    %2088 = vrot.lane.b32.xlu0 %v2054, 112
    %v2089 = vpop.permute.xlu0 %2088
    %2090 = vrot.lane.b32.xlu0 %v2055, 112
    %v2091 = vpop.permute.xlu0 %2090
    %2092 = vrot.lane.b32.xlu0 %v2056, 112
    %v2093 = vpop.permute.xlu0 %2092
    %2094 = vrot.lane.b32.xlu0 %v2057, 112
    %v2095 = vpop.permute.xlu0 %2094
    %2096 = vrot.lane.b32.xlu0 %v2058, 112
    %v2097 = vpop.permute.xlu0 %2096
    %2098 = vrot.lane.b32.xlu0 %v2059, 112
    %v2099 = vpop.permute.xlu0 %2098
    %2100 = vrot.lane.b32.xlu0 %v2060, 112
    %v2101 = vpop.permute.xlu0 %2100
    %2117 = vrot.lane.b32.xlu0 %v2050, 16
    %v2118 = vpop.permute.xlu0 %2117
    %2119 = vrot.lane.b32.xlu0 %v2051, 16
    %v2120 = vpop.permute.xlu0 %2119
    %2121 = vrot.lane.b32.xlu0 %v2052, 16
    %v2122 = vpop.permute.xlu0 %2121
    %2123 = vrot.lane.b32.xlu0 %v2053, 16
    %v2124 = vpop.permute.xlu0 %2123
    %2125 = vrot.lane.b32.xlu0 %v2054, 16
    %v2126 = vpop.permute.xlu0 %2125
    %2127 = vrot.lane.b32.xlu0 %v2055, 16
    %v2128 = vpop.permute.xlu0 %2127
    %2129 = vrot.lane.b32.xlu0 %v2056, 16
    %v2130 = vpop.permute.xlu0 %2129
    %2131 = vrot.lane.b32.xlu0 %v2057, 16
    %v2132 = vpop.permute.xlu0 %2131
    %2133 = vrot.lane.b32.xlu0 %v2058, 16
    %v2134 = vpop.permute.xlu0 %2133
    %2135 = vrot.lane.b32.xlu0 %v2059, 16
    %v2136 = vpop.permute.xlu0 %2135
    %2137 = vrot.lane.b32.xlu0 %v2060, 16
    %v2138 = vpop.permute.xlu0 %2137
    %2139 = vrot.lane.b32.xlu0 %v2061, 16
    %v2140 = vpop.permute.xlu0 %2139
    %2141 = vrot.lane.b32.xlu0 %v2062, 16
    %v2142 = vpop.permute.xlu0 %2141
    %v2156 = vsel %vm185, %v2077, %v2049
    %v2157 = vsel %vm185, %v2079, %v2050
    %v2158 = vsel %vm185, %v2081, %v2051
    %v2159 = vsel %vm185, %v2083, %v2052
    %v2160 = vsel %vm185, %v2085, %v2053
    %v2161 = vsel %vm185, %v2087, %v2054
    %v2162 = vsel %vm185, %v2089, %v2055
    %v2163 = vsel %vm185, %v2091, %v2056
    %v2164 = vsel %vm185, %v2093, %v2057
    %v2165 = vsel %vm185, %v2095, %v2058
    %v2166 = vsel %vm185, %v2097, %v2059
    %v2167 = vsel %vm185, %v2099, %v2060
    %v2168 = vsel %vm185, %v2101, %v2061
    %v2169 = vsel %vm520, %v2156, %v2118
    %v2170 = vsel %vm520, %v2157, %v2120
    %v2171 = vsel %vm520, %v2158, %v2122
    %v2172 = vsel %vm520, %v2159, %v2124
    %v2173 = vsel %vm520, %v2160, %v2126
    %v2174 = vsel %vm520, %v2161, %v2128
    %v2175 = vsel %vm520, %v2162, %v2130
    %v2176 = vsel %vm520, %v2163, %v2132
    %v2177 = vsel %vm520, %v2164, %v2134
    %v2178 = vsel %vm520, %v2165, %v2136
    %v2179 = vsel %vm520, %v2166, %v2138
    %v2180 = vsel %vm520, %v2167, %v2140
    %v2181 = vsel %vm520, %v2168, %v2142
    %v2182 = vpack.c.bf16 %v2170, %v2169
    %v2183 = vpack.c.bf16 %v2172, %v2171
    %v2184 = vpack.c.bf16 %v2174, %v2173
    %v2185 = vpack.c.bf16 %v2176, %v2175
    %v2186 = vpack.c.bf16 %v2178, %v2177
    %v2187 = vpack.c.bf16 %v2180, %v2179
    %v2188 = vpack.c.bf16 %v2181, %v2181
    %s2189 = scalar_lea.vmem %s2, 48
    %v2190 = vld [vmem:[%s2189] sm:$0xf]
    %v2191 = vld [vmem:[%s2189 + $0x4] sm:$0xf]
    %v2192 = vld [vmem:[%s2189 + $0x8] sm:$0xf]
    %v2193 = vld [vmem:[%s2189 + $0xc] sm:$0xf]
    %v2194 = vld [vmem:[%s2189 + $0x10] sm:$0xf]
    %v2195 = vld [vmem:[%s2189 + $0x14] sm:$0xf]
    %v2196 = vlaneseq
    %v2197 = vshrl.u32 %v2196, 7
    %v2198 = vsub.s32 2, %v2197
    %v2199 = vrot.slane %v1916, %v2198
    %v2206 = vunpack.c.l.b16 %v2190
    %v2207 = vunpack.c.l.b16 %v2191
    %v2208 = vunpack.c.l.b16 %v2192
    %v2209 = vunpack.c.l.b16 %v2193
    %v2210 = vunpack.c.l.b16 %v2194
    %v2211 = vunpack.c.l.b16 %v2195
    %v2212 = vpack.c.b16 %v2207, %v2206
    %v2213 = vpack.c.b16 %v2209, %v2208
    %v2214 = vpack.c.b16 %v2211, %v2210
    %v2219 = vsel %vm573, %v2182, 0
    %v2222 = vsel %vm573, %v2183, 0
    %v2225 = vsel %vm573, %v2184, 0
    %v2228 = vsel %vm573, %v2185, 0
    %v2231 = vsel %vm573, %v2186, 0
    %v2234 = vsel %vm573, %v2187, 0
    %v2237 = vsel %vm573, %v2188, 0
    %2239 = vmatprep.subr.bf16.mxu0 0
    %2240 = vmatpush1.bf16.msra.mxu0 %v2212
    %2241 = vmatprep.subr.bf16.mxu0 0
    %2242 = vmatpush1.bf16.msra.mxu0 %v2213
    %2243 = vmatprep.subr.bf16.mxu0 0
    %2244 = vmatpush1.bf16.msra.mxu0 %v2214
    %2245 = vmatprep.subr.bf16.mxu0 0
    %2246 = vmatpush1.bf16.msra.mxu0 0
    %2247 = vmatprep.subr.bf16.mxu0 0
    %2248 = vmatpush1.bf16.msra.mxu0 0
    %2249 = vmatprep.subr.bf16.mxu0 0
    %2250 = vmatpush1.bf16.msra.mxu0 0
    %2251 = vmatprep.subr.bf16.mxu0 0
    %2252 = vmatpush1.bf16.msra.mxu0 0
    %2253 = vmatprep.subr.bf16.mxu0 0
    %2254 = vmatpush1.bf16.msra.mxu0 0
    %2255 = vmatprep.subr.bf16.mxu0 0
    %2256 = vmatpush1.bf16.msra.mxu0 0
    %2257 = vmatprep.subr.bf16.mxu0 0
    %2258 = vmatpush1.bf16.msra.mxu0 0
    %2259 = vmatprep.subr.bf16.mxu0 0
    %2260 = vmatpush1.bf16.msra.mxu0 0
    %2261 = vmatprep.subr.bf16.mxu0 0
    %2262 = vmatpush1.bf16.msra.mxu0 0
    %2263 = vmatprep.subr.bf16.mxu0 0
    %2264 = vmatpush1.bf16.msra.mxu0 0
    %2265 = vmatprep.subr.bf16.mxu0 0
    %2266 = vmatpush1.bf16.msra.mxu0 0
    %2267 = vmatprep.subr.bf16.mxu0 0
    %2268 = vmatpush1.bf16.msra.mxu0 0
    %2269 = vmatprep.subr.bf16.mxu0 0
    %2270 = vmatpush1.bf16.msra.mxu0 0
    %2271 = vmatprep.mubr.bf16.mxu0 0
    %2272 = vmatmul.mubr.bf16.gmra.mrb[0].mxu0 %v2219
    %v2273 = vpop.f32.mrb[0].mxu0
    %v2274 = vadd.f32 %v2199, %v2273
    %v2275 = vpop.f32.mrb[0].mxu0
    %v2276 = vpop.f32.mrb[0].mxu0
    %v2277 = vadd.f32 %v2199, %v2276
    %v2278 = vpop.f32.mrb[0].mxu0
    %2279 = vmatprep.mubr.bf16.mxu0 0
    %2280 = vmatmul.mubr.bf16.gmra.mrb[0].mxu0 %v2222
    %v2281 = vpop.f32.mrb[0].mxu0
    %v2282 = vadd.f32 %v2199, %v2281
    %v2283 = vpop.f32.mrb[0].mxu0
    %v2284 = vpop.f32.mrb[0].mxu0
    %v2285 = vadd.f32 %v2199, %v2284
    %v2286 = vpop.f32.mrb[0].mxu0
    %2287 = vmatprep.mubr.bf16.mxu0 0
    %2288 = vmatmul.mubr.bf16.gmra.mrb[0].mxu0 %v2225
    %v2289 = vpop.f32.mrb[0].mxu0
    %v2290 = vadd.f32 %v2199, %v2289
    %v2291 = vpop.f32.mrb[0].mxu0
    %v2292 = vpop.f32.mrb[0].mxu0
    %v2293 = vadd.f32 %v2199, %v2292
    %v2294 = vpop.f32.mrb[0].mxu0
    %2295 = vmatprep.mubr.bf16.mxu0 0
    %2296 = vmatmul.mubr.bf16.gmra.mrb[0].mxu0 %v2228
    %v2297 = vpop.f32.mrb[0].mxu0
    %v2298 = vadd.f32 %v2199, %v2297
    %v2299 = vpop.f32.mrb[0].mxu0
    %v2300 = vpop.f32.mrb[0].mxu0
    %v2301 = vadd.f32 %v2199, %v2300
    %v2302 = vpop.f32.mrb[0].mxu0
    %2303 = vmatprep.mubr.bf16.mxu0 0
    %2304 = vmatmul.mubr.bf16.gmra.mrb[0].mxu0 %v2231
    %v2305 = vpop.f32.mrb[0].mxu0
    %v2306 = vadd.f32 %v2199, %v2305
    %v2307 = vpop.f32.mrb[0].mxu0
    %v2308 = vpop.f32.mrb[0].mxu0
    %v2309 = vadd.f32 %v2199, %v2308
    %v2310 = vpop.f32.mrb[0].mxu0
    %2311 = vmatprep.mubr.bf16.mxu0 0
    %2312 = vmatmul.mubr.bf16.gmra.mrb[0].mxu0 %v2234
    %v2313 = vpop.f32.mrb[0].mxu0
    %v2314 = vadd.f32 %v2199, %v2313
    %v2315 = vpop.f32.mrb[0].mxu0
    %v2316 = vpop.f32.mrb[0].mxu0
    %v2317 = vadd.f32 %v2199, %v2316
    %v2318 = vpop.f32.mrb[0].mxu0
    %2319 = vmatprep.mubr.bf16.mxu0 0
    %2320 = vmatmul.mubr.bf16.gmra.mrb[0].mxu0 %v2237
    %v2321 = vpop.f32.mrb[0].mxu0
    %v2322 = vadd.f32 %v2199, %v2321
    %v2323 = vpop.f32.mrb[0].mxu0
    %v2324 = vpop.f32.mrb[0].mxu0
    %v2325 = vpop.f32.mrb[0].mxu0
    %2326 = vdwg.mxu0
    %v2327 = vtanh.pop %v2274
    %v2328 = vtanh.pop %v2277
    %v2329 = vtanh.pop %v2282
    %v2330 = vtanh.pop %v2285
    %v2331 = vtanh.pop %v2290
    %v2332 = vtanh.pop %v2293
    %v2333 = vtanh.pop %v2298
    %v2334 = vtanh.pop %v2301
    %v2335 = vtanh.pop %v2306
    %v2336 = vtanh.pop %v2309
    %v2337 = vtanh.pop %v2314
    %v2338 = vtanh.pop %v2317
    %v2339 = vtanh.pop %v2322
    %v2340 = vmul.f32 %v2327, 0.5
    %v2341 = vmul.f32 %v2328, 0.5
    %v2342 = vmul.f32 %v2329, 0.5
    %v2343 = vmul.f32 %v2330, 0.5
    %v2344 = vmul.f32 %v2331, 0.5
    %v2345 = vmul.f32 %v2332, 0.5
    %v2346 = vmul.f32 %v2333, 0.5
    %v2347 = vmul.f32 %v2334, 0.5
    %v2348 = vmul.f32 %v2335, 0.5
    %v2349 = vmul.f32 %v2336, 0.5
    %v2350 = vmul.f32 %v2337, 0.5
    %v2351 = vmul.f32 %v2338, 0.5
    %v2352 = vmul.f32 %v2339, 0.5
    %v2353 = vadd.f32 %v2340, 0.5
    %v2354 = vadd.f32 %v2341, 0.5
    %v2355 = vadd.f32 %v2342, 0.5
    %v2356 = vadd.f32 %v2343, 0.5
    %v2357 = vadd.f32 %v2344, 0.5
    %v2358 = vadd.f32 %v2345, 0.5
    %v2359 = vadd.f32 %v2346, 0.5
    %v2360 = vadd.f32 %v2347, 0.5
    %v2361 = vadd.f32 %v2348, 0.5
    %v2362 = vadd.f32 %v2349, 0.5
    %v2363 = vadd.f32 %v2350, 0.5
    %v2364 = vadd.f32 %v2351, 0.5
    %v2365 = vadd.f32 %v2352, 0.5
    %2379 = vrot.lane.b32.xlu0 %v2353, 112
    %v2380 = vpop.permute.xlu0 %2379
    %2381 = vrot.lane.b32.xlu0 %v2354, 112
    %v2382 = vpop.permute.xlu0 %2381
    %2383 = vrot.lane.b32.xlu0 %v2355, 112
    %v2384 = vpop.permute.xlu0 %2383
    %2385 = vrot.lane.b32.xlu0 %v2356, 112
    %v2386 = vpop.permute.xlu0 %2385
    %2387 = vrot.lane.b32.xlu0 %v2357, 112
    %v2388 = vpop.permute.xlu0 %2387
    %2389 = vrot.lane.b32.xlu0 %v2358, 112
    %v2390 = vpop.permute.xlu0 %2389
    %2391 = vrot.lane.b32.xlu0 %v2359, 112
    %v2392 = vpop.permute.xlu0 %2391
    %2393 = vrot.lane.b32.xlu0 %v2360, 112
    %v2394 = vpop.permute.xlu0 %2393
    %2395 = vrot.lane.b32.xlu0 %v2361, 112
    %v2396 = vpop.permute.xlu0 %2395
    %2397 = vrot.lane.b32.xlu0 %v2362, 112
    %v2398 = vpop.permute.xlu0 %2397
    %2399 = vrot.lane.b32.xlu0 %v2363, 112
    %v2400 = vpop.permute.xlu0 %2399
    %2401 = vrot.lane.b32.xlu0 %v2364, 112
    %v2402 = vpop.permute.xlu0 %2401
    %2403 = vrot.lane.b32.xlu0 %v2365, 112
    %v2404 = vpop.permute.xlu0 %2403
    %v2418 = vmul.f32 %v2327, %v2380
    %v2419 = vmul.f32 %v2328, %v2382
    %v2420 = vmul.f32 %v2329, %v2384
    %v2421 = vmul.f32 %v2330, %v2386
    %v2422 = vmul.f32 %v2331, %v2388
    %v2423 = vmul.f32 %v2332, %v2390
    %v2424 = vmul.f32 %v2333, %v2392
    %v2425 = vmul.f32 %v2334, %v2394
    %v2426 = vmul.f32 %v2335, %v2396
    %v2427 = vmul.f32 %v2336, %v2398
    %v2428 = vmul.f32 %v2337, %v2400
    %v2429 = vmul.f32 %v2338, %v2402
    %v2430 = vmul.f32 %v2339, %v2404
    %v2431 = vpack.c.bf16 %v2419, %v2418
    %v2432 = vpack.c.bf16 %v2421, %v2420
    %v2433 = vpack.c.bf16 %v2423, %v2422
    %v2434 = vpack.c.bf16 %v2425, %v2424
    %v2435 = vpack.c.bf16 %v2427, %v2426
    %v2436 = vpack.c.bf16 %v2429, %v2428
    %v2437 = vpack.c.bf16 %v2430, %v2430
    %s2438 = scalar_lea.vmem %s3, 16
    %v2439 = vld [vmem:[%s2438] sm:$0xf]
    %v2440 = vld [vmem:[%s2438 + $0x4] sm:$0xf]
    %v2441 = vlaneseq
    %v2442 = vshrl.u32 %v2441, 7
    %v2443 = vsub.s32 3, %v2442
    %v2444 = vrot.slane %v1916, %v2443
    %v2447 = vunpack.c.l.b16 %v2439
    %v2448 = vunpack.c.l.b16 %v2440
    %v2449 = vpack.c.b16 %v2448, %v2447
    %v2452 = vsel %vm185, %v2431, 0
    %v2455 = vsel %vm185, %v2432, 0
    %v2458 = vsel %vm185, %v2433, 0
    %v2461 = vsel %vm185, %v2434, 0
    %v2464 = vsel %vm185, %v2435, 0
    %v2467 = vsel %vm185, %v2436, 0
    %v2470 = vsel %vm185, %v2437, 0
    %2472 = vmatprep.subr.bf16.mxu0 0
    %2473 = vmatpush1.bf16.msra.mxu0 %v2449
    %2474 = vmatprep.subr.bf16.mxu0 0
    %2475 = vmatpush1.bf16.msra.mxu0 0
    %2476 = vmatprep.subr.bf16.mxu0 0
    %2477 = vmatpush1.bf16.msra.mxu0 0
    %2478 = vmatprep.subr.bf16.mxu0 0
    %2479 = vmatpush1.bf16.msra.mxu0 0
    %2480 = vmatprep.subr.bf16.mxu0 0
    %2481 = vmatpush1.bf16.msra.mxu0 0
    %2482 = vmatprep.subr.bf16.mxu0 0
    %2483 = vmatpush1.bf16.msra.mxu0 0
    %2484 = vmatprep.subr.bf16.mxu0 0
    %2485 = vmatpush1.bf16.msra.mxu0 0
    %2486 = vmatprep.subr.bf16.mxu0 0
    %2487 = vmatpush1.bf16.msra.mxu0 0
    %2488 = vmatprep.subr.bf16.mxu0 0
    %2489 = vmatpush1.bf16.msra.mxu0 0
    %2490 = vmatprep.subr.bf16.mxu0 0
    %2491 = vmatpush1.bf16.msra.mxu0 0
    %2492 = vmatprep.subr.bf16.mxu0 0
    %2493 = vmatpush1.bf16.msra.mxu0 0
    %2494 = vmatprep.subr.bf16.mxu0 0
    %2495 = vmatpush1.bf16.msra.mxu0 0
    %2496 = vmatprep.subr.bf16.mxu0 0
    %2497 = vmatpush1.bf16.msra.mxu0 0
    %2498 = vmatprep.subr.bf16.mxu0 0
    %2499 = vmatpush1.bf16.msra.mxu0 0
    %2500 = vmatprep.subr.bf16.mxu0 0
    %2501 = vmatpush1.bf16.msra.mxu0 0
    %2502 = vmatprep.subr.bf16.mxu0 0
    %2503 = vmatpush1.bf16.msra.mxu0 0
    %2504 = vmatprep.mubr.bf16.mxu0 0
    %2505 = vmatmul.mubr.bf16.gmra.mrb[0].mxu0 %v2452
    %v2506 = vpop.f32.mrb[0].mxu0
    %v2507 = vadd.f32 %v2444, %v2506
    %v2508 = vpop.f32.mrb[0].mxu0
    %v2509 = vpop.f32.mrb[0].mxu0
    %v2510 = vadd.f32 %v2444, %v2509
    %v2511 = vpop.f32.mrb[0].mxu0
    %2512 = vmatprep.mubr.bf16.mxu0 0
    %2513 = vmatmul.mubr.bf16.gmra.mrb[0].mxu0 %v2455
    %v2514 = vpop.f32.mrb[0].mxu0
    %v2515 = vadd.f32 %v2444, %v2514
    %v2516 = vpop.f32.mrb[0].mxu0
    %v2517 = vpop.f32.mrb[0].mxu0
    %v2518 = vadd.f32 %v2444, %v2517
    %v2519 = vpop.f32.mrb[0].mxu0
    %2520 = vmatprep.mubr.bf16.mxu0 0
    %2521 = vmatmul.mubr.bf16.gmra.mrb[0].mxu0 %v2458
    %v2522 = vpop.f32.mrb[0].mxu0
    %v2523 = vadd.f32 %v2444, %v2522
    %v2524 = vpop.f32.mrb[0].mxu0
    %v2525 = vpop.f32.mrb[0].mxu0
    %v2526 = vadd.f32 %v2444, %v2525
    %v2527 = vpop.f32.mrb[0].mxu0
    %2528 = vmatprep.mubr.bf16.mxu0 0
    %2529 = vmatmul.mubr.bf16.gmra.mrb[0].mxu0 %v2461
    %v2530 = vpop.f32.mrb[0].mxu0
    %v2531 = vadd.f32 %v2444, %v2530
    %v2532 = vpop.f32.mrb[0].mxu0
    %v2533 = vpop.f32.mrb[0].mxu0
    %v2534 = vadd.f32 %v2444, %v2533
    %v2535 = vpop.f32.mrb[0].mxu0
    %2536 = vmatprep.mubr.bf16.mxu0 0
    %2537 = vmatmul.mubr.bf16.gmra.mrb[0].mxu0 %v2464
    %v2538 = vpop.f32.mrb[0].mxu0
    %v2539 = vadd.f32 %v2444, %v2538
    %v2540 = vpop.f32.mrb[0].mxu0
    %v2541 = vpop.f32.mrb[0].mxu0
    %v2542 = vadd.f32 %v2444, %v2541
    %v2543 = vpop.f32.mrb[0].mxu0
    %2544 = vmatprep.mubr.bf16.mxu0 0
    %2545 = vmatmul.mubr.bf16.gmra.mrb[0].mxu0 %v2467
    %v2546 = vpop.f32.mrb[0].mxu0
    %v2547 = vadd.f32 %v2444, %v2546
    %v2548 = vpop.f32.mrb[0].mxu0
    %v2549 = vpop.f32.mrb[0].mxu0
    %v2550 = vadd.f32 %v2444, %v2549
    %v2551 = vpop.f32.mrb[0].mxu0
    %2552 = vmatprep.mubr.bf16.mxu0 0
    %2553 = vmatmul.mubr.bf16.gmra.mrb[0].mxu0 %v2470
    %v2554 = vpop.f32.mrb[0].mxu0
    %v2555 = vadd.f32 %v2444, %v2554
    %v2556 = vpop.f32.mrb[0].mxu0
    %v2557 = vpop.f32.mrb[0].mxu0
    %v2558 = vpop.f32.mrb[0].mxu0
    %2559 = vdwg.mxu0
    %2573 = vrot.lane.b32.xlu0 %v2507, 16
    %v2574 = vpop.permute.xlu0 %2573
    %2575 = vrot.lane.b32.xlu0 %v2510, 16
    %v2576 = vpop.permute.xlu0 %2575
    %2577 = vrot.lane.b32.xlu0 %v2515, 16
    %v2578 = vpop.permute.xlu0 %2577
    %2579 = vrot.lane.b32.xlu0 %v2518, 16
    %v2580 = vpop.permute.xlu0 %2579
    %2581 = vrot.lane.b32.xlu0 %v2523, 16
    %v2582 = vpop.permute.xlu0 %2581
    %2583 = vrot.lane.b32.xlu0 %v2526, 16
    %v2584 = vpop.permute.xlu0 %2583
    %2585 = vrot.lane.b32.xlu0 %v2531, 16
    %v2586 = vpop.permute.xlu0 %2585
    %2587 = vrot.lane.b32.xlu0 %v2534, 16
    %v2588 = vpop.permute.xlu0 %2587
    %2589 = vrot.lane.b32.xlu0 %v2539, 16
    %v2590 = vpop.permute.xlu0 %2589
    %2591 = vrot.lane.b32.xlu0 %v2542, 16
    %v2592 = vpop.permute.xlu0 %2591
    %2593 = vrot.lane.b32.xlu0 %v2547, 16
    %v2594 = vpop.permute.xlu0 %2593
    %2595 = vrot.lane.b32.xlu0 %v2550, 16
    %v2596 = vpop.permute.xlu0 %2595
    %2597 = vrot.lane.b32.xlu0 %v2555, 16
    %v2598 = vpop.permute.xlu0 %2597
    %v2612 = vadd.f32 %v2169, %v2574
    %v2613 = vadd.f32 %v2170, %v2576
    %v2614 = vadd.f32 %v2171, %v2578
    %v2615 = vadd.f32 %v2172, %v2580
    %v2616 = vadd.f32 %v2173, %v2582
    %v2617 = vadd.f32 %v2174, %v2584
    %v2618 = vadd.f32 %v2175, %v2586
    %v2619 = vadd.f32 %v2176, %v2588
    %v2620 = vadd.f32 %v2177, %v2590
    %v2621 = vadd.f32 %v2178, %v2592
    %v2622 = vadd.f32 %v2179, %v2594
    %v2623 = vadd.f32 %v2180, %v2596
    %v2624 = vadd.f32 %v2181, %v2598
    %v2625 = vrot.slane %v2510, 4
    %v2626 = vrot.slane %v2515, 4
    %v2627 = vsel %vm83, %v2625, %v2626
    %v2628 = vrot.slane %v2518, 4
    %v2629 = vsel %vm83, %v2626, %v2628
    %v2630 = vrot.slane %v2523, 4
    %v2631 = vsel %vm83, %v2628, %v2630
    %v2632 = vrot.slane %v2526, 4
    %v2633 = vsel %vm83, %v2630, %v2632
    %v2634 = vrot.slane %v2531, 4
    %v2635 = vsel %vm83, %v2632, %v2634
    %v2636 = vrot.slane %v2534, 4
    %v2637 = vsel %vm83, %v2634, %v2636
    %v2638 = vrot.slane %v2539, 4
    %v2639 = vsel %vm83, %v2636, %v2638
    %v2640 = vrot.slane %v2542, 4
    %v2641 = vsel %vm83, %v2638, %v2640
    %v2642 = vrot.slane %v2547, 4
    %v2643 = vsel %vm83, %v2640, %v2642
    %v2644 = vrot.slane %v2550, 4
    %v2645 = vsel %vm83, %v2642, %v2644
    %v2656 = vadd.f32 %v1905, %v2627
    %v2657 = vadd.f32 %v1906, %v2629
    %v2658 = vadd.f32 %v1907, %v2631
    %v2659 = vadd.f32 %v1908, %v2633
    %v2660 = vadd.f32 %v1909, %v2635
    %v2661 = vadd.f32 %v1910, %v2637
    %v2662 = vadd.f32 %v1911, %v2639
    %v2663 = vadd.f32 %v1912, %v2641
    %v2664 = vadd.f32 %v1913, %v2643
    %v2665 = vadd.f32 %v1914, %v2645
    %s2666 = scalar_lea.vmem %s5, 24
    %v2667 = vld [vmem:[%s2666] sm:$0xff]
    %v2668 = vsel %vm1046, %v2612, 0.0
    %v2669 = vsel %vm1046, %v2613, 0.0
    %v2670 = vadd.f32 %v2668, %v2669
    %v2671 = vsel %vm1046, %v2614, 0.0
    %v2672 = vadd.f32 %v2670, %v2671
    %v2673 = vsel %vm1046, %v2615, 0.0
    %v2674 = vadd.f32 %v2672, %v2673
    %v2675 = vsel %vm1046, %v2616, 0.0
    %v2676 = vadd.f32 %v2674, %v2675
    %v2677 = vsel %vm1046, %v2617, 0.0
    %v2678 = vadd.f32 %v2676, %v2677
    %v2679 = vsel %vm1046, %v2618, 0.0
    %v2680 = vadd.f32 %v2678, %v2679
    %v2681 = vsel %vm1046, %v2619, 0.0
    %v2682 = vadd.f32 %v2680, %v2681
    %v2683 = vsel %vm1046, %v2620, 0.0
    %v2684 = vadd.f32 %v2682, %v2683
    %v2685 = vsel %vm1046, %v2621, 0.0
    %v2686 = vadd.f32 %v2684, %v2685
    %v2687 = vsel %vm1046, %v2622, 0.0
    %v2688 = vadd.f32 %v2686, %v2687
    %v2689 = vsel %vm1046, %v2623, 0.0
    %v2690 = vadd.f32 %v2688, %v2689
    %v2691 = vsel %vm1076, %v2624, 0.0
    %v2692 = vadd.f32 %v2690, %v2691
    %v2693 = vrot.slane %v2692, 4
    %v2694 = vadd.f32 %v2692, %v2693
    %v2695 = vrot.slane %v2694, 2
    %v2696 = vadd.f32 %v2694, %v2695
    %v2697 = vrot.slane %v2696, 1
    %v2698 = vadd.f32 %v2696, %v2697
    %v2699 = vrcp.pop 100.0
    %v2700 = vmul.f32 %v2698, %v2699
    %v2701 = vmul.f32 %v2612, %v2612
    %v2702 = vmul.f32 %v2613, %v2613
    %v2703 = vmul.f32 %v2614, %v2614
    %v2704 = vmul.f32 %v2615, %v2615
    %v2705 = vmul.f32 %v2616, %v2616
    %v2706 = vmul.f32 %v2617, %v2617
    %v2707 = vmul.f32 %v2618, %v2618
    %v2708 = vmul.f32 %v2619, %v2619
    %v2709 = vmul.f32 %v2620, %v2620
    %v2710 = vmul.f32 %v2621, %v2621
    %v2711 = vmul.f32 %v2622, %v2622
    %v2712 = vmul.f32 %v2623, %v2623
    %v2713 = vmul.f32 %v2624, %v2624
    %v2714 = vsel %vm1046, %v2701, 0.0
    %v2715 = vsel %vm1046, %v2702, 0.0
    %v2716 = vadd.f32 %v2714, %v2715
    %v2717 = vsel %vm1046, %v2703, 0.0
    %v2718 = vadd.f32 %v2716, %v2717
    %v2719 = vsel %vm1046, %v2704, 0.0
    %v2720 = vadd.f32 %v2718, %v2719
    %v2721 = vsel %vm1046, %v2705, 0.0
    %v2722 = vadd.f32 %v2720, %v2721
    %v2723 = vsel %vm1046, %v2706, 0.0
    %v2724 = vadd.f32 %v2722, %v2723
    %v2725 = vsel %vm1046, %v2707, 0.0
    %v2726 = vadd.f32 %v2724, %v2725
    %v2727 = vsel %vm1046, %v2708, 0.0
    %v2728 = vadd.f32 %v2726, %v2727
    %v2729 = vsel %vm1046, %v2709, 0.0
    %v2730 = vadd.f32 %v2728, %v2729
    %v2731 = vsel %vm1046, %v2710, 0.0
    %v2732 = vadd.f32 %v2730, %v2731
    %v2733 = vsel %vm1046, %v2711, 0.0
    %v2734 = vadd.f32 %v2732, %v2733
    %v2735 = vsel %vm1046, %v2712, 0.0
    %v2736 = vadd.f32 %v2734, %v2735
    %v2737 = vsel %vm1076, %v2713, 0.0
    %v2738 = vadd.f32 %v2736, %v2737
    %v2739 = vrot.slane %v2738, 4
    %v2740 = vadd.f32 %v2738, %v2739
    %v2741 = vrot.slane %v2740, 2
    %v2742 = vadd.f32 %v2740, %v2741
    %v2743 = vrot.slane %v2742, 1
    %v2744 = vadd.f32 %v2742, %v2743
    %v2745 = vmul.f32 %v2744, %v2699
    %v2746 = vmul.f32 %v2700, %v2700
    %v2747 = vsub.f32 %v2745, %v2746
    %v2748 = vadd.f32 %v2747, 1e-05
    %v2749 = vrsqrt.pop %v2748
    %2751 = vrot.lane.b32.xlu0 %v2667, 16
    %v2752 = vpop.permute.xlu0 %2751
    %v2754 = vmul.f32 %v2749, %v2752
    %v2755 = vlaneseq
    %v2756 = vshrl.u32 %v2755, 7
    %v2757 = vsub.s32 0, %v2756
    %v2758 = vrot.slane %v2754, %v2757
    %v2759 = vmul.f32 %v2612, %v2758
    %v2760 = vmul.f32 %v2613, %v2758
    %v2761 = vmul.f32 %v2614, %v2758
    %v2762 = vmul.f32 %v2615, %v2758
    %v2763 = vmul.f32 %v2616, %v2758
    %v2764 = vmul.f32 %v2617, %v2758
    %v2765 = vmul.f32 %v2618, %v2758
    %v2766 = vmul.f32 %v2619, %v2758
    %v2767 = vmul.f32 %v2620, %v2758
    %v2768 = vmul.f32 %v2621, %v2758
    %v2769 = vmul.f32 %v2622, %v2758
    %v2770 = vmul.f32 %v2623, %v2758
    %v2771 = vmul.f32 %v2624, %v2758
    %v2772 = vmul.f32 %v2700, %v2754
    %v2774 = vrot.slane %v2772, 7
    %2775 = vrot.lane.b32.xlu0 %v2774, 112
    %v2776 = vpop.permute.xlu0 %2775
    %v2778 = vsub.f32 %v2667, %v2776
    %v2779 = vlaneseq
    %v2780 = vshrl.u32 %v2779, 7
    %v2781 = vsub.s32 1, %v2780
    %v2782 = vrot.slane %v2778, %v2781
    %2784 = vrot.lane.b32.xlu0 %v2782, 16
    %v2785 = vpop.permute.xlu0 %2784
    %v2787 = vadd.f32 %v2759, %v2785
    %v2788 = vadd.f32 %v2760, %v2785
    %v2789 = vadd.f32 %v2761, %v2785
    %v2790 = vadd.f32 %v2762, %v2785
    %v2791 = vadd.f32 %v2763, %v2785
    %v2792 = vadd.f32 %v2764, %v2785
    %v2793 = vadd.f32 %v2765, %v2785
    %v2794 = vadd.f32 %v2766, %v2785
    %v2795 = vadd.f32 %v2767, %v2785
    %v2796 = vadd.f32 %v2768, %v2785
    %v2797 = vadd.f32 %v2769, %v2785
    %v2798 = vadd.f32 %v2770, %v2785
    %v2799 = vadd.f32 %v2771, %v2785
    %2812 = vrot.lane.b32.xlu0 %v2787, 112
    %v2813 = vpop.permute.xlu0 %2812
    %2814 = vrot.lane.b32.xlu0 %v2788, 112
    %v2815 = vpop.permute.xlu0 %2814
    %2816 = vrot.lane.b32.xlu0 %v2789, 112
    %v2817 = vpop.permute.xlu0 %2816
    %2818 = vrot.lane.b32.xlu0 %v2790, 112
    %v2819 = vpop.permute.xlu0 %2818
    %2820 = vrot.lane.b32.xlu0 %v2791, 112
    %v2821 = vpop.permute.xlu0 %2820
    %2822 = vrot.lane.b32.xlu0 %v2792, 112
    %v2823 = vpop.permute.xlu0 %2822
    %2824 = vrot.lane.b32.xlu0 %v2793, 112
    %v2825 = vpop.permute.xlu0 %2824
    %2826 = vrot.lane.b32.xlu0 %v2794, 112
    %v2827 = vpop.permute.xlu0 %2826
    %2828 = vrot.lane.b32.xlu0 %v2795, 112
    %v2829 = vpop.permute.xlu0 %2828
    %2830 = vrot.lane.b32.xlu0 %v2796, 112
    %v2831 = vpop.permute.xlu0 %2830
    %2832 = vrot.lane.b32.xlu0 %v2797, 112
    %v2833 = vpop.permute.xlu0 %2832
    %2834 = vrot.lane.b32.xlu0 %v2798, 112
    %v2835 = vpop.permute.xlu0 %2834
    %v2849 = vrot.slane %v2787, 2
    %v2850 = vrot.slane %v2788, 2
    %v2851 = vsel %vm345, %v2849, %v2850
    %v2852 = vrot.slane %v2789, 2
    %v2853 = vsel %vm345, %v2850, %v2852
    %v2854 = vrot.slane %v2790, 2
    %v2855 = vsel %vm345, %v2852, %v2854
    %v2856 = vrot.slane %v2791, 2
    %v2857 = vsel %vm345, %v2854, %v2856
    %v2858 = vrot.slane %v2792, 2
    %v2859 = vsel %vm345, %v2856, %v2858
    %v2860 = vrot.slane %v2793, 2
    %v2861 = vsel %vm345, %v2858, %v2860
    %v2862 = vrot.slane %v2794, 2
    %v2863 = vsel %vm345, %v2860, %v2862
    %v2864 = vrot.slane %v2795, 2
    %v2865 = vsel %vm345, %v2862, %v2864
    %v2866 = vrot.slane %v2796, 2
    %v2867 = vsel %vm345, %v2864, %v2866
    %v2868 = vrot.slane %v2797, 2
    %v2869 = vsel %vm345, %v2866, %v2868
    %v2870 = vrot.slane %v2798, 2
    %v2871 = vsel %vm345, %v2868, %v2870
    %v2872 = vrot.slane %v2799, 2
    %v2873 = vsel %vm345, %v2870, %v2872
    %v2886 = vrot.slane %v2787, 4
    %v2887 = vrot.slane %v2788, 4
    %v2888 = vsel %vm83, %v2886, %v2887
    %v2889 = vrot.slane %v2789, 4
    %v2890 = vsel %vm83, %v2887, %v2889
    %v2891 = vrot.slane %v2790, 4
    %v2892 = vsel %vm83, %v2889, %v2891
    %v2893 = vrot.slane %v2791, 4
    %v2894 = vsel %vm83, %v2891, %v2893
    %v2895 = vrot.slane %v2792, 4
    %v2896 = vsel %vm83, %v2893, %v2895
    %v2897 = vrot.slane %v2793, 4
    %v2898 = vsel %vm83, %v2895, %v2897
    %v2899 = vrot.slane %v2794, 4
    %v2900 = vsel %vm83, %v2897, %v2899
    %v2901 = vrot.slane %v2795, 4
    %v2902 = vsel %vm83, %v2899, %v2901
    %v2903 = vrot.slane %v2796, 4
    %v2904 = vsel %vm83, %v2901, %v2903
    %v2905 = vrot.slane %v2797, 4
    %v2906 = vsel %vm83, %v2903, %v2905
    %v2907 = vrot.slane %v2798, 4
    %v2908 = vsel %vm83, %v2905, %v2907
    %v2909 = vrot.slane %v2799, 4
    %v2910 = vsel %vm83, %v2907, %v2909
    %2911 = vrot.lane.b32.xlu0 %v2888, 16
    %v2912 = vpop.permute.xlu0 %2911
    %2913 = vrot.lane.b32.xlu0 %v2890, 16
    %v2914 = vpop.permute.xlu0 %2913
    %2915 = vrot.lane.b32.xlu0 %v2892, 16
    %v2916 = vpop.permute.xlu0 %2915
    %2917 = vrot.lane.b32.xlu0 %v2894, 16
    %v2918 = vpop.permute.xlu0 %2917
    %2919 = vrot.lane.b32.xlu0 %v2896, 16
    %v2920 = vpop.permute.xlu0 %2919
    %2921 = vrot.lane.b32.xlu0 %v2898, 16
    %v2922 = vpop.permute.xlu0 %2921
    %2923 = vrot.lane.b32.xlu0 %v2900, 16
    %v2924 = vpop.permute.xlu0 %2923
    %2925 = vrot.lane.b32.xlu0 %v2902, 16
    %v2926 = vpop.permute.xlu0 %2925
    %2927 = vrot.lane.b32.xlu0 %v2904, 16
    %v2928 = vpop.permute.xlu0 %2927
    %2929 = vrot.lane.b32.xlu0 %v2906, 16
    %v2930 = vpop.permute.xlu0 %2929
    %2931 = vrot.lane.b32.xlu0 %v2908, 16
    %v2932 = vpop.permute.xlu0 %2931
    %2933 = vrot.lane.b32.xlu0 %v2910, 16
    %v2934 = vpop.permute.xlu0 %2933
    %v2947 = vsel %vm185, %v2813, %v2851
    %v2948 = vsel %vm185, %v2815, %v2853
    %v2949 = vsel %vm185, %v2817, %v2855
    %v2950 = vsel %vm185, %v2819, %v2857
    %v2951 = vsel %vm185, %v2821, %v2859
    %v2952 = vsel %vm185, %v2823, %v2861
    %v2953 = vsel %vm185, %v2825, %v2863
    %v2954 = vsel %vm185, %v2827, %v2865
    %v2955 = vsel %vm185, %v2829, %v2867
    %v2956 = vsel %vm185, %v2831, %v2869
    %v2957 = vsel %vm185, %v2833, %v2871
    %v2958 = vsel %vm185, %v2835, %v2873
    %v2959 = vsel %vm520, %v2947, %v2912
    %v2960 = vsel %vm520, %v2948, %v2914
    %v2961 = vsel %vm520, %v2949, %v2916
    %v2962 = vsel %vm520, %v2950, %v2918
    %v2963 = vsel %vm520, %v2951, %v2920
    %v2964 = vsel %vm520, %v2952, %v2922
    %v2965 = vsel %vm520, %v2953, %v2924
    %v2966 = vsel %vm520, %v2954, %v2926
    %v2967 = vsel %vm520, %v2955, %v2928
    %v2968 = vsel %vm520, %v2956, %v2930
    %v2969 = vsel %vm520, %v2957, %v2932
    %v2970 = vsel %vm520, %v2958, %v2934
    %v2971 = vpack.c.bf16 %v2960, %v2959
    %v2972 = vpack.c.bf16 %v2962, %v2961
    %v2973 = vpack.c.bf16 %v2964, %v2963
    %v2974 = vpack.c.bf16 %v2966, %v2965
    %v2975 = vpack.c.bf16 %v2968, %v2967
    %v2976 = vpack.c.bf16 %v2970, %v2969
    %s2977 = scalar_lea.vmem %s2, 72
    %v2978 = vld [vmem:[%s2977] sm:$0xf]
    %v2979 = vld [vmem:[%s2977 + $0x4] sm:$0xf]
    %v2980 = vld [vmem:[%s2977 + $0x8] sm:$0xf]
    %v2981 = vld [vmem:[%s2977 + $0xc] sm:$0xf]
    %v2982 = vld [vmem:[%s2977 + $0x10] sm:$0xf]
    %v2983 = vld [vmem:[%s2977 + $0x14] sm:$0xf]
    %v2984 = vlaneseq
    %v2985 = vshrl.u32 %v2984, 7
    %v2986 = vsub.s32 2, %v2985
    %v2987 = vrot.slane %v2667, %v2986
    %v2994 = vunpack.c.l.b16 %v2978
    %v2995 = vunpack.c.l.b16 %v2979
    %v2996 = vunpack.c.l.b16 %v2980
    %v2997 = vunpack.c.l.b16 %v2981
    %v2998 = vunpack.c.l.b16 %v2982
    %v2999 = vunpack.c.l.b16 %v2983
    %v3000 = vpack.c.b16 %v2995, %v2994
    %v3001 = vpack.c.b16 %v2997, %v2996
    %v3002 = vpack.c.b16 %v2999, %v2998
    %v3007 = vsel %vm573, %v2971, 0
    %v3010 = vsel %vm573, %v2972, 0
    %v3013 = vsel %vm573, %v2973, 0
    %v3016 = vsel %vm573, %v2974, 0
    %v3019 = vsel %vm573, %v2975, 0
    %v3022 = vsel %vm573, %v2976, 0
    %3024 = vmatprep.subr.bf16.mxu0 0
    %3025 = vmatpush1.bf16.msra.mxu0 %v3000
    %3026 = vmatprep.subr.bf16.mxu0 0
    %3027 = vmatpush1.bf16.msra.mxu0 %v3001
    %3028 = vmatprep.subr.bf16.mxu0 0
    %3029 = vmatpush1.bf16.msra.mxu0 %v3002
    %3030 = vmatprep.subr.bf16.mxu0 0
    %3031 = vmatpush1.bf16.msra.mxu0 0
    %3032 = vmatprep.subr.bf16.mxu0 0
    %3033 = vmatpush1.bf16.msra.mxu0 0
    %3034 = vmatprep.subr.bf16.mxu0 0
    %3035 = vmatpush1.bf16.msra.mxu0 0
    %3036 = vmatprep.subr.bf16.mxu0 0
    %3037 = vmatpush1.bf16.msra.mxu0 0
    %3038 = vmatprep.subr.bf16.mxu0 0
    %3039 = vmatpush1.bf16.msra.mxu0 0
    %3040 = vmatprep.subr.bf16.mxu0 0
    %3041 = vmatpush1.bf16.msra.mxu0 0
    %3042 = vmatprep.subr.bf16.mxu0 0
    %3043 = vmatpush1.bf16.msra.mxu0 0
    %3044 = vmatprep.subr.bf16.mxu0 0
    %3045 = vmatpush1.bf16.msra.mxu0 0
    %3046 = vmatprep.subr.bf16.mxu0 0
    %3047 = vmatpush1.bf16.msra.mxu0 0
    %3048 = vmatprep.subr.bf16.mxu0 0
    %3049 = vmatpush1.bf16.msra.mxu0 0
    %3050 = vmatprep.subr.bf16.mxu0 0
    %3051 = vmatpush1.bf16.msra.mxu0 0
    %3052 = vmatprep.subr.bf16.mxu0 0
    %3053 = vmatpush1.bf16.msra.mxu0 0
    %3054 = vmatprep.subr.bf16.mxu0 0
    %3055 = vmatpush1.bf16.msra.mxu0 0
    %3056 = vmatprep.mubr.bf16.mxu0 0
    %3057 = vmatmul.mubr.bf16.gmra.mrb[0].mxu0 %v3007
    %v3058 = vpop.f32.mrb[0].mxu0
    %v3059 = vadd.f32 %v2987, %v3058
    %v3060 = vpop.f32.mrb[0].mxu0
    %v3061 = vpop.f32.mrb[0].mxu0
    %v3062 = vadd.f32 %v2987, %v3061
    %v3063 = vpop.f32.mrb[0].mxu0
    %3064 = vmatprep.mubr.bf16.mxu0 0
    %3065 = vmatmul.mubr.bf16.gmra.mrb[0].mxu0 %v3010
    %v3066 = vpop.f32.mrb[0].mxu0
    %v3067 = vadd.f32 %v2987, %v3066
    %v3068 = vpop.f32.mrb[0].mxu0
    %v3069 = vpop.f32.mrb[0].mxu0
    %v3070 = vadd.f32 %v2987, %v3069
    %v3071 = vpop.f32.mrb[0].mxu0
    %3072 = vmatprep.mubr.bf16.mxu0 0
    %3073 = vmatmul.mubr.bf16.gmra.mrb[0].mxu0 %v3013
    %v3074 = vpop.f32.mrb[0].mxu0
    %v3075 = vadd.f32 %v2987, %v3074
    %v3076 = vpop.f32.mrb[0].mxu0
    %v3077 = vpop.f32.mrb[0].mxu0
    %v3078 = vadd.f32 %v2987, %v3077
    %v3079 = vpop.f32.mrb[0].mxu0
    %3080 = vmatprep.mubr.bf16.mxu0 0
    %3081 = vmatmul.mubr.bf16.gmra.mrb[0].mxu0 %v3016
    %v3082 = vpop.f32.mrb[0].mxu0
    %v3083 = vadd.f32 %v2987, %v3082
    %v3084 = vpop.f32.mrb[0].mxu0
    %v3085 = vpop.f32.mrb[0].mxu0
    %v3086 = vadd.f32 %v2987, %v3085
    %v3087 = vpop.f32.mrb[0].mxu0
    %3088 = vmatprep.mubr.bf16.mxu0 0
    %3089 = vmatmul.mubr.bf16.gmra.mrb[0].mxu0 %v3019
    %v3090 = vpop.f32.mrb[0].mxu0
    %v3091 = vadd.f32 %v2987, %v3090
    %v3092 = vpop.f32.mrb[0].mxu0
    %v3093 = vpop.f32.mrb[0].mxu0
    %v3094 = vadd.f32 %v2987, %v3093
    %v3095 = vpop.f32.mrb[0].mxu0
    %3096 = vmatprep.mubr.bf16.mxu0 0
    %3097 = vmatmul.mubr.bf16.gmra.mrb[0].mxu0 %v3022
    %v3098 = vpop.f32.mrb[0].mxu0
    %v3099 = vadd.f32 %v2987, %v3098
    %v3100 = vpop.f32.mrb[0].mxu0
    %v3101 = vpop.f32.mrb[0].mxu0
    %v3102 = vadd.f32 %v2987, %v3101
    %v3103 = vpop.f32.mrb[0].mxu0
    %3104 = vdwg.mxu0
    %v3105 = vtanh.pop %v3059
    %v3106 = vtanh.pop %v3062
    %v3107 = vtanh.pop %v3067
    %v3108 = vtanh.pop %v3070
    %v3109 = vtanh.pop %v3075
    %v3110 = vtanh.pop %v3078
    %v3111 = vtanh.pop %v3083
    %v3112 = vtanh.pop %v3086
    %v3113 = vtanh.pop %v3091
    %v3114 = vtanh.pop %v3094
    %v3115 = vtanh.pop %v3099
    %v3116 = vtanh.pop %v3102
    %v3117 = vmul.f32 %v3105, 0.5
    %v3118 = vmul.f32 %v3106, 0.5
    %v3119 = vmul.f32 %v3107, 0.5
    %v3120 = vmul.f32 %v3108, 0.5
    %v3121 = vmul.f32 %v3109, 0.5
    %v3122 = vmul.f32 %v3110, 0.5
    %v3123 = vmul.f32 %v3111, 0.5
    %v3124 = vmul.f32 %v3112, 0.5
    %v3125 = vmul.f32 %v3113, 0.5
    %v3126 = vmul.f32 %v3114, 0.5
    %v3127 = vmul.f32 %v3115, 0.5
    %v3128 = vmul.f32 %v3116, 0.5
    %v3129 = vadd.f32 %v3117, 0.5
    %v3130 = vadd.f32 %v3118, 0.5
    %v3131 = vadd.f32 %v3119, 0.5
    %v3132 = vadd.f32 %v3120, 0.5
    %v3133 = vadd.f32 %v3121, 0.5
    %v3134 = vadd.f32 %v3122, 0.5
    %v3135 = vadd.f32 %v3123, 0.5
    %v3136 = vadd.f32 %v3124, 0.5
    %v3137 = vadd.f32 %v3125, 0.5
    %v3138 = vadd.f32 %v3126, 0.5
    %v3139 = vadd.f32 %v3127, 0.5
    %v3140 = vadd.f32 %v3128, 0.5
    %3153 = vrot.lane.b32.xlu0 %v3129, 112
    %v3154 = vpop.permute.xlu0 %3153
    %3155 = vrot.lane.b32.xlu0 %v3130, 112
    %v3156 = vpop.permute.xlu0 %3155
    %3157 = vrot.lane.b32.xlu0 %v3131, 112
    %v3158 = vpop.permute.xlu0 %3157
    %3159 = vrot.lane.b32.xlu0 %v3132, 112
    %v3160 = vpop.permute.xlu0 %3159
    %3161 = vrot.lane.b32.xlu0 %v3133, 112
    %v3162 = vpop.permute.xlu0 %3161
    %3163 = vrot.lane.b32.xlu0 %v3134, 112
    %v3164 = vpop.permute.xlu0 %3163
    %3165 = vrot.lane.b32.xlu0 %v3135, 112
    %v3166 = vpop.permute.xlu0 %3165
    %3167 = vrot.lane.b32.xlu0 %v3136, 112
    %v3168 = vpop.permute.xlu0 %3167
    %3169 = vrot.lane.b32.xlu0 %v3137, 112
    %v3170 = vpop.permute.xlu0 %3169
    %3171 = vrot.lane.b32.xlu0 %v3138, 112
    %v3172 = vpop.permute.xlu0 %3171
    %3173 = vrot.lane.b32.xlu0 %v3139, 112
    %v3174 = vpop.permute.xlu0 %3173
    %3175 = vrot.lane.b32.xlu0 %v3140, 112
    %v3176 = vpop.permute.xlu0 %3175
    %v3189 = vmul.f32 %v3105, %v3154
    %v3190 = vmul.f32 %v3106, %v3156
    %v3191 = vmul.f32 %v3107, %v3158
    %v3192 = vmul.f32 %v3108, %v3160
    %v3193 = vmul.f32 %v3109, %v3162
    %v3194 = vmul.f32 %v3110, %v3164
    %v3195 = vmul.f32 %v3111, %v3166
    %v3196 = vmul.f32 %v3112, %v3168
    %v3197 = vmul.f32 %v3113, %v3170
    %v3198 = vmul.f32 %v3114, %v3172
    %v3199 = vmul.f32 %v3115, %v3174
    %v3200 = vmul.f32 %v3116, %v3176
    %v3201 = vpack.c.bf16 %v3190, %v3189
    %v3202 = vpack.c.bf16 %v3192, %v3191
    %v3203 = vpack.c.bf16 %v3194, %v3193
    %v3204 = vpack.c.bf16 %v3196, %v3195
    %v3205 = vpack.c.bf16 %v3198, %v3197
    %v3206 = vpack.c.bf16 %v3200, %v3199
    %s3207 = scalar_lea.vmem %s3, 24
    %v3208 = vld [vmem:[%s3207] sm:$0xf]
    %v3209 = vld [vmem:[%s3207 + $0x4] sm:$0xf]
    %v3210 = vlaneseq
    %v3211 = vshrl.u32 %v3210, 7
    %v3212 = vsub.s32 3, %v3211
    %v3213 = vrot.slane %v2667, %v3212
    %v3216 = vunpack.c.l.b16 %v3208
    %v3217 = vunpack.c.l.b16 %v3209
    %v3218 = vpack.c.b16 %v3217, %v3216
    %v3221 = vsel %vm185, %v3201, 0
    %v3224 = vsel %vm185, %v3202, 0
    %v3227 = vsel %vm185, %v3203, 0
    %v3230 = vsel %vm185, %v3204, 0
    %v3233 = vsel %vm185, %v3205, 0
    %v3236 = vsel %vm185, %v3206, 0
    %3238 = vmatprep.subr.bf16.mxu0 0
    %3239 = vmatpush1.bf16.msra.mxu0 %v3218
    %3240 = vmatprep.subr.bf16.mxu0 0
    %3241 = vmatpush1.bf16.msra.mxu0 0
    %3242 = vmatprep.subr.bf16.mxu0 0
    %3243 = vmatpush1.bf16.msra.mxu0 0
    %3244 = vmatprep.subr.bf16.mxu0 0
    %3245 = vmatpush1.bf16.msra.mxu0 0
    %3246 = vmatprep.subr.bf16.mxu0 0
    %3247 = vmatpush1.bf16.msra.mxu0 0
    %3248 = vmatprep.subr.bf16.mxu0 0
    %3249 = vmatpush1.bf16.msra.mxu0 0
    %3250 = vmatprep.subr.bf16.mxu0 0
    %3251 = vmatpush1.bf16.msra.mxu0 0
    %3252 = vmatprep.subr.bf16.mxu0 0
    %3253 = vmatpush1.bf16.msra.mxu0 0
    %3254 = vmatprep.subr.bf16.mxu0 0
    %3255 = vmatpush1.bf16.msra.mxu0 0
    %3256 = vmatprep.subr.bf16.mxu0 0
    %3257 = vmatpush1.bf16.msra.mxu0 0
    %3258 = vmatprep.subr.bf16.mxu0 0
    %3259 = vmatpush1.bf16.msra.mxu0 0
    %3260 = vmatprep.subr.bf16.mxu0 0
    %3261 = vmatpush1.bf16.msra.mxu0 0
    %3262 = vmatprep.subr.bf16.mxu0 0
    %3263 = vmatpush1.bf16.msra.mxu0 0
    %3264 = vmatprep.subr.bf16.mxu0 0
    %3265 = vmatpush1.bf16.msra.mxu0 0
    %3266 = vmatprep.subr.bf16.mxu0 0
    %3267 = vmatpush1.bf16.msra.mxu0 0
    %3268 = vmatprep.subr.bf16.mxu0 0
    %3269 = vmatpush1.bf16.msra.mxu0 0
    %3270 = vmatprep.mubr.bf16.mxu0 0
    %3271 = vmatmul.mubr.bf16.gmra.mrb[0].mxu0 %v3221
    %v3272 = vpop.f32.mrb[0].mxu0
    %v3273 = vadd.f32 %v3213, %v3272
    %v3274 = vpop.f32.mrb[0].mxu0
    %v3275 = vpop.f32.mrb[0].mxu0
    %v3276 = vadd.f32 %v3213, %v3275
    %v3277 = vpop.f32.mrb[0].mxu0
    %3278 = vmatprep.mubr.bf16.mxu0 0
    %3279 = vmatmul.mubr.bf16.gmra.mrb[0].mxu0 %v3224
    %v3280 = vpop.f32.mrb[0].mxu0
    %v3281 = vadd.f32 %v3213, %v3280
    %v3282 = vpop.f32.mrb[0].mxu0
    %v3283 = vpop.f32.mrb[0].mxu0
    %v3284 = vadd.f32 %v3213, %v3283
    %v3285 = vpop.f32.mrb[0].mxu0
    %3286 = vmatprep.mubr.bf16.mxu0 0
    %3287 = vmatmul.mubr.bf16.gmra.mrb[0].mxu0 %v3227
    %v3288 = vpop.f32.mrb[0].mxu0
    %v3289 = vadd.f32 %v3213, %v3288
    %v3290 = vpop.f32.mrb[0].mxu0
    %v3291 = vpop.f32.mrb[0].mxu0
    %v3292 = vadd.f32 %v3213, %v3291
    %v3293 = vpop.f32.mrb[0].mxu0
    %3294 = vmatprep.mubr.bf16.mxu0 0
    %3295 = vmatmul.mubr.bf16.gmra.mrb[0].mxu0 %v3230
    %v3296 = vpop.f32.mrb[0].mxu0
    %v3297 = vadd.f32 %v3213, %v3296
    %v3298 = vpop.f32.mrb[0].mxu0
    %v3299 = vpop.f32.mrb[0].mxu0
    %v3300 = vadd.f32 %v3213, %v3299
    %v3301 = vpop.f32.mrb[0].mxu0
    %3302 = vmatprep.mubr.bf16.mxu0 0
    %3303 = vmatmul.mubr.bf16.gmra.mrb[0].mxu0 %v3233
    %v3304 = vpop.f32.mrb[0].mxu0
    %v3305 = vadd.f32 %v3213, %v3304
    %v3306 = vpop.f32.mrb[0].mxu0
    %v3307 = vpop.f32.mrb[0].mxu0
    %v3308 = vadd.f32 %v3213, %v3307
    %v3309 = vpop.f32.mrb[0].mxu0
    %3310 = vmatprep.mubr.bf16.mxu0 0
    %3311 = vmatmul.mubr.bf16.gmra.mrb[0].mxu0 %v3236
    %v3312 = vpop.f32.mrb[0].mxu0
    %v3313 = vadd.f32 %v3213, %v3312
    %v3314 = vpop.f32.mrb[0].mxu0
    %v3315 = vpop.f32.mrb[0].mxu0
    %v3316 = vadd.f32 %v3213, %v3315
    %v3317 = vpop.f32.mrb[0].mxu0
    %3318 = vdwg.mxu0
    %3331 = vrot.lane.b32.xlu0 %v3273, 16
    %v3332 = vpop.permute.xlu0 %3331
    %3333 = vrot.lane.b32.xlu0 %v3276, 16
    %v3334 = vpop.permute.xlu0 %3333
    %3335 = vrot.lane.b32.xlu0 %v3281, 16
    %v3336 = vpop.permute.xlu0 %3335
    %3337 = vrot.lane.b32.xlu0 %v3284, 16
    %v3338 = vpop.permute.xlu0 %3337
    %3339 = vrot.lane.b32.xlu0 %v3289, 16
    %v3340 = vpop.permute.xlu0 %3339
    %3341 = vrot.lane.b32.xlu0 %v3292, 16
    %v3342 = vpop.permute.xlu0 %3341
    %3343 = vrot.lane.b32.xlu0 %v3297, 16
    %v3344 = vpop.permute.xlu0 %3343
    %3345 = vrot.lane.b32.xlu0 %v3300, 16
    %v3346 = vpop.permute.xlu0 %3345
    %3347 = vrot.lane.b32.xlu0 %v3305, 16
    %v3348 = vpop.permute.xlu0 %3347
    %3349 = vrot.lane.b32.xlu0 %v3308, 16
    %v3350 = vpop.permute.xlu0 %3349
    %3351 = vrot.lane.b32.xlu0 %v3313, 16
    %v3352 = vpop.permute.xlu0 %3351
    %3353 = vrot.lane.b32.xlu0 %v3316, 16
    %v3354 = vpop.permute.xlu0 %3353
    %v3367 = vadd.f32 %v2959, %v3332
    %v3368 = vadd.f32 %v2960, %v3334
    %v3369 = vadd.f32 %v2961, %v3336
    %v3370 = vadd.f32 %v2962, %v3338
    %v3371 = vadd.f32 %v2963, %v3340
    %v3372 = vadd.f32 %v2964, %v3342
    %v3373 = vadd.f32 %v2965, %v3344
    %v3374 = vadd.f32 %v2966, %v3346
    %v3375 = vadd.f32 %v2967, %v3348
    %v3376 = vadd.f32 %v2968, %v3350
    %v3377 = vadd.f32 %v2969, %v3352
    %v3378 = vadd.f32 %v2970, %v3354
    %v3379 = vrot.slane %v3276, 2
    %v3380 = vrot.slane %v3281, 2
    %v3381 = vsel %vm345, %v3379, %v3380
    %v3382 = vrot.slane %v3284, 2
    %v3383 = vsel %vm345, %v3380, %v3382
    %v3384 = vrot.slane %v3289, 2
    %v3385 = vsel %vm345, %v3382, %v3384
    %v3386 = vrot.slane %v3292, 2
    %v3387 = vsel %vm345, %v3384, %v3386
    %v3388 = vrot.slane %v3297, 2
    %v3389 = vsel %vm345, %v3386, %v3388
    %v3390 = vrot.slane %v3300, 2
    %v3391 = vsel %vm345, %v3388, %v3390
    %v3392 = vrot.slane %v3305, 2
    %v3393 = vsel %vm345, %v3390, %v3392
    %v3394 = vrot.slane %v3308, 2
    %v3395 = vsel %vm345, %v3392, %v3394
    %v3396 = vrot.slane %v3313, 2
    %v3397 = vsel %vm345, %v3394, %v3396
    %v3398 = vrot.slane %v3316, 2
    %v3399 = vsel %vm345, %v3396, %v3398
    %v3410 = vadd.f32 %v2656, %v3381
    %v3411 = vadd.f32 %v2657, %v3383
    %v3412 = vadd.f32 %v2658, %v3385
    %v3413 = vadd.f32 %v2659, %v3387
    %v3414 = vadd.f32 %v2660, %v3389
    %v3415 = vadd.f32 %v2661, %v3391
    %v3416 = vadd.f32 %v2662, %v3393
    %v3417 = vadd.f32 %v2663, %v3395
    %v3418 = vadd.f32 %v2664, %v3397
    %v3419 = vadd.f32 %v2665, %v3399
    %s3420 = scalar_lea.vmem %s5, 32
    %v3421 = vld [vmem:[%s3420] sm:$0xff]
    %v3422 = vsel %vm1046, %v3367, 0.0
    %v3423 = vsel %vm1046, %v3368, 0.0
    %v3424 = vadd.f32 %v3422, %v3423
    %v3425 = vsel %vm1046, %v3369, 0.0
    %v3426 = vadd.f32 %v3424, %v3425
    %v3427 = vsel %vm1046, %v3370, 0.0
    %v3428 = vadd.f32 %v3426, %v3427
    %v3429 = vsel %vm1046, %v3371, 0.0
    %v3430 = vadd.f32 %v3428, %v3429
    %v3431 = vsel %vm1046, %v3372, 0.0
    %v3432 = vadd.f32 %v3430, %v3431
    %v3433 = vsel %vm1046, %v3373, 0.0
    %v3434 = vadd.f32 %v3432, %v3433
    %v3435 = vsel %vm1046, %v3374, 0.0
    %v3436 = vadd.f32 %v3434, %v3435
    %v3437 = vsel %vm1046, %v3375, 0.0
    %v3438 = vadd.f32 %v3436, %v3437
    %v3439 = vsel %vm1046, %v3376, 0.0
    %v3440 = vadd.f32 %v3438, %v3439
    %v3441 = vsel %vm1046, %v3377, 0.0
    %v3442 = vadd.f32 %v3440, %v3441
    %v3443 = vsel %vm1046, %v3378, 0.0
    %v3444 = vadd.f32 %v3442, %v3443
    %v3445 = vrot.slane %v3444, 4
    %v3446 = vadd.f32 %v3444, %v3445
    %v3447 = vrot.slane %v3446, 2
    %v3448 = vadd.f32 %v3446, %v3447
    %v3449 = vrot.slane %v3448, 1
    %v3450 = vadd.f32 %v3448, %v3449
    %v3451 = vrcp.pop 96.0
    %v3452 = vmul.f32 %v3450, %v3451
    %v3453 = vmul.f32 %v3367, %v3367
    %v3454 = vmul.f32 %v3368, %v3368
    %v3455 = vmul.f32 %v3369, %v3369
    %v3456 = vmul.f32 %v3370, %v3370
    %v3457 = vmul.f32 %v3371, %v3371
    %v3458 = vmul.f32 %v3372, %v3372
    %v3459 = vmul.f32 %v3373, %v3373
    %v3460 = vmul.f32 %v3374, %v3374
    %v3461 = vmul.f32 %v3375, %v3375
    %v3462 = vmul.f32 %v3376, %v3376
    %v3463 = vmul.f32 %v3377, %v3377
    %v3464 = vmul.f32 %v3378, %v3378
    %v3465 = vsel %vm1046, %v3453, 0.0
    %v3466 = vsel %vm1046, %v3454, 0.0
    %v3467 = vadd.f32 %v3465, %v3466
    %v3468 = vsel %vm1046, %v3455, 0.0
    %v3469 = vadd.f32 %v3467, %v3468
    %v3470 = vsel %vm1046, %v3456, 0.0
    %v3471 = vadd.f32 %v3469, %v3470
    %v3472 = vsel %vm1046, %v3457, 0.0
    %v3473 = vadd.f32 %v3471, %v3472
    %v3474 = vsel %vm1046, %v3458, 0.0
    %v3475 = vadd.f32 %v3473, %v3474
    %v3476 = vsel %vm1046, %v3459, 0.0
    %v3477 = vadd.f32 %v3475, %v3476
    %v3478 = vsel %vm1046, %v3460, 0.0
    %v3479 = vadd.f32 %v3477, %v3478
    %v3480 = vsel %vm1046, %v3461, 0.0
    %v3481 = vadd.f32 %v3479, %v3480
    %v3482 = vsel %vm1046, %v3462, 0.0
    %v3483 = vadd.f32 %v3481, %v3482
    %v3484 = vsel %vm1046, %v3463, 0.0
    %v3485 = vadd.f32 %v3483, %v3484
    %v3486 = vsel %vm1046, %v3464, 0.0
    %v3487 = vadd.f32 %v3485, %v3486
    %v3488 = vrot.slane %v3487, 4
    %v3489 = vadd.f32 %v3487, %v3488
    %v3490 = vrot.slane %v3489, 2
    %v3491 = vadd.f32 %v3489, %v3490
    %v3492 = vrot.slane %v3491, 1
    %v3493 = vadd.f32 %v3491, %v3492
    %v3494 = vmul.f32 %v3493, %v3451
    %v3495 = vmul.f32 %v3452, %v3452
    %v3496 = vsub.f32 %v3494, %v3495
    %v3497 = vadd.f32 %v3496, 1e-05
    %v3498 = vrsqrt.pop %v3497
    %3500 = vrot.lane.b32.xlu0 %v3421, 16
    %v3501 = vpop.permute.xlu0 %3500
    %v3503 = vmul.f32 %v3498, %v3501
    %v3504 = vlaneseq
    %v3505 = vshrl.u32 %v3504, 7
    %v3506 = vsub.s32 0, %v3505
    %v3507 = vrot.slane %v3503, %v3506
    %v3508 = vmul.f32 %v3367, %v3507
    %v3509 = vmul.f32 %v3368, %v3507
    %v3510 = vmul.f32 %v3369, %v3507
    %v3511 = vmul.f32 %v3370, %v3507
    %v3512 = vmul.f32 %v3371, %v3507
    %v3513 = vmul.f32 %v3372, %v3507
    %v3514 = vmul.f32 %v3373, %v3507
    %v3515 = vmul.f32 %v3374, %v3507
    %v3516 = vmul.f32 %v3375, %v3507
    %v3517 = vmul.f32 %v3376, %v3507
    %v3518 = vmul.f32 %v3377, %v3507
    %v3519 = vmul.f32 %v3378, %v3507
    %v3520 = vmul.f32 %v3452, %v3503
    %v3522 = vrot.slane %v3520, 7
    %3523 = vrot.lane.b32.xlu0 %v3522, 112
    %v3524 = vpop.permute.xlu0 %3523
    %v3526 = vsub.f32 %v3421, %v3524
    %v3527 = vlaneseq
    %v3528 = vshrl.u32 %v3527, 7
    %v3529 = vsub.s32 1, %v3528
    %v3530 = vrot.slane %v3526, %v3529
    %3532 = vrot.lane.b32.xlu0 %v3530, 16
    %v3533 = vpop.permute.xlu0 %3532
    %v3535 = vadd.f32 %v3508, %v3533
    %v3536 = vadd.f32 %v3509, %v3533
    %v3537 = vadd.f32 %v3510, %v3533
    %v3538 = vadd.f32 %v3511, %v3533
    %v3539 = vadd.f32 %v3512, %v3533
    %v3540 = vadd.f32 %v3513, %v3533
    %v3541 = vadd.f32 %v3514, %v3533
    %v3542 = vadd.f32 %v3515, %v3533
    %v3543 = vadd.f32 %v3516, %v3533
    %v3544 = vadd.f32 %v3517, %v3533
    %v3545 = vadd.f32 %v3518, %v3533
    %v3546 = vadd.f32 %v3519, %v3533
    %3558 = vrot.lane.b32.xlu0 %v3535, 112
    %v3559 = vpop.permute.xlu0 %3558
    %3560 = vrot.lane.b32.xlu0 %v3536, 112
    %v3561 = vpop.permute.xlu0 %3560
    %3562 = vrot.lane.b32.xlu0 %v3537, 112
    %v3563 = vpop.permute.xlu0 %3562
    %3564 = vrot.lane.b32.xlu0 %v3538, 112
    %v3565 = vpop.permute.xlu0 %3564
    %3566 = vrot.lane.b32.xlu0 %v3539, 112
    %v3567 = vpop.permute.xlu0 %3566
    %3568 = vrot.lane.b32.xlu0 %v3540, 112
    %v3569 = vpop.permute.xlu0 %3568
    %3570 = vrot.lane.b32.xlu0 %v3541, 112
    %v3571 = vpop.permute.xlu0 %3570
    %3572 = vrot.lane.b32.xlu0 %v3542, 112
    %v3573 = vpop.permute.xlu0 %3572
    %3574 = vrot.lane.b32.xlu0 %v3543, 112
    %v3575 = vpop.permute.xlu0 %3574
    %3576 = vrot.lane.b32.xlu0 %v3544, 112
    %v3577 = vpop.permute.xlu0 %3576
    %3578 = vrot.lane.b32.xlu0 %v3545, 112
    %v3579 = vpop.permute.xlu0 %3578
    %v3592 = vrot.slane %v3535, 4
    %v3593 = vrot.slane %v3536, 4
    %v3594 = vsel %vm83, %v3592, %v3593
    %v3595 = vrot.slane %v3537, 4
    %v3596 = vsel %vm83, %v3593, %v3595
    %v3597 = vrot.slane %v3538, 4
    %v3598 = vsel %vm83, %v3595, %v3597
    %v3599 = vrot.slane %v3539, 4
    %v3600 = vsel %vm83, %v3597, %v3599
    %v3601 = vrot.slane %v3540, 4
    %v3602 = vsel %vm83, %v3599, %v3601
    %v3603 = vrot.slane %v3541, 4
    %v3604 = vsel %vm83, %v3601, %v3603
    %v3605 = vrot.slane %v3542, 4
    %v3606 = vsel %vm83, %v3603, %v3605
    %v3607 = vrot.slane %v3543, 4
    %v3608 = vsel %vm83, %v3605, %v3607
    %v3609 = vrot.slane %v3544, 4
    %v3610 = vsel %vm83, %v3607, %v3609
    %v3611 = vrot.slane %v3545, 4
    %v3612 = vsel %vm83, %v3609, %v3611
    %v3613 = vrot.slane %v3546, 4
    %v3614 = vsel %vm83, %v3611, %v3613
    %3626 = vrot.lane.b32.xlu0 %v3536, 16
    %v3627 = vpop.permute.xlu0 %3626
    %3628 = vrot.lane.b32.xlu0 %v3537, 16
    %v3629 = vpop.permute.xlu0 %3628
    %3630 = vrot.lane.b32.xlu0 %v3538, 16
    %v3631 = vpop.permute.xlu0 %3630
    %3632 = vrot.lane.b32.xlu0 %v3539, 16
    %v3633 = vpop.permute.xlu0 %3632
    %3634 = vrot.lane.b32.xlu0 %v3540, 16
    %v3635 = vpop.permute.xlu0 %3634
    %3636 = vrot.lane.b32.xlu0 %v3541, 16
    %v3637 = vpop.permute.xlu0 %3636
    %3638 = vrot.lane.b32.xlu0 %v3542, 16
    %v3639 = vpop.permute.xlu0 %3638
    %3640 = vrot.lane.b32.xlu0 %v3543, 16
    %v3641 = vpop.permute.xlu0 %3640
    %3642 = vrot.lane.b32.xlu0 %v3544, 16
    %v3643 = vpop.permute.xlu0 %3642
    %3644 = vrot.lane.b32.xlu0 %v3545, 16
    %v3645 = vpop.permute.xlu0 %3644
    %3646 = vrot.lane.b32.xlu0 %v3546, 16
    %v3647 = vpop.permute.xlu0 %3646
    %v3659 = vsel %vm185, %v3559, %v3594
    %v3660 = vsel %vm185, %v3561, %v3596
    %v3661 = vsel %vm185, %v3563, %v3598
    %v3662 = vsel %vm185, %v3565, %v3600
    %v3663 = vsel %vm185, %v3567, %v3602
    %v3664 = vsel %vm185, %v3569, %v3604
    %v3665 = vsel %vm185, %v3571, %v3606
    %v3666 = vsel %vm185, %v3573, %v3608
    %v3667 = vsel %vm185, %v3575, %v3610
    %v3668 = vsel %vm185, %v3577, %v3612
    %v3669 = vsel %vm185, %v3579, %v3614
    %v3670 = vsel %vm520, %v3659, %v3627
    %v3671 = vsel %vm520, %v3660, %v3629
    %v3672 = vsel %vm520, %v3661, %v3631
    %v3673 = vsel %vm520, %v3662, %v3633
    %v3674 = vsel %vm520, %v3663, %v3635
    %v3675 = vsel %vm520, %v3664, %v3637
    %v3676 = vsel %vm520, %v3665, %v3639
    %v3677 = vsel %vm520, %v3666, %v3641
    %v3678 = vsel %vm520, %v3667, %v3643
    %v3679 = vsel %vm520, %v3668, %v3645
    %v3680 = vsel %vm520, %v3669, %v3647
    %v3681 = vpack.c.bf16 %v3671, %v3670
    %v3682 = vpack.c.bf16 %v3673, %v3672
    %v3683 = vpack.c.bf16 %v3675, %v3674
    %v3684 = vpack.c.bf16 %v3677, %v3676
    %v3685 = vpack.c.bf16 %v3679, %v3678
    %v3686 = vpack.c.bf16 %v3680, %v3680
    %s3687 = scalar_lea.vmem %s2, 96
    %v3688 = vld [vmem:[%s3687] sm:$0xf]
    %v3689 = vld [vmem:[%s3687 + $0x4] sm:$0xf]
    %v3690 = vld [vmem:[%s3687 + $0x8] sm:$0xf]
    %v3691 = vld [vmem:[%s3687 + $0xc] sm:$0xf]
    %v3692 = vld [vmem:[%s3687 + $0x10] sm:$0xf]
    %v3693 = vld [vmem:[%s3687 + $0x14] sm:$0xf]
    %v3694 = vlaneseq
    %v3695 = vshrl.u32 %v3694, 7
    %v3696 = vsub.s32 2, %v3695
    %v3697 = vrot.slane %v3421, %v3696
    %v3704 = vunpack.c.l.b16 %v3688
    %v3705 = vunpack.c.l.b16 %v3689
    %v3706 = vunpack.c.l.b16 %v3690
    %v3707 = vunpack.c.l.b16 %v3691
    %v3708 = vunpack.c.l.b16 %v3692
    %v3709 = vunpack.c.l.b16 %v3693
    %v3710 = vpack.c.b16 %v3705, %v3704
    %v3711 = vpack.c.b16 %v3707, %v3706
    %v3712 = vpack.c.b16 %v3709, %v3708
    %v3717 = vsel %vm573, %v3681, 0
    %v3720 = vsel %vm573, %v3682, 0
    %v3723 = vsel %vm573, %v3683, 0
    %v3726 = vsel %vm573, %v3684, 0
    %v3729 = vsel %vm573, %v3685, 0
    %v3732 = vsel %vm573, %v3686, 0
    %3734 = vmatprep.subr.bf16.mxu0 0
    %3735 = vmatpush1.bf16.msra.mxu0 %v3710
    %3736 = vmatprep.subr.bf16.mxu0 0
    %3737 = vmatpush1.bf16.msra.mxu0 %v3711
    %3738 = vmatprep.subr.bf16.mxu0 0
    %3739 = vmatpush1.bf16.msra.mxu0 %v3712
    %3740 = vmatprep.subr.bf16.mxu0 0
    %3741 = vmatpush1.bf16.msra.mxu0 0
    %3742 = vmatprep.subr.bf16.mxu0 0
    %3743 = vmatpush1.bf16.msra.mxu0 0
    %3744 = vmatprep.subr.bf16.mxu0 0
    %3745 = vmatpush1.bf16.msra.mxu0 0
    %3746 = vmatprep.subr.bf16.mxu0 0
    %3747 = vmatpush1.bf16.msra.mxu0 0
    %3748 = vmatprep.subr.bf16.mxu0 0
    %3749 = vmatpush1.bf16.msra.mxu0 0
    %3750 = vmatprep.subr.bf16.mxu0 0
    %3751 = vmatpush1.bf16.msra.mxu0 0
    %3752 = vmatprep.subr.bf16.mxu0 0
    %3753 = vmatpush1.bf16.msra.mxu0 0
    %3754 = vmatprep.subr.bf16.mxu0 0
    %3755 = vmatpush1.bf16.msra.mxu0 0
    %3756 = vmatprep.subr.bf16.mxu0 0
    %3757 = vmatpush1.bf16.msra.mxu0 0
    %3758 = vmatprep.subr.bf16.mxu0 0
    %3759 = vmatpush1.bf16.msra.mxu0 0
    %3760 = vmatprep.subr.bf16.mxu0 0
    %3761 = vmatpush1.bf16.msra.mxu0 0
    %3762 = vmatprep.subr.bf16.mxu0 0
    %3763 = vmatpush1.bf16.msra.mxu0 0
    %3764 = vmatprep.subr.bf16.mxu0 0
    %3765 = vmatpush1.bf16.msra.mxu0 0
    %3766 = vmatprep.mubr.bf16.mxu0 0
    %3767 = vmatmul.mubr.bf16.gmra.mrb[0].mxu0 %v3717
    %v3768 = vpop.f32.mrb[0].mxu0
    %v3769 = vadd.f32 %v3697, %v3768
    %v3770 = vpop.f32.mrb[0].mxu0
    %v3771 = vpop.f32.mrb[0].mxu0
    %v3772 = vadd.f32 %v3697, %v3771
    %v3773 = vpop.f32.mrb[0].mxu0
    %3774 = vmatprep.mubr.bf16.mxu0 0
    %3775 = vmatmul.mubr.bf16.gmra.mrb[0].mxu0 %v3720
    %v3776 = vpop.f32.mrb[0].mxu0
    %v3777 = vadd.f32 %v3697, %v3776
    %v3778 = vpop.f32.mrb[0].mxu0
    %v3779 = vpop.f32.mrb[0].mxu0
    %v3780 = vadd.f32 %v3697, %v3779
    %v3781 = vpop.f32.mrb[0].mxu0
    %3782 = vmatprep.mubr.bf16.mxu0 0
    %3783 = vmatmul.mubr.bf16.gmra.mrb[0].mxu0 %v3723
    %v3784 = vpop.f32.mrb[0].mxu0
    %v3785 = vadd.f32 %v3697, %v3784
    %v3786 = vpop.f32.mrb[0].mxu0
    %v3787 = vpop.f32.mrb[0].mxu0
    %v3788 = vadd.f32 %v3697, %v3787
    %v3789 = vpop.f32.mrb[0].mxu0
    %3790 = vmatprep.mubr.bf16.mxu0 0
    %3791 = vmatmul.mubr.bf16.gmra.mrb[0].mxu0 %v3726
    %v3792 = vpop.f32.mrb[0].mxu0
    %v3793 = vadd.f32 %v3697, %v3792
    %v3794 = vpop.f32.mrb[0].mxu0
    %v3795 = vpop.f32.mrb[0].mxu0
    %v3796 = vadd.f32 %v3697, %v3795
    %v3797 = vpop.f32.mrb[0].mxu0
    %3798 = vmatprep.mubr.bf16.mxu0 0
    %3799 = vmatmul.mubr.bf16.gmra.mrb[0].mxu0 %v3729
    %v3800 = vpop.f32.mrb[0].mxu0
    %v3801 = vadd.f32 %v3697, %v3800
    %v3802 = vpop.f32.mrb[0].mxu0
    %v3803 = vpop.f32.mrb[0].mxu0
    %v3804 = vadd.f32 %v3697, %v3803
    %v3805 = vpop.f32.mrb[0].mxu0
    %3806 = vmatprep.mubr.bf16.mxu0 0
    %3807 = vmatmul.mubr.bf16.gmra.mrb[0].mxu0 %v3732
    %v3808 = vpop.f32.mrb[0].mxu0
    %v3809 = vadd.f32 %v3697, %v3808
    %v3810 = vpop.f32.mrb[0].mxu0
    %v3811 = vpop.f32.mrb[0].mxu0
    %v3812 = vpop.f32.mrb[0].mxu0
    %3813 = vdwg.mxu0
    %v3814 = vtanh.pop %v3769
    %v3815 = vtanh.pop %v3772
    %v3816 = vtanh.pop %v3777
    %v3817 = vtanh.pop %v3780
    %v3818 = vtanh.pop %v3785
    %v3819 = vtanh.pop %v3788
    %v3820 = vtanh.pop %v3793
    %v3821 = vtanh.pop %v3796
    %v3822 = vtanh.pop %v3801
    %v3823 = vtanh.pop %v3804
    %v3824 = vtanh.pop %v3809
    %v3825 = vmul.f32 %v3814, 0.5
    %v3826 = vmul.f32 %v3815, 0.5
    %v3827 = vmul.f32 %v3816, 0.5
    %v3828 = vmul.f32 %v3817, 0.5
    %v3829 = vmul.f32 %v3818, 0.5
    %v3830 = vmul.f32 %v3819, 0.5
    %v3831 = vmul.f32 %v3820, 0.5
    %v3832 = vmul.f32 %v3821, 0.5
    %v3833 = vmul.f32 %v3822, 0.5
    %v3834 = vmul.f32 %v3823, 0.5
    %v3835 = vmul.f32 %v3824, 0.5
    %v3836 = vadd.f32 %v3825, 0.5
    %v3837 = vadd.f32 %v3826, 0.5
    %v3838 = vadd.f32 %v3827, 0.5
    %v3839 = vadd.f32 %v3828, 0.5
    %v3840 = vadd.f32 %v3829, 0.5
    %v3841 = vadd.f32 %v3830, 0.5
    %v3842 = vadd.f32 %v3831, 0.5
    %v3843 = vadd.f32 %v3832, 0.5
    %v3844 = vadd.f32 %v3833, 0.5
    %v3845 = vadd.f32 %v3834, 0.5
    %v3846 = vadd.f32 %v3835, 0.5
    %3858 = vrot.lane.b32.xlu0 %v3836, 112
    %v3859 = vpop.permute.xlu0 %3858
    %3860 = vrot.lane.b32.xlu0 %v3837, 112
    %v3861 = vpop.permute.xlu0 %3860
    %3862 = vrot.lane.b32.xlu0 %v3838, 112
    %v3863 = vpop.permute.xlu0 %3862
    %3864 = vrot.lane.b32.xlu0 %v3839, 112
    %v3865 = vpop.permute.xlu0 %3864
    %3866 = vrot.lane.b32.xlu0 %v3840, 112
    %v3867 = vpop.permute.xlu0 %3866
    %3868 = vrot.lane.b32.xlu0 %v3841, 112
    %v3869 = vpop.permute.xlu0 %3868
    %3870 = vrot.lane.b32.xlu0 %v3842, 112
    %v3871 = vpop.permute.xlu0 %3870
    %3872 = vrot.lane.b32.xlu0 %v3843, 112
    %v3873 = vpop.permute.xlu0 %3872
    %3874 = vrot.lane.b32.xlu0 %v3844, 112
    %v3875 = vpop.permute.xlu0 %3874
    %3876 = vrot.lane.b32.xlu0 %v3845, 112
    %v3877 = vpop.permute.xlu0 %3876
    %3878 = vrot.lane.b32.xlu0 %v3846, 112
    %v3879 = vpop.permute.xlu0 %3878
    %v3891 = vmul.f32 %v3814, %v3859
    %v3892 = vmul.f32 %v3815, %v3861
    %v3893 = vmul.f32 %v3816, %v3863
    %v3894 = vmul.f32 %v3817, %v3865
    %v3895 = vmul.f32 %v3818, %v3867
    %v3896 = vmul.f32 %v3819, %v3869
    %v3897 = vmul.f32 %v3820, %v3871
    %v3898 = vmul.f32 %v3821, %v3873
    %v3899 = vmul.f32 %v3822, %v3875
    %v3900 = vmul.f32 %v3823, %v3877
    %v3901 = vmul.f32 %v3824, %v3879
    %v3902 = vpack.c.bf16 %v3892, %v3891
    %v3903 = vpack.c.bf16 %v3894, %v3893
    %v3904 = vpack.c.bf16 %v3896, %v3895
    %v3905 = vpack.c.bf16 %v3898, %v3897
    %v3906 = vpack.c.bf16 %v3900, %v3899
    %v3907 = vpack.c.bf16 %v3901, %v3901
    %s3908 = scalar_lea.vmem %s3, 32
    %v3909 = vld [vmem:[%s3908] sm:$0xf]
    %v3910 = vld [vmem:[%s3908 + $0x4] sm:$0xf]
    %v3911 = vlaneseq
    %v3912 = vshrl.u32 %v3911, 7
    %v3913 = vsub.s32 3, %v3912
    %v3914 = vrot.slane %v3421, %v3913
    %v3917 = vunpack.c.l.b16 %v3909
    %v3918 = vunpack.c.l.b16 %v3910
    %v3919 = vpack.c.b16 %v3918, %v3917
    %v3922 = vsel %vm185, %v3902, 0
    %v3925 = vsel %vm185, %v3903, 0
    %v3928 = vsel %vm185, %v3904, 0
    %v3931 = vsel %vm185, %v3905, 0
    %v3934 = vsel %vm185, %v3906, 0
    %v3937 = vsel %vm185, %v3907, 0
    %3939 = vmatprep.subr.bf16.mxu0 0
    %3940 = vmatpush1.bf16.msra.mxu0 %v3919
    %3941 = vmatprep.subr.bf16.mxu0 0
    %3942 = vmatpush1.bf16.msra.mxu0 0
    %3943 = vmatprep.subr.bf16.mxu0 0
    %3944 = vmatpush1.bf16.msra.mxu0 0
    %3945 = vmatprep.subr.bf16.mxu0 0
    %3946 = vmatpush1.bf16.msra.mxu0 0
    %3947 = vmatprep.subr.bf16.mxu0 0
    %3948 = vmatpush1.bf16.msra.mxu0 0
    %3949 = vmatprep.subr.bf16.mxu0 0
    %3950 = vmatpush1.bf16.msra.mxu0 0
    %3951 = vmatprep.subr.bf16.mxu0 0
    %3952 = vmatpush1.bf16.msra.mxu0 0
    %3953 = vmatprep.subr.bf16.mxu0 0
    %3954 = vmatpush1.bf16.msra.mxu0 0
    %3955 = vmatprep.subr.bf16.mxu0 0
    %3956 = vmatpush1.bf16.msra.mxu0 0
    %3957 = vmatprep.subr.bf16.mxu0 0
    %3958 = vmatpush1.bf16.msra.mxu0 0
    %3959 = vmatprep.subr.bf16.mxu0 0
    %3960 = vmatpush1.bf16.msra.mxu0 0
    %3961 = vmatprep.subr.bf16.mxu0 0
    %3962 = vmatpush1.bf16.msra.mxu0 0
    %3963 = vmatprep.subr.bf16.mxu0 0
    %3964 = vmatpush1.bf16.msra.mxu0 0
    %3965 = vmatprep.subr.bf16.mxu0 0
    %3966 = vmatpush1.bf16.msra.mxu0 0
    %3967 = vmatprep.subr.bf16.mxu0 0
    %3968 = vmatpush1.bf16.msra.mxu0 0
    %3969 = vmatprep.subr.bf16.mxu0 0
    %3970 = vmatpush1.bf16.msra.mxu0 0
    %3971 = vmatprep.mubr.bf16.mxu0 0
    %3972 = vmatmul.mubr.bf16.gmra.mrb[0].mxu0 %v3922
    %v3973 = vpop.f32.mrb[0].mxu0
    %v3974 = vadd.f32 %v3914, %v3973
    %v3975 = vpop.f32.mrb[0].mxu0
    %v3976 = vpop.f32.mrb[0].mxu0
    %v3977 = vadd.f32 %v3914, %v3976
    %v3978 = vpop.f32.mrb[0].mxu0
    %3979 = vmatprep.mubr.bf16.mxu0 0
    %3980 = vmatmul.mubr.bf16.gmra.mrb[0].mxu0 %v3925
    %v3981 = vpop.f32.mrb[0].mxu0
    %v3982 = vadd.f32 %v3914, %v3981
    %v3983 = vpop.f32.mrb[0].mxu0
    %v3984 = vpop.f32.mrb[0].mxu0
    %v3985 = vadd.f32 %v3914, %v3984
    %v3986 = vpop.f32.mrb[0].mxu0
    %3987 = vmatprep.mubr.bf16.mxu0 0
    %3988 = vmatmul.mubr.bf16.gmra.mrb[0].mxu0 %v3928
    %v3989 = vpop.f32.mrb[0].mxu0
    %v3990 = vadd.f32 %v3914, %v3989
    %v3991 = vpop.f32.mrb[0].mxu0
    %v3992 = vpop.f32.mrb[0].mxu0
    %v3993 = vadd.f32 %v3914, %v3992
    %v3994 = vpop.f32.mrb[0].mxu0
    %3995 = vmatprep.mubr.bf16.mxu0 0
    %3996 = vmatmul.mubr.bf16.gmra.mrb[0].mxu0 %v3931
    %v3997 = vpop.f32.mrb[0].mxu0
    %v3998 = vadd.f32 %v3914, %v3997
    %v3999 = vpop.f32.mrb[0].mxu0
    %v4000 = vpop.f32.mrb[0].mxu0
    %v4001 = vadd.f32 %v3914, %v4000
    %v4002 = vpop.f32.mrb[0].mxu0
    %4003 = vmatprep.mubr.bf16.mxu0 0
    %4004 = vmatmul.mubr.bf16.gmra.mrb[0].mxu0 %v3934
    %v4005 = vpop.f32.mrb[0].mxu0
    %v4006 = vadd.f32 %v3914, %v4005
    %v4007 = vpop.f32.mrb[0].mxu0
    %v4008 = vpop.f32.mrb[0].mxu0
    %v4009 = vadd.f32 %v3914, %v4008
    %v4010 = vpop.f32.mrb[0].mxu0
    %4011 = vmatprep.mubr.bf16.mxu0 0
    %4012 = vmatmul.mubr.bf16.gmra.mrb[0].mxu0 %v3937
    %v4013 = vpop.f32.mrb[0].mxu0
    %v4014 = vadd.f32 %v3914, %v4013
    %v4015 = vpop.f32.mrb[0].mxu0
    %v4016 = vpop.f32.mrb[0].mxu0
    %v4017 = vpop.f32.mrb[0].mxu0
    %4018 = vdwg.mxu0
    %4030 = vrot.lane.b32.xlu0 %v3974, 16
    %v4031 = vpop.permute.xlu0 %4030
    %4032 = vrot.lane.b32.xlu0 %v3977, 16
    %v4033 = vpop.permute.xlu0 %4032
    %4034 = vrot.lane.b32.xlu0 %v3982, 16
    %v4035 = vpop.permute.xlu0 %4034
    %4036 = vrot.lane.b32.xlu0 %v3985, 16
    %v4037 = vpop.permute.xlu0 %4036
    %4038 = vrot.lane.b32.xlu0 %v3990, 16
    %v4039 = vpop.permute.xlu0 %4038
    %4040 = vrot.lane.b32.xlu0 %v3993, 16
    %v4041 = vpop.permute.xlu0 %4040
    %4042 = vrot.lane.b32.xlu0 %v3998, 16
    %v4043 = vpop.permute.xlu0 %4042
    %4044 = vrot.lane.b32.xlu0 %v4001, 16
    %v4045 = vpop.permute.xlu0 %4044
    %4046 = vrot.lane.b32.xlu0 %v4006, 16
    %v4047 = vpop.permute.xlu0 %4046
    %4048 = vrot.lane.b32.xlu0 %v4009, 16
    %v4049 = vpop.permute.xlu0 %4048
    %4050 = vrot.lane.b32.xlu0 %v4014, 16
    %v4051 = vpop.permute.xlu0 %4050
    %v4063 = vadd.f32 %v3670, %v4031
    %v4064 = vadd.f32 %v3671, %v4033
    %v4065 = vadd.f32 %v3672, %v4035
    %v4066 = vadd.f32 %v3673, %v4037
    %v4067 = vadd.f32 %v3674, %v4039
    %v4068 = vadd.f32 %v3675, %v4041
    %v4069 = vadd.f32 %v3676, %v4043
    %v4070 = vadd.f32 %v3677, %v4045
    %v4071 = vadd.f32 %v3678, %v4047
    %v4072 = vadd.f32 %v3679, %v4049
    %v4073 = vadd.f32 %v3680, %v4051
    %vm4074 = vcmask 1041408
    %v4075 = vrot.slane %v3974, 6
    %v4076 = vrot.slane %v3977, 6
    %v4077 = vsel %vm4074, %v4075, %v4076
    %v4078 = vrot.slane %v3982, 6
    %v4079 = vsel %vm4074, %v4076, %v4078
    %v4080 = vrot.slane %v3985, 6
    %v4081 = vsel %vm4074, %v4078, %v4080
    %v4082 = vrot.slane %v3990, 6
    %v4083 = vsel %vm4074, %v4080, %v4082
    %v4084 = vrot.slane %v3993, 6
    %v4085 = vsel %vm4074, %v4082, %v4084
    %v4086 = vrot.slane %v3998, 6
    %v4087 = vsel %vm4074, %v4084, %v4086
    %v4088 = vrot.slane %v4001, 6
    %v4089 = vsel %vm4074, %v4086, %v4088
    %v4090 = vrot.slane %v4006, 6
    %v4091 = vsel %vm4074, %v4088, %v4090
    %v4092 = vrot.slane %v4009, 6
    %v4093 = vsel %vm4074, %v4090, %v4092
    %v4094 = vrot.slane %v4014, 6
    %v4095 = vsel %vm4074, %v4092, %v4094
    %v4106 = vadd.f32 %v3410, %v4077
    %v4107 = vadd.f32 %v3411, %v4079
    %v4108 = vadd.f32 %v3412, %v4081
    %v4109 = vadd.f32 %v3413, %v4083
    %v4110 = vadd.f32 %v3414, %v4085
    %v4111 = vadd.f32 %v3415, %v4087
    %v4112 = vadd.f32 %v3416, %v4089
    %v4113 = vadd.f32 %v3417, %v4091
    %v4114 = vadd.f32 %v3418, %v4093
    %v4115 = vadd.f32 %v3419, %v4095
    %s4116 = scalar_lea.vmem %s5, 40
    %v4117 = vld [vmem:[%s4116] sm:$0xff]
    %v4118 = vsel %vm1046, %v4063, 0.0
    %v4119 = vsel %vm1046, %v4064, 0.0
    %v4120 = vadd.f32 %v4118, %v4119
    %v4121 = vsel %vm1046, %v4065, 0.0
    %v4122 = vadd.f32 %v4120, %v4121
    %v4123 = vsel %vm1046, %v4066, 0.0
    %v4124 = vadd.f32 %v4122, %v4123
    %v4125 = vsel %vm1046, %v4067, 0.0
    %v4126 = vadd.f32 %v4124, %v4125
    %v4127 = vsel %vm1046, %v4068, 0.0
    %v4128 = vadd.f32 %v4126, %v4127
    %v4129 = vsel %vm1046, %v4069, 0.0
    %v4130 = vadd.f32 %v4128, %v4129
    %v4131 = vsel %vm1046, %v4070, 0.0
    %v4132 = vadd.f32 %v4130, %v4131
    %v4133 = vsel %vm1046, %v4071, 0.0
    %v4134 = vadd.f32 %v4132, %v4133
    %v4135 = vsel %vm1046, %v4072, 0.0
    %v4136 = vadd.f32 %v4134, %v4135
    %v4137 = vsel %vm1046, %v4073, 0.0
    %v4138 = vadd.f32 %v4136, %v4137
    %v4139 = vrot.slane %v4138, 4
    %v4140 = vadd.f32 %v4138, %v4139
    %v4141 = vrot.slane %v4140, 2
    %v4142 = vadd.f32 %v4140, %v4141
    %v4143 = vrot.slane %v4142, 1
    %v4144 = vadd.f32 %v4142, %v4143
    %v4145 = vrcp.pop 88.0
    %v4146 = vmul.f32 %v4144, %v4145
    %v4147 = vmul.f32 %v4063, %v4063
    %v4148 = vmul.f32 %v4064, %v4064
    %v4149 = vmul.f32 %v4065, %v4065
    %v4150 = vmul.f32 %v4066, %v4066
    %v4151 = vmul.f32 %v4067, %v4067
    %v4152 = vmul.f32 %v4068, %v4068
    %v4153 = vmul.f32 %v4069, %v4069
    %v4154 = vmul.f32 %v4070, %v4070
    %v4155 = vmul.f32 %v4071, %v4071
    %v4156 = vmul.f32 %v4072, %v4072
    %v4157 = vmul.f32 %v4073, %v4073
    %v4158 = vsel %vm1046, %v4147, 0.0
    %v4159 = vsel %vm1046, %v4148, 0.0
    %v4160 = vadd.f32 %v4158, %v4159
    %v4161 = vsel %vm1046, %v4149, 0.0
    %v4162 = vadd.f32 %v4160, %v4161
    %v4163 = vsel %vm1046, %v4150, 0.0
    %v4164 = vadd.f32 %v4162, %v4163
    %v4165 = vsel %vm1046, %v4151, 0.0
    %v4166 = vadd.f32 %v4164, %v4165
    %v4167 = vsel %vm1046, %v4152, 0.0
    %v4168 = vadd.f32 %v4166, %v4167
    %v4169 = vsel %vm1046, %v4153, 0.0
    %v4170 = vadd.f32 %v4168, %v4169
    %v4171 = vsel %vm1046, %v4154, 0.0
    %v4172 = vadd.f32 %v4170, %v4171
    %v4173 = vsel %vm1046, %v4155, 0.0
    %v4174 = vadd.f32 %v4172, %v4173
    %v4175 = vsel %vm1046, %v4156, 0.0
    %v4176 = vadd.f32 %v4174, %v4175
    %v4177 = vsel %vm1046, %v4157, 0.0
    %v4178 = vadd.f32 %v4176, %v4177
    %v4179 = vrot.slane %v4178, 4
    %v4180 = vadd.f32 %v4178, %v4179
    %v4181 = vrot.slane %v4180, 2
    %v4182 = vadd.f32 %v4180, %v4181
    %v4183 = vrot.slane %v4182, 1
    %v4184 = vadd.f32 %v4182, %v4183
    %v4185 = vmul.f32 %v4184, %v4145
    %v4186 = vmul.f32 %v4146, %v4146
    %v4187 = vsub.f32 %v4185, %v4186
    %v4188 = vadd.f32 %v4187, 1e-05
    %v4189 = vrsqrt.pop %v4188
    %4191 = vrot.lane.b32.xlu0 %v4117, 16
    %v4192 = vpop.permute.xlu0 %4191
    %v4194 = vmul.f32 %v4189, %v4192
    %v4195 = vlaneseq
    %v4196 = vshrl.u32 %v4195, 7
    %v4197 = vsub.s32 0, %v4196
    %v4198 = vrot.slane %v4194, %v4197
    %v4199 = vmul.f32 %v4063, %v4198
    %v4200 = vmul.f32 %v4064, %v4198
    %v4201 = vmul.f32 %v4065, %v4198
    %v4202 = vmul.f32 %v4066, %v4198
    %v4203 = vmul.f32 %v4067, %v4198
    %v4204 = vmul.f32 %v4068, %v4198
    %v4205 = vmul.f32 %v4069, %v4198
    %v4206 = vmul.f32 %v4070, %v4198
    %v4207 = vmul.f32 %v4071, %v4198
    %v4208 = vmul.f32 %v4072, %v4198
    %v4209 = vmul.f32 %v4073, %v4198
    %v4210 = vmul.f32 %v4146, %v4194
    %v4212 = vrot.slane %v4210, 7
    %4213 = vrot.lane.b32.xlu0 %v4212, 112
    %v4214 = vpop.permute.xlu0 %4213
    %v4216 = vsub.f32 %v4117, %v4214
    %v4217 = vlaneseq
    %v4218 = vshrl.u32 %v4217, 7
    %v4219 = vsub.s32 1, %v4218
    %v4220 = vrot.slane %v4216, %v4219
    %4222 = vrot.lane.b32.xlu0 %v4220, 16
    %v4223 = vpop.permute.xlu0 %4222
    %v4225 = vadd.f32 %v4199, %v4223
    %v4226 = vadd.f32 %v4200, %v4223
    %v4227 = vadd.f32 %v4201, %v4223
    %v4228 = vadd.f32 %v4202, %v4223
    %v4229 = vadd.f32 %v4203, %v4223
    %v4230 = vadd.f32 %v4204, %v4223
    %v4231 = vadd.f32 %v4205, %v4223
    %v4232 = vadd.f32 %v4206, %v4223
    %v4233 = vadd.f32 %v4207, %v4223
    %v4234 = vadd.f32 %v4208, %v4223
    %v4235 = vadd.f32 %v4209, %v4223
    %4245 = vrot.lane.b32.xlu0 %v4225, 112
    %v4246 = vpop.permute.xlu0 %4245
    %4247 = vrot.lane.b32.xlu0 %v4226, 112
    %v4248 = vpop.permute.xlu0 %4247
    %4249 = vrot.lane.b32.xlu0 %v4227, 112
    %v4250 = vpop.permute.xlu0 %4249
    %4251 = vrot.lane.b32.xlu0 %v4228, 112
    %v4252 = vpop.permute.xlu0 %4251
    %4253 = vrot.lane.b32.xlu0 %v4229, 112
    %v4254 = vpop.permute.xlu0 %4253
    %4255 = vrot.lane.b32.xlu0 %v4230, 112
    %v4256 = vpop.permute.xlu0 %4255
    %4257 = vrot.lane.b32.xlu0 %v4231, 112
    %v4258 = vpop.permute.xlu0 %4257
    %4259 = vrot.lane.b32.xlu0 %v4232, 112
    %v4260 = vpop.permute.xlu0 %4259
    %4261 = vrot.lane.b32.xlu0 %v4233, 112
    %v4262 = vpop.permute.xlu0 %4261
    %4274 = vrot.lane.b32.xlu0 %v4227, 16
    %v4275 = vpop.permute.xlu0 %4274
    %4276 = vrot.lane.b32.xlu0 %v4228, 16
    %v4277 = vpop.permute.xlu0 %4276
    %4278 = vrot.lane.b32.xlu0 %v4229, 16
    %v4279 = vpop.permute.xlu0 %4278
    %4280 = vrot.lane.b32.xlu0 %v4230, 16
    %v4281 = vpop.permute.xlu0 %4280
    %4282 = vrot.lane.b32.xlu0 %v4231, 16
    %v4283 = vpop.permute.xlu0 %4282
    %4284 = vrot.lane.b32.xlu0 %v4232, 16
    %v4285 = vpop.permute.xlu0 %4284
    %4286 = vrot.lane.b32.xlu0 %v4233, 16
    %v4287 = vpop.permute.xlu0 %4286
    %4288 = vrot.lane.b32.xlu0 %v4234, 16
    %v4289 = vpop.permute.xlu0 %4288
    %4290 = vrot.lane.b32.xlu0 %v4235, 16
    %v4291 = vpop.permute.xlu0 %4290
    %v4301 = vsel %vm185, %v4246, %v4226
    %v4302 = vsel %vm185, %v4248, %v4227
    %v4303 = vsel %vm185, %v4250, %v4228
    %v4304 = vsel %vm185, %v4252, %v4229
    %v4305 = vsel %vm185, %v4254, %v4230
    %v4306 = vsel %vm185, %v4256, %v4231
    %v4307 = vsel %vm185, %v4258, %v4232
    %v4308 = vsel %vm185, %v4260, %v4233
    %v4309 = vsel %vm185, %v4262, %v4234
    %v4310 = vsel %vm520, %v4301, %v4275
    %v4311 = vsel %vm520, %v4302, %v4277
    %v4312 = vsel %vm520, %v4303, %v4279
    %v4313 = vsel %vm520, %v4304, %v4281
    %v4314 = vsel %vm520, %v4305, %v4283
    %v4315 = vsel %vm520, %v4306, %v4285
    %v4316 = vsel %vm520, %v4307, %v4287
    %v4317 = vsel %vm520, %v4308, %v4289
    %v4318 = vsel %vm520, %v4309, %v4291
    %v4319 = vpack.c.bf16 %v4311, %v4310
    %v4320 = vpack.c.bf16 %v4313, %v4312
    %v4321 = vpack.c.bf16 %v4315, %v4314
    %v4322 = vpack.c.bf16 %v4317, %v4316
    %v4323 = vpack.c.bf16 %v4318, %v4318
    %s4324 = scalar_lea.vmem %s2, 120
    %v4325 = vld [vmem:[%s4324] sm:$0xf]
    %v4326 = vld [vmem:[%s4324 + $0x4] sm:$0xf]
    %v4327 = vld [vmem:[%s4324 + $0x8] sm:$0xf]
    %v4328 = vld [vmem:[%s4324 + $0xc] sm:$0xf]
    %v4329 = vld [vmem:[%s4324 + $0x10] sm:$0xf]
    %v4330 = vld [vmem:[%s4324 + $0x14] sm:$0xf]
    %v4331 = vlaneseq
    %v4332 = vshrl.u32 %v4331, 7
    %v4333 = vsub.s32 2, %v4332
    %v4334 = vrot.slane %v4117, %v4333
    %v4341 = vunpack.c.l.b16 %v4325
    %v4342 = vunpack.c.l.b16 %v4326
    %v4343 = vunpack.c.l.b16 %v4327
    %v4344 = vunpack.c.l.b16 %v4328
    %v4345 = vunpack.c.l.b16 %v4329
    %v4346 = vunpack.c.l.b16 %v4330
    %v4347 = vpack.c.b16 %v4342, %v4341
    %v4348 = vpack.c.b16 %v4344, %v4343
    %v4349 = vpack.c.b16 %v4346, %v4345
    %v4354 = vsel %vm573, %v4319, 0
    %v4357 = vsel %vm573, %v4320, 0
    %v4360 = vsel %vm573, %v4321, 0
    %v4363 = vsel %vm573, %v4322, 0
    %v4366 = vsel %vm573, %v4323, 0
    %4368 = vmatprep.subr.bf16.mxu0 0
    %4369 = vmatpush1.bf16.msra.mxu0 %v4347
    %4370 = vmatprep.subr.bf16.mxu0 0
    %4371 = vmatpush1.bf16.msra.mxu0 %v4348
    %4372 = vmatprep.subr.bf16.mxu0 0
    %4373 = vmatpush1.bf16.msra.mxu0 %v4349
    %4374 = vmatprep.subr.bf16.mxu0 0
    %4375 = vmatpush1.bf16.msra.mxu0 0
    %4376 = vmatprep.subr.bf16.mxu0 0
    %4377 = vmatpush1.bf16.msra.mxu0 0
    %4378 = vmatprep.subr.bf16.mxu0 0
    %4379 = vmatpush1.bf16.msra.mxu0 0
    %4380 = vmatprep.subr.bf16.mxu0 0
    %4381 = vmatpush1.bf16.msra.mxu0 0
    %4382 = vmatprep.subr.bf16.mxu0 0
    %4383 = vmatpush1.bf16.msra.mxu0 0
    %4384 = vmatprep.subr.bf16.mxu0 0
    %4385 = vmatpush1.bf16.msra.mxu0 0
    %4386 = vmatprep.subr.bf16.mxu0 0
    %4387 = vmatpush1.bf16.msra.mxu0 0
    %4388 = vmatprep.subr.bf16.mxu0 0
    %4389 = vmatpush1.bf16.msra.mxu0 0
    %4390 = vmatprep.subr.bf16.mxu0 0
    %4391 = vmatpush1.bf16.msra.mxu0 0
    %4392 = vmatprep.subr.bf16.mxu0 0
    %4393 = vmatpush1.bf16.msra.mxu0 0
    %4394 = vmatprep.subr.bf16.mxu0 0
    %4395 = vmatpush1.bf16.msra.mxu0 0
    %4396 = vmatprep.subr.bf16.mxu0 0
    %4397 = vmatpush1.bf16.msra.mxu0 0
    %4398 = vmatprep.subr.bf16.mxu0 0
    %4399 = vmatpush1.bf16.msra.mxu0 0
    %4400 = vmatprep.mubr.bf16.mxu0 0
    %4401 = vmatmul.mubr.bf16.gmra.mrb[0].mxu0 %v4354
    %v4402 = vpop.f32.mrb[0].mxu0
    %v4403 = vadd.f32 %v4334, %v4402
    %v4404 = vpop.f32.mrb[0].mxu0
    %v4405 = vpop.f32.mrb[0].mxu0
    %v4406 = vadd.f32 %v4334, %v4405
    %v4407 = vpop.f32.mrb[0].mxu0
    %4408 = vmatprep.mubr.bf16.mxu0 0
    %4409 = vmatmul.mubr.bf16.gmra.mrb[0].mxu0 %v4357
    %v4410 = vpop.f32.mrb[0].mxu0
    %v4411 = vadd.f32 %v4334, %v4410
    %v4412 = vpop.f32.mrb[0].mxu0
    %v4413 = vpop.f32.mrb[0].mxu0
    %v4414 = vadd.f32 %v4334, %v4413
    %v4415 = vpop.f32.mrb[0].mxu0
    %4416 = vmatprep.mubr.bf16.mxu0 0
    %4417 = vmatmul.mubr.bf16.gmra.mrb[0].mxu0 %v4360
    %v4418 = vpop.f32.mrb[0].mxu0
    %v4419 = vadd.f32 %v4334, %v4418
    %v4420 = vpop.f32.mrb[0].mxu0
    %v4421 = vpop.f32.mrb[0].mxu0
    %v4422 = vadd.f32 %v4334, %v4421
    %v4423 = vpop.f32.mrb[0].mxu0
    %4424 = vmatprep.mubr.bf16.mxu0 0
    %4425 = vmatmul.mubr.bf16.gmra.mrb[0].mxu0 %v4363
    %v4426 = vpop.f32.mrb[0].mxu0
    %v4427 = vadd.f32 %v4334, %v4426
    %v4428 = vpop.f32.mrb[0].mxu0
    %v4429 = vpop.f32.mrb[0].mxu0
    %v4430 = vadd.f32 %v4334, %v4429
    %v4431 = vpop.f32.mrb[0].mxu0
    %4432 = vmatprep.mubr.bf16.mxu0 0
    %4433 = vmatmul.mubr.bf16.gmra.mrb[0].mxu0 %v4366
    %v4434 = vpop.f32.mrb[0].mxu0
    %v4435 = vadd.f32 %v4334, %v4434
    %v4436 = vpop.f32.mrb[0].mxu0
    %v4437 = vpop.f32.mrb[0].mxu0
    %v4438 = vpop.f32.mrb[0].mxu0
    %4439 = vdwg.mxu0
    %v4440 = vtanh.pop %v4403
    %v4441 = vtanh.pop %v4406
    %v4442 = vtanh.pop %v4411
    %v4443 = vtanh.pop %v4414
    %v4444 = vtanh.pop %v4419
    %v4445 = vtanh.pop %v4422
    %v4446 = vtanh.pop %v4427
    %v4447 = vtanh.pop %v4430
    %v4448 = vtanh.pop %v4435
    %v4449 = vmul.f32 %v4440, 0.5
    %v4450 = vmul.f32 %v4441, 0.5
    %v4451 = vmul.f32 %v4442, 0.5
    %v4452 = vmul.f32 %v4443, 0.5
    %v4453 = vmul.f32 %v4444, 0.5
    %v4454 = vmul.f32 %v4445, 0.5
    %v4455 = vmul.f32 %v4446, 0.5
    %v4456 = vmul.f32 %v4447, 0.5
    %v4457 = vmul.f32 %v4448, 0.5
    %v4458 = vadd.f32 %v4449, 0.5
    %v4459 = vadd.f32 %v4450, 0.5
    %v4460 = vadd.f32 %v4451, 0.5
    %v4461 = vadd.f32 %v4452, 0.5
    %v4462 = vadd.f32 %v4453, 0.5
    %v4463 = vadd.f32 %v4454, 0.5
    %v4464 = vadd.f32 %v4455, 0.5
    %v4465 = vadd.f32 %v4456, 0.5
    %v4466 = vadd.f32 %v4457, 0.5
    %4476 = vrot.lane.b32.xlu0 %v4458, 112
    %v4477 = vpop.permute.xlu0 %4476
    %4478 = vrot.lane.b32.xlu0 %v4459, 112
    %v4479 = vpop.permute.xlu0 %4478
    %4480 = vrot.lane.b32.xlu0 %v4460, 112
    %v4481 = vpop.permute.xlu0 %4480
    %4482 = vrot.lane.b32.xlu0 %v4461, 112
    %v4483 = vpop.permute.xlu0 %4482
    %4484 = vrot.lane.b32.xlu0 %v4462, 112
    %v4485 = vpop.permute.xlu0 %4484
    %4486 = vrot.lane.b32.xlu0 %v4463, 112
    %v4487 = vpop.permute.xlu0 %4486
    %4488 = vrot.lane.b32.xlu0 %v4464, 112
    %v4489 = vpop.permute.xlu0 %4488
    %4490 = vrot.lane.b32.xlu0 %v4465, 112
    %v4491 = vpop.permute.xlu0 %4490
    %4492 = vrot.lane.b32.xlu0 %v4466, 112
    %v4493 = vpop.permute.xlu0 %4492
    %v4503 = vmul.f32 %v4440, %v4477
    %v4504 = vmul.f32 %v4441, %v4479
    %v4505 = vmul.f32 %v4442, %v4481
    %v4506 = vmul.f32 %v4443, %v4483
    %v4507 = vmul.f32 %v4444, %v4485
    %v4508 = vmul.f32 %v4445, %v4487
    %v4509 = vmul.f32 %v4446, %v4489
    %v4510 = vmul.f32 %v4447, %v4491
    %v4511 = vmul.f32 %v4448, %v4493
    %v4512 = vpack.c.bf16 %v4504, %v4503
    %v4513 = vpack.c.bf16 %v4506, %v4505
    %v4514 = vpack.c.bf16 %v4508, %v4507
    %v4515 = vpack.c.bf16 %v4510, %v4509
    %v4516 = vpack.c.bf16 %v4511, %v4511
    %s4517 = scalar_lea.vmem %s3, 40
    %v4518 = vld [vmem:[%s4517] sm:$0xf]
    %v4519 = vld [vmem:[%s4517 + $0x4] sm:$0xf]
    %v4520 = vlaneseq
    %v4521 = vshrl.u32 %v4520, 7
    %v4522 = vsub.s32 3, %v4521
    %v4523 = vrot.slane %v4117, %v4522
    %v4526 = vunpack.c.l.b16 %v4518
    %v4527 = vunpack.c.l.b16 %v4519
    %v4528 = vpack.c.b16 %v4527, %v4526
    %v4531 = vsel %vm185, %v4512, 0
    %v4534 = vsel %vm185, %v4513, 0
    %v4537 = vsel %vm185, %v4514, 0
    %v4540 = vsel %vm185, %v4515, 0
    %v4543 = vsel %vm185, %v4516, 0
    %4545 = vmatprep.subr.bf16.mxu0 0
    %4546 = vmatpush1.bf16.msra.mxu0 %v4528
    %4547 = vmatprep.subr.bf16.mxu0 0
    %4548 = vmatpush1.bf16.msra.mxu0 0
    %4549 = vmatprep.subr.bf16.mxu0 0
    %4550 = vmatpush1.bf16.msra.mxu0 0
    %4551 = vmatprep.subr.bf16.mxu0 0
    %4552 = vmatpush1.bf16.msra.mxu0 0
    %4553 = vmatprep.subr.bf16.mxu0 0
    %4554 = vmatpush1.bf16.msra.mxu0 0
    %4555 = vmatprep.subr.bf16.mxu0 0
    %4556 = vmatpush1.bf16.msra.mxu0 0
    %4557 = vmatprep.subr.bf16.mxu0 0
    %4558 = vmatpush1.bf16.msra.mxu0 0
    %4559 = vmatprep.subr.bf16.mxu0 0
    %4560 = vmatpush1.bf16.msra.mxu0 0
    %4561 = vmatprep.subr.bf16.mxu0 0
    %4562 = vmatpush1.bf16.msra.mxu0 0
    %4563 = vmatprep.subr.bf16.mxu0 0
    %4564 = vmatpush1.bf16.msra.mxu0 0
    %4565 = vmatprep.subr.bf16.mxu0 0
    %4566 = vmatpush1.bf16.msra.mxu0 0
    %4567 = vmatprep.subr.bf16.mxu0 0
    %4568 = vmatpush1.bf16.msra.mxu0 0
    %4569 = vmatprep.subr.bf16.mxu0 0
    %4570 = vmatpush1.bf16.msra.mxu0 0
    %4571 = vmatprep.subr.bf16.mxu0 0
    %4572 = vmatpush1.bf16.msra.mxu0 0
    %4573 = vmatprep.subr.bf16.mxu0 0
    %4574 = vmatpush1.bf16.msra.mxu0 0
    %4575 = vmatprep.subr.bf16.mxu0 0
    %4576 = vmatpush1.bf16.msra.mxu0 0
    %4577 = vmatprep.mubr.bf16.mxu0 0
    %4578 = vmatmul.mubr.bf16.gmra.mrb[0].mxu0 %v4531
    %v4579 = vpop.f32.mrb[0].mxu0
    %v4580 = vadd.f32 %v4523, %v4579
    %v4581 = vpop.f32.mrb[0].mxu0
    %v4582 = vpop.f32.mrb[0].mxu0
    %v4583 = vadd.f32 %v4523, %v4582
    %v4584 = vpop.f32.mrb[0].mxu0
    %4585 = vmatprep.mubr.bf16.mxu0 0
    %4586 = vmatmul.mubr.bf16.gmra.mrb[0].mxu0 %v4534
    %v4587 = vpop.f32.mrb[0].mxu0
    %v4588 = vadd.f32 %v4523, %v4587
    %v4589 = vpop.f32.mrb[0].mxu0
    %v4590 = vpop.f32.mrb[0].mxu0
    %v4591 = vadd.f32 %v4523, %v4590
    %v4592 = vpop.f32.mrb[0].mxu0
    %4593 = vmatprep.mubr.bf16.mxu0 0
    %4594 = vmatmul.mubr.bf16.gmra.mrb[0].mxu0 %v4537
    %v4595 = vpop.f32.mrb[0].mxu0
    %v4596 = vadd.f32 %v4523, %v4595
    %v4597 = vpop.f32.mrb[0].mxu0
    %v4598 = vpop.f32.mrb[0].mxu0
    %v4599 = vadd.f32 %v4523, %v4598
    %v4600 = vpop.f32.mrb[0].mxu0
    %4601 = vmatprep.mubr.bf16.mxu0 0
    %4602 = vmatmul.mubr.bf16.gmra.mrb[0].mxu0 %v4540
    %v4603 = vpop.f32.mrb[0].mxu0
    %v4604 = vadd.f32 %v4523, %v4603
    %v4605 = vpop.f32.mrb[0].mxu0
    %v4606 = vpop.f32.mrb[0].mxu0
    %v4607 = vadd.f32 %v4523, %v4606
    %v4608 = vpop.f32.mrb[0].mxu0
    %4609 = vmatprep.mubr.bf16.mxu0 0
    %4610 = vmatmul.mubr.bf16.gmra.mrb[0].mxu0 %v4543
    %v4611 = vpop.f32.mrb[0].mxu0
    %v4612 = vadd.f32 %v4523, %v4611
    %v4613 = vpop.f32.mrb[0].mxu0
    %v4614 = vpop.f32.mrb[0].mxu0
    %v4615 = vpop.f32.mrb[0].mxu0
    %4616 = vdwg.mxu0
    %v4626 = vrot.slane %v4580, 6
    %v4627 = vrot.slane %v4583, 6
    %v4628 = vsel %vm4074, %v4626, %v4627
    %v4629 = vrot.slane %v4588, 6
    %v4630 = vsel %vm4074, %v4627, %v4629
    %v4631 = vrot.slane %v4591, 6
    %v4632 = vsel %vm4074, %v4629, %v4631
    %v4633 = vrot.slane %v4596, 6
    %v4634 = vsel %vm4074, %v4631, %v4633
    %v4635 = vrot.slane %v4599, 6
    %v4636 = vsel %vm4074, %v4633, %v4635
    %v4637 = vrot.slane %v4604, 6
    %v4638 = vsel %vm4074, %v4635, %v4637
    %v4639 = vrot.slane %v4607, 6
    %v4640 = vsel %vm4074, %v4637, %v4639
    %v4641 = vrot.slane %v4612, 6
    %v4642 = vsel %vm4074, %v4639, %v4641
    %v4653 = vadd.f32 %v4106, %v4626
    %v4654 = vadd.f32 %v4107, %v4628
    %v4655 = vadd.f32 %v4108, %v4630
    %v4656 = vadd.f32 %v4109, %v4632
    %v4657 = vadd.f32 %v4110, %v4634
    %v4658 = vadd.f32 %v4111, %v4636
    %v4659 = vadd.f32 %v4112, %v4638
    %v4660 = vadd.f32 %v4113, %v4640
    %v4661 = vadd.f32 %v4114, %v4642
    %v4662 = vadd.f32 %v4115, %v4641
    %v4663 = vmax.f32 %v4653, 0.0
    %v4664 = vmax.f32 %v4654, 0.0
    %v4665 = vmax.f32 %v4655, 0.0
    %v4666 = vmax.f32 %v4656, 0.0
    %v4667 = vmax.f32 %v4657, 0.0
    %v4668 = vmax.f32 %v4658, 0.0
    %v4669 = vmax.f32 %v4659, 0.0
    %v4670 = vmax.f32 %v4660, 0.0
    %v4671 = vmax.f32 %v4661, 0.0
    %v4672 = vmax.f32 %v4662, 0.0
    %v4673 = vpack.c.bf16 %v4664, %v4663
    %v4674 = vpack.c.bf16 %v4666, %v4665
    %v4675 = vpack.c.bf16 %v4668, %v4667
    %v4676 = vpack.c.bf16 %v4670, %v4669
    %v4677 = vpack.c.bf16 %v4672, %v4671
    %v4678 = vld [vmem:[%s4] sm:$0xf]
    %v4679 = vld [vmem:[%s4 + $0x4] sm:$0xf]
    %v4680 = vld [vmem:[%s4 + $0x8] sm:$0xf]
    %v4681 = vld [vmem:[%s4 + $0xc] sm:$0xf]
    %v4682 = vlaneseq
    %v4683 = vshrl.u32 %v4682, 7
    %v4684 = vsub.s32 1, %v4683
    %v4685 = vrot.slane %v28, %v4684
    %vm4691 = vcmask 1046528
    %v4692 = vrot.slane %v4673, 1
    %v4693 = vrot.slane %v4674, 1
    %v4694 = vsel %vm4691, %v4692, %v4693
    %v4695 = vrot.slane %v4675, 1
    %v4696 = vsel %vm4691, %v4693, %v4695
    %v4697 = vrot.slane %v4676, 1
    %v4698 = vsel %vm4691, %v4695, %v4697
    %v4699 = vrot.slane %v4677, 1
    %v4700 = vsel %vm4691, %v4697, %v4699
    %4701 = vrot.lane.b32.xlu0 %v4694, 112
    %v4702 = vpop.permute.xlu0 %4701
    %4703 = vrot.lane.b32.xlu0 %v4696, 112
    %v4704 = vpop.permute.xlu0 %4703
    %4705 = vrot.lane.b32.xlu0 %v4698, 112
    %v4706 = vpop.permute.xlu0 %4705
    %4707 = vrot.lane.b32.xlu0 %v4700, 112
    %v4708 = vpop.permute.xlu0 %4707
    %4709 = vrot.lane.b32.xlu0 %v4699, 112
    %v4710 = vpop.permute.xlu0 %4709
    %v4715 = vunpack.c.l.b16 %v4678
    %v4716 = vunpack.c.l.b16 %v4679
    %v4717 = vunpack.c.l.b16 %v4680
    %v4718 = vunpack.c.l.b16 %v4681
    %v4719 = vpack.c.b16 %v4716, %v4715
    %v4720 = vpack.c.b16 %v4718, %v4717
    %v4724 = vsel %vm520, %v4702, 0
    %v4727 = vsel %vm520, %v4704, 0
    %v4730 = vsel %vm520, %v4706, 0
    %v4733 = vsel %vm520, %v4708, 0
    %v4736 = vsel %vm520, %v4710, 0
    %4738 = vmatprep.subr.bf16.mxu0 0
    %4739 = vmatpush1.bf16.msra.mxu0 %v4719
    %4740 = vmatprep.subr.bf16.mxu0 0
    %4741 = vmatpush1.bf16.msra.mxu0 %v4720
    %4742 = vmatprep.subr.bf16.mxu0 0
    %4743 = vmatpush1.bf16.msra.mxu0 0
    %4744 = vmatprep.subr.bf16.mxu0 0
    %4745 = vmatpush1.bf16.msra.mxu0 0
    %4746 = vmatprep.subr.bf16.mxu0 0
    %4747 = vmatpush1.bf16.msra.mxu0 0
    %4748 = vmatprep.subr.bf16.mxu0 0
    %4749 = vmatpush1.bf16.msra.mxu0 0
    %4750 = vmatprep.subr.bf16.mxu0 0
    %4751 = vmatpush1.bf16.msra.mxu0 0
    %4752 = vmatprep.subr.bf16.mxu0 0
    %4753 = vmatpush1.bf16.msra.mxu0 0
    %4754 = vmatprep.subr.bf16.mxu0 0
    %4755 = vmatpush1.bf16.msra.mxu0 0
    %4756 = vmatprep.subr.bf16.mxu0 0
    %4757 = vmatpush1.bf16.msra.mxu0 0
    %4758 = vmatprep.subr.bf16.mxu0 0
    %4759 = vmatpush1.bf16.msra.mxu0 0
    %4760 = vmatprep.subr.bf16.mxu0 0
    %4761 = vmatpush1.bf16.msra.mxu0 0
    %4762 = vmatprep.subr.bf16.mxu0 0
    %4763 = vmatpush1.bf16.msra.mxu0 0
    %4764 = vmatprep.subr.bf16.mxu0 0
    %4765 = vmatpush1.bf16.msra.mxu0 0
    %4766 = vmatprep.subr.bf16.mxu0 0
    %4767 = vmatpush1.bf16.msra.mxu0 0
    %4768 = vmatprep.subr.bf16.mxu0 0
    %4769 = vmatpush1.bf16.msra.mxu0 0
    %4770 = vmatprep.mubr.bf16.mxu0 0
    %4771 = vmatmul.mubr.bf16.gmra.mrb[0].mxu0 %v4724
    %v4772 = vpop.f32.mrb[0].mxu0
    %v4773 = vadd.f32 %v4685, %v4772
    %v4774 = vpop.f32.mrb[0].mxu0
    %v4775 = vpop.f32.mrb[0].mxu0
    %v4776 = vadd.f32 %v4685, %v4775
    %v4777 = vpop.f32.mrb[0].mxu0
    %4778 = vmatprep.mubr.bf16.mxu0 0
    %4779 = vmatmul.mubr.bf16.gmra.mrb[0].mxu0 %v4727
    %v4780 = vpop.f32.mrb[0].mxu0
    %v4781 = vadd.f32 %v4685, %v4780
    %v4782 = vpop.f32.mrb[0].mxu0
    %v4783 = vpop.f32.mrb[0].mxu0
    %v4784 = vadd.f32 %v4685, %v4783
    %v4785 = vpop.f32.mrb[0].mxu0
    %4786 = vmatprep.mubr.bf16.mxu0 0
    %4787 = vmatmul.mubr.bf16.gmra.mrb[0].mxu0 %v4730
    %v4788 = vpop.f32.mrb[0].mxu0
    %v4789 = vadd.f32 %v4685, %v4788
    %v4790 = vpop.f32.mrb[0].mxu0
    %v4791 = vpop.f32.mrb[0].mxu0
    %v4792 = vadd.f32 %v4685, %v4791
    %v4793 = vpop.f32.mrb[0].mxu0
    %4794 = vmatprep.mubr.bf16.mxu0 0
    %4795 = vmatmul.mubr.bf16.gmra.mrb[0].mxu0 %v4733
    %v4796 = vpop.f32.mrb[0].mxu0
    %v4797 = vadd.f32 %v4685, %v4796
    %v4798 = vpop.f32.mrb[0].mxu0
    %v4799 = vpop.f32.mrb[0].mxu0
    %v4800 = vadd.f32 %v4685, %v4799
    %v4801 = vpop.f32.mrb[0].mxu0
    %4802 = vmatprep.mubr.bf16.mxu0 0
    %4803 = vmatmul.mubr.bf16.gmra.mrb[0].mxu0 %v4736
    %v4804 = vpop.f32.mrb[0].mxu0
    %v4805 = vadd.f32 %v4685, %v4804
    %v4806 = vpop.f32.mrb[0].mxu0
    %v4807 = vpop.f32.mrb[0].mxu0
    %v4808 = vpop.f32.mrb[0].mxu0
    %4809 = vdwg.mxu0
    %v4810 = vmax.f32 %v4773, 0.0
    %v4811 = vmax.f32 %v4776, 0.0
    %v4812 = vmax.f32 %v4781, 0.0
    %v4813 = vmax.f32 %v4784, 0.0
    %v4814 = vmax.f32 %v4789, 0.0
    %v4815 = vmax.f32 %v4792, 0.0
    %v4816 = vmax.f32 %v4797, 0.0
    %v4817 = vmax.f32 %v4800, 0.0
    %v4818 = vmax.f32 %v4805, 0.0
    %v4819 = vlaneseq
    %v4820 = vshrl.u32 %v4819, 7
    %v4821 = vsub.s32 2, %v4820
    %v4822 = vrot.slane %v28, %v4821
    %v4823 = vmul.f32 %v4810, %v4822
    %v4824 = vmul.f32 %v4811, %v4822
    %v4825 = vmul.f32 %v4812, %v4822
    %v4826 = vmul.f32 %v4813, %v4822
    %v4827 = vmul.f32 %v4814, %v4822
    %v4828 = vmul.f32 %v4815, %v4822
    %v4829 = vmul.f32 %v4816, %v4822
    %v4830 = vmul.f32 %v4817, %v4822
    %v4831 = vmul.f32 %v4818, %v4822
    %v4832 = vsel %vm520, %v4823, 0.0
    %4833 = vadd.xlane.f32.xlu0 %v4832
    %v4834 = vpop.xlane.xlu0 %4833
    %v4835 = vsel %vm520, %v4824, 0.0
    %4836 = vadd.xlane.f32.xlu0 %v4835
    %v4837 = vpop.xlane.xlu0 %4836
    %v4838 = vsel %vm520, %v4825, 0.0
    %4839 = vadd.xlane.f32.xlu0 %v4838
    %v4840 = vpop.xlane.xlu0 %4839
    %v4841 = vsel %vm520, %v4826, 0.0
    %4842 = vadd.xlane.f32.xlu0 %v4841
    %v4843 = vpop.xlane.xlu0 %4842
    %v4844 = vsel %vm520, %v4827, 0.0
    %4845 = vadd.xlane.f32.xlu0 %v4844
    %v4846 = vpop.xlane.xlu0 %4845
    %v4847 = vsel %vm520, %v4828, 0.0
    %4848 = vadd.xlane.f32.xlu0 %v4847
    %v4849 = vpop.xlane.xlu0 %4848
    %v4850 = vsel %vm520, %v4829, 0.0
    %4851 = vadd.xlane.f32.xlu0 %v4850
    %v4852 = vpop.xlane.xlu0 %4851
    %v4853 = vsel %vm520, %v4830, 0.0
    %4854 = vadd.xlane.f32.xlu0 %v4853
    %v4855 = vpop.xlane.xlu0 %4854
    %v4856 = vsel %vm520, %v4831, 0.0
    %4857 = vadd.xlane.f32.xlu0 %v4856
    %v4858 = vpop.xlane.xlu0 %4857
    %v4859 = vlaneseq
    %v4860 = vshrl.u32 %v4859, 7
    %v4861 = vsub.s32 3, %v4860
    %v4862 = vrot.slane %v28, %v4861
    %v4863 = vadd.f32 %v4834, %v4862
    %v4864 = vadd.f32 %v4837, %v4862
    %v4865 = vadd.f32 %v4840, %v4862
    %v4866 = vadd.f32 %v4843, %v4862
    %v4867 = vadd.f32 %v4846, %v4862
    %v4868 = vadd.f32 %v4849, %v4862
    %v4869 = vadd.f32 %v4852, %v4862
    %v4870 = vadd.f32 %v4855, %v4862
    %v4871 = vadd.f32 %v4858, %v4862
    %v4872 = vlaneseq
    %v4873 = vshrl.u32 %v4872, 7
    %v4874 = vadd.s32 %v4873, 8
    %v4875 = vadd.s32 %v4873, 16
    %v4876 = vadd.s32 %v4873, 24
    %v4877 = vadd.s32 %v4873, 32
    %v4878 = vadd.s32 %v4873, 40
    %v4879 = vadd.s32 %v4873, 48
    %v4880 = vadd.s32 %v4873, 56
    %v4881 = vadd.s32 %v4873, 64
    %v4882 = vlaneseq
    %v4883 = vand.u32 %v4882, 127
    %vm4884 = vcmp.lt.s32.totalorder %v4873, 0
    %v4885 = vsub.s32 0, %v4873
    %v4886 = vsel %vm4884, %v4885, %v4873
    %v4887 = vshrl.u32 %v4886, 1
    %v4888 = vand.u32 %v4886, 1
    %v4889 = vsub.s32 0, %v4888
    %v4890 = vsel %vm4884, %v4889, %v4888
    %vm4891 = vcmp.lt.s32.totalorder %v4874, 0
    %v4892 = vsub.s32 0, %v4874
    %v4893 = vsel %vm4891, %v4892, %v4874
    %v4894 = vshrl.u32 %v4893, 1
    %v4895 = vand.u32 %v4893, 1
    %v4896 = vsub.s32 0, %v4895
    %v4897 = vsel %vm4891, %v4896, %v4895
    %vm4898 = vcmp.lt.s32.totalorder %v4875, 0
    %v4899 = vsub.s32 0, %v4875
    %v4900 = vsel %vm4898, %v4899, %v4875
    %v4901 = vshrl.u32 %v4900, 1
    %v4902 = vand.u32 %v4900, 1
    %v4903 = vsub.s32 0, %v4902
    %v4904 = vsel %vm4898, %v4903, %v4902
    %vm4905 = vcmp.lt.s32.totalorder %v4876, 0
    %v4906 = vsub.s32 0, %v4876
    %v4907 = vsel %vm4905, %v4906, %v4876
    %v4908 = vshrl.u32 %v4907, 1
    %v4909 = vand.u32 %v4907, 1
    %v4910 = vsub.s32 0, %v4909
    %v4911 = vsel %vm4905, %v4910, %v4909
    %vm4912 = vcmp.lt.s32.totalorder %v4877, 0
    %v4913 = vsub.s32 0, %v4877
    %v4914 = vsel %vm4912, %v4913, %v4877
    %v4915 = vshrl.u32 %v4914, 1
    %v4916 = vand.u32 %v4914, 1
    %v4917 = vsub.s32 0, %v4916
    %v4918 = vsel %vm4912, %v4917, %v4916
    %vm4919 = vcmp.lt.s32.totalorder %v4878, 0
    %v4920 = vsub.s32 0, %v4878
    %v4921 = vsel %vm4919, %v4920, %v4878
    %v4922 = vshrl.u32 %v4921, 1
    %v4923 = vand.u32 %v4921, 1
    %v4924 = vsub.s32 0, %v4923
    %v4925 = vsel %vm4919, %v4924, %v4923
    %vm4926 = vcmp.lt.s32.totalorder %v4879, 0
    %v4927 = vsub.s32 0, %v4879
    %v4928 = vsel %vm4926, %v4927, %v4879
    %v4929 = vshrl.u32 %v4928, 1
    %v4930 = vand.u32 %v4928, 1
    %v4931 = vsub.s32 0, %v4930
    %v4932 = vsel %vm4926, %v4931, %v4930
    %vm4933 = vcmp.lt.s32.totalorder %v4880, 0
    %v4934 = vsub.s32 0, %v4880
    %v4935 = vsel %vm4933, %v4934, %v4880
    %v4936 = vshrl.u32 %v4935, 1
    %v4937 = vand.u32 %v4935, 1
    %v4938 = vsub.s32 0, %v4937
    %v4939 = vsel %vm4933, %v4938, %v4937
    %vm4940 = vcmp.lt.s32.totalorder %v4881, 0
    %v4941 = vsub.s32 0, %v4881
    %v4942 = vsel %vm4940, %v4941, %v4881
    %v4943 = vshrl.u32 %v4942, 1
    %v4944 = vand.u32 %v4942, 1
    %v4945 = vsub.s32 0, %v4944
    %v4946 = vsel %vm4940, %v4945, %v4944
    %vm4947 = vcmp.ne.s32.totalorder %v4890, 0
    %vm4948 = vcmp.ne.s32.totalorder %v4897, 0
    %vm4949 = vcmp.ne.s32.totalorder %v4904, 0
    %vm4950 = vcmp.ne.s32.totalorder %v4911, 0
    %vm4951 = vcmp.ne.s32.totalorder %v4918, 0
    %vm4952 = vcmp.ne.s32.totalorder %v4925, 0
    %vm4953 = vcmp.ne.s32.totalorder %v4932, 0
    %vm4954 = vcmp.ne.s32.totalorder %v4939, 0
    %vm4955 = vcmp.ne.s32.totalorder %v4946, 0
    %vm4956 = vcmp.lt.s32.totalorder %v4890, 0
    %vm4957 = vcmp.lt.s32.totalorder %v4897, 0
    %vm4958 = vcmp.lt.s32.totalorder %v4904, 0
    %vm4959 = vcmp.lt.s32.totalorder %v4911, 0
    %vm4960 = vcmp.lt.s32.totalorder %v4918, 0
    %vm4961 = vcmp.lt.s32.totalorder %v4925, 0
    %vm4962 = vcmp.lt.s32.totalorder %v4932, 0
    %vm4963 = vcmp.lt.s32.totalorder %v4939, 0
    %vm4964 = vcmp.lt.s32.totalorder %v4946, 0
    %vm4965 = vmand %vm4956, %vm4947
    %vm4966 = vmand %vm4957, %vm4948
    %vm4967 = vmand %vm4958, %vm4949
    %vm4968 = vmand %vm4959, %vm4950
    %vm4969 = vmand %vm4960, %vm4951
    %vm4970 = vmand %vm4961, %vm4952
    %vm4971 = vmand %vm4962, %vm4953
    %vm4972 = vmand %vm4963, %vm4954
    %vm4973 = vmand %vm4964, %vm4955
    %v4974 = vadd.s32 %v4890, 2
    %v4975 = vadd.s32 %v4897, 2
    %v4976 = vadd.s32 %v4904, 2
    %v4977 = vadd.s32 %v4911, 2
    %v4978 = vadd.s32 %v4918, 2
    %v4979 = vadd.s32 %v4925, 2
    %v4980 = vadd.s32 %v4932, 2
    %v4981 = vadd.s32 %v4939, 2
    %v4982 = vadd.s32 %v4946, 2
    %v4983 = vsel %vm4965, %v4974, %v4890
    %v4984 = vsel %vm4966, %v4975, %v4897
    %v4985 = vsel %vm4967, %v4976, %v4904
    %v4986 = vsel %vm4968, %v4977, %v4911
    %v4987 = vsel %vm4969, %v4978, %v4918
    %v4988 = vsel %vm4970, %v4979, %v4925
    %v4989 = vsel %vm4971, %v4980, %v4932
    %v4990 = vsel %vm4972, %v4981, %v4939
    %v4991 = vsel %vm4973, %v4982, %v4946
    %vm4992 = vcmp.eq.s32.totalorder %v4983, %v4883
    %vm4993 = vcmp.eq.s32.totalorder %v4984, %v4883
    %vm4994 = vcmp.eq.s32.totalorder %v4985, %v4883
    %vm4995 = vcmp.eq.s32.totalorder %v4986, %v4883
    %vm4996 = vcmp.eq.s32.totalorder %v4987, %v4883
    %vm4997 = vcmp.eq.s32.totalorder %v4988, %v4883
    %vm4998 = vcmp.eq.s32.totalorder %v4989, %v4883
    %vm4999 = vcmp.eq.s32.totalorder %v4990, %v4883
    %vm5000 = vcmp.eq.s32.totalorder %v4991, %v4883
    %5002 = vset.pattern.permute.xlu0 0
    %5003 = vperm.xlu0 %5002, %v4863
    %v5004 = vpop.permute.xlu0 %5003
    %5007 = vset.pattern.permute.xlu0 0
    %5008 = vperm.xlu0 %5007, %v4864
    %v5009 = vpop.permute.xlu0 %5008
    %5012 = vset.pattern.permute.xlu0 0
    %5013 = vperm.xlu0 %5012, %v4865
    %v5014 = vpop.permute.xlu0 %5013
    %5017 = vset.pattern.permute.xlu0 0
    %5018 = vperm.xlu0 %5017, %v4866
    %v5019 = vpop.permute.xlu0 %5018
    %5022 = vset.pattern.permute.xlu0 0
    %5023 = vperm.xlu0 %5022, %v4867
    %v5024 = vpop.permute.xlu0 %5023
    %5027 = vset.pattern.permute.xlu0 0
    %5028 = vperm.xlu0 %5027, %v4868
    %v5029 = vpop.permute.xlu0 %5028
    %5032 = vset.pattern.permute.xlu0 0
    %5033 = vperm.xlu0 %5032, %v4869
    %v5034 = vpop.permute.xlu0 %5033
    %5037 = vset.pattern.permute.xlu0 0
    %5038 = vperm.xlu0 %5037, %v4870
    %v5039 = vpop.permute.xlu0 %5038
    %5042 = vset.pattern.permute.xlu0 0
    %5043 = vperm.xlu0 %5042, %v4871
    %v5044 = vpop.permute.xlu0 %5043
    %v5046 = vsel %vm4992, %v5004, -inf
    %v5047 = vsel %vm4993, %v5009, -inf
    %v5048 = vsel %vm4994, %v5014, -inf
    %v5049 = vsel %vm4995, %v5019, -inf
    %v5050 = vsel %vm4996, %v5024, -inf
    %v5051 = vsel %vm4997, %v5029, -inf
    %v5052 = vsel %vm4998, %v5034, -inf
    %v5053 = vsel %vm4999, %v5039, -inf
    %v5054 = vsel %vm5000, %v5044, -inf
    %vm5055 = vcmask 15360
    %v5056 = vsel %vm5055, %v5046, -inf
    %v5057 = vsel %vm5055, %v5047, -inf
    %v5058 = vsel %vm5055, %v5048, -inf
    %v5059 = vsel %vm5055, %v5049, -inf
    %v5060 = vsel %vm5055, %v5050, -inf
    %v5061 = vmax.f32 %v5056, %v5060
    %v5062 = vsel %vm5055, %v5051, -inf
    %v5063 = vmax.f32 %v5057, %v5062
    %v5064 = vsel %vm5055, %v5052, -inf
    %v5065 = vmax.f32 %v5058, %v5064
    %v5066 = vsel %vm5055, %v5053, -inf
    %v5067 = vmax.f32 %v5059, %v5066
    %v5068 = vsel %vm5055, %v5054, -inf
    %v5069 = vmax.f32 %v5061, %v5068
    %v5070 = vmax.f32 %v5069, %v5063
    %v5071 = vmax.f32 %v5065, %v5067
    %v5072 = vmax.f32 %v5070, %v5071
    %v5073 = vrot.slane %v5072, 4
    %v5074 = vmax.f32 %v5072, %v5073
    %v5075 = vrot.slane %v5074, 2
    %v5076 = vmax.f32 %v5074, %v5075
    %v5077 = vrot.slane %v5076, 1
    %v5078 = vmax.f32 %v5076, %v5077
    %v5079 = vxor.u32 %v5078, 2147483648
    %v5080 = vmul.f32 %v5079, 1.442695
    %v5081 = vpow.pop %v5080
    %v5082 = vadd.f32 %v5081, 1.0
    %v5083 = vrcp.pop %v5082
    %v5084 = vmul.f32 1.0, %v5083
    %vm5085 = vcmask 8192
    %5086 = vst.msk [vmem:[#allocation2] sm:$0x1] %vm5085, %v5084
    // Predicated region
    $region30: #{_lambda_.1} parent=1 // pred_check
      _
    $region31: #{_lambda_.1} parent=1 // pred_check_branch
      %5088 = sbr.rel (0) target = $region33
    $region32: #{_lambda_.1} parent=1 // pred_region
      %s5090 = ssub.s32 16, 16
      %5091 = vsyncadd [#allocation3], %s5090
      %s5093 = sshll.u32 [#allocation2], 4
      %s5094 = int_to_ptr.vmem [resolvable:$true] %s5093
      %5096 = dma.vmem_to_hbm [thread:$0]  %s5094, 16, %s7, [#allocation3]
    $region33: #{_lambda_.1} parent=1 // pred_fallthru
      _
    // Predicated region
    $region34: #{_lambda_.1} parent=1 // pred_check
      _
    $region35: #{_lambda_.1} parent=1 // pred_check_branch
      %5098 = sbr.rel (0) target = $region37
    $region36: #{_lambda_.1} parent=1 // pred_region
      %5099 = dma.done [#allocation3], 16
    $region37: #{_lambda_.1} parent=1 // pred_fallthru
      _
    %5100 = vsyncpa [#allocation3], 1

</llo_original>
